<compile_context>
chip_gen: v7x
topology: tpu7x:2x2x1
jax: 0.10.0
libtpu: 0.0.40
codegen_flags: <defaults>
</compile_context>

<pallas_src>
import functools

import jax
import jax.numpy as jnp
from jax.experimental import pallas as pl
from jax.experimental.pallas import tpu as pltpu

EPS = 1e-5                      # nn.InstanceNorm3d default eps
MATMUL_DTYPE = jnp.bfloat16     # MXU operand dtype (accumulation stays f32)
ACT_DTYPE = jnp.bfloat16        # storage dtype for inter-layer activations
MAX_TILE_LANES = 8192           # max spatial (lane) tile width; multiple of 128
VMEM_LIMIT_BYTES = 32 * 1024 * 1024


# ----------------------------------------------------------------------------
# Pallas kernels.  Every kernel sees its activation tile as (C, S): small
# channel count on sublanes, large spatial axis S lane-dense.
# ----------------------------------------------------------------------------
def _fused_conv_in_prelu_kernel(alpha_ref, p_ref, w_ref, o_ref, *,
                                groups, channels, inv_count):
    """y = W @ P, InstanceNorm (grouped over parities x S), PReLU. One S tile."""
    y = jnp.dot(w_ref[...], p_ref[0],
                preferred_element_type=jnp.float32)            # (G*C, S) f32
    if groups == 1:
        mean = jnp.mean(y, axis=1, keepdims=True)              # (C, 1)
        ex2 = jnp.mean(y * y, axis=1, keepdims=True)
    else:
        # Grouped stats: rows p*C + c of the same real channel c share stats.
        gc = groups * channels
        row = jax.lax.broadcasted_iota(jnp.int32, (gc, gc), 0) % channels
        col = jax.lax.broadcasted_iota(jnp.int32, (gc, gc), 1) % channels
        pmat = jnp.where(row == col, jnp.float32(inv_count), jnp.float32(0.0))
        mean = jnp.sum(jnp.dot(pmat, y, preferred_element_type=jnp.float32),
                       axis=1, keepdims=True)
        ex2 = jnp.sum(jnp.dot(pmat, y * y, preferred_element_type=jnp.float32),
                      axis=1, keepdims=True)
    var = ex2 - mean * mean
    scale = jax.lax.rsqrt(var + EPS)                           # EUP
    shift = -mean * scale
    z = y * scale + shift                                      # one fused sweep
    a = alpha_ref[0]
    o_ref[0] = jnp.where(z >= 0.0, z, a * z).astype(o_ref.dtype)


def _conv_stats_kernel(p_ref, w_ref, o_ref, sum_ref, sq_ref):
    """Tiled conv matmul; accumulates per-row sum / sum-of-squares over S tiles."""
    s = pl.program_id(1)
    y = jnp.dot(w_ref[...], p_ref[0],
                preferred_element_type=jnp.float32)            # (G*C, S_tile)
    o_ref[0] = y

    @pl.when(s == 0)
    def _():
        sum_ref[...] = jnp.zeros_like(sum_ref)
        sq_ref[...] = jnp.zeros_like(sq_ref)

    sum_ref[0] += jnp.sum(y, axis=1, keepdims=True)
    sq_ref[0] += jnp.sum(y * y, axis=1, keepdims=True)


def _scale_shift_prelu_kernel(alpha_ref, y_ref, scale_ref, shift_ref, o_ref):
    """Second pass of the tiled path: y*scale + shift, then PReLU."""
    z = y_ref[0] * scale_ref[0] + shift_ref[0]
    a = alpha_ref[0]
    o_ref[0] = jnp.where(z >= 0.0, z, a * z).astype(o_ref.dtype)


def _conv_bias_kernel(p_ref, w_ref, b_ref, o_ref):
    """Plain conv matmul + bias (the conv_only top layer)."""
    y = jnp.dot(w_ref[...], p_ref[0], preferred_element_type=jnp.float32)
    o_ref[0] = (y + b_ref[...]).astype(o_ref.dtype)


# ----------------------------------------------------------------------------
# pallas_call wrappers.
# ----------------------------------------------------------------------------
def _pick_s_tile(s):
    """Largest multiple of 128 that divides s and is <= MAX_TILE_LANES (else s)."""
    if s <= MAX_TILE_LANES or s % 128 != 0:
        return s
    for t in range(MAX_TILE_LANES, 127, -128):
        if s % t == 0:
            return t
    return s


def _conv_norm_act(patches, wmat, alpha, channels, out_dtype):
    """(W @ patches) -> InstanceNorm (no affine, grouped) -> PReLU.

    patches: (N, K, S) in MATMUL_DTYPE; wmat: (G*C, K).  Returns (N, G*C, S).
    """
    n, k, s = patches.shape
    gc = wmat.shape[0]
    groups = gc // channels
    inv_count = 1.0 / float(groups * s)
    alpha = jnp.asarray(alpha, jnp.float32).reshape(1)
    wmat = wmat.astype(MATMUL_DTYPE)
    s_tile = _pick_s_tile(s)
    mosaic = functools.partial(pltpu.CompilerParams,
                               vmem_limit_bytes=VMEM_LIMIT_BYTES)

    if s_tile == s:
        # Whole spatial extent fits one lane tile: fully fused single pass.
        return pl.pallas_call(
            functools.partial(_fused_conv_in_prelu_kernel, groups=groups,
                              channels=channels, inv_count=inv_count),
            out_shape=jax.ShapeDtypeStruct((n, gc, s), out_dtype),
            grid=(n,),
            in_specs=[
                pl.BlockSpec((1,), lambda i: (0,),
                             memory_space=pltpu.MemorySpace.SMEM),
                pl.BlockSpec((1, k, s), lambda i: (i, 0, 0)),
                pl.BlockSpec((gc, k), lambda i: (0, 0)),
            ],
            out_specs=pl.BlockSpec((1, gc, s), lambda i: (i, 0, 0)),
            compiler_params=mosaic(dimension_semantics=("parallel",)),
        )(alpha, patches, wmat)

    # Fallback for very large volumes: stream S tiles, accumulating sum /
    # sum-of-squares in resident stats outputs; normalize + PReLU in a second
    # light pass.
    n_tiles = s // s_tile
    conv, sums, sqs = pl.pallas_call(
        _conv_stats_kernel,
        out_shape=(jax.ShapeDtypeStruct((n, gc, s), jnp.float32),
                   jax.ShapeDtypeStruct((n, gc, 1), jnp.float32),
                   jax.ShapeDtypeStruct((n, gc, 1), jnp.float32)),
        grid=(n, n_tiles),
        in_specs=[
            pl.BlockSpec((1, k, s_tile), lambda i, j: (i, 0, j)),
            pl.BlockSpec((gc, k), lambda i, j: (0, 0)),
        ],
        out_specs=(
            pl.BlockSpec((1, gc, s_tile), lambda i, j: (i, 0, j)),
            pl.BlockSpec((1, gc, 1), lambda i, j: (i, 0, 0)),
            pl.BlockSpec((1, gc, 1), lambda i, j: (i, 0, 0)),
        ),
        compiler_params=mosaic(dimension_semantics=("parallel", "arbitrary")),
    )(patches, wmat)

    # Finalize the tiny per-(sample, channel) statistics in plain JAX.
    g_sum = sums.reshape(n, groups, channels).sum(axis=1)      # (N, C)
    g_sq = sqs.reshape(n, groups, channels).sum(axis=1)
    mean = g_sum * inv_count
    var = g_sq * inv_count - mean * mean
    scale_c = jax.lax.rsqrt(var + EPS)
    shift_c = -mean * scale_c
    scale = jnp.tile(scale_c, (1, groups)).reshape(n, gc, 1)   # row p*C + c -> c
    shift = jnp.tile(shift_c, (1, groups)).reshape(n, gc, 1)

    return pl.pallas_call(
        _scale_shift_prelu_kernel,
        out_shape=jax.ShapeDtypeStruct((n, gc, s), out_dtype),
        grid=(n, n_tiles),
        in_specs=[
            pl.BlockSpec((1,), lambda i, j: (0,),
                         memory_space=pltpu.MemorySpace.SMEM),
            pl.BlockSpec((1, gc, s_tile), lambda i, j: (i, 0, j)),
            pl.BlockSpec((1, gc, 1), lambda i, j: (i, 0, 0)),
            pl.BlockSpec((1, gc, 1), lambda i, j: (i, 0, 0)),
        ],
        out_specs=pl.BlockSpec((1, gc, s_tile), lambda i, j: (i, 0, j)),
        compiler_params=mosaic(dimension_semantics=("parallel", "parallel")),
    )(alpha, conv, scale, shift)


def _conv_bias(patches, wmat, bias, out_dtype):
    """(W @ patches) + bias, no norm / activation (the conv_only top layer)."""
    n, k, s = patches.shape
    gc = wmat.shape[0]
    wmat = wmat.astype(MATMUL_DTYPE)
    b = jnp.asarray(bias, jnp.float32).reshape(gc, 1)
    s_tile = _pick_s_tile(s)
    n_tiles = s // s_tile
    return pl.pallas_call(
        _conv_bias_kernel,
        out_shape=jax.ShapeDtypeStruct((n, gc, s), out_dtype),
        grid=(n, n_tiles),
        in_specs=[
            pl.BlockSpec((1, k, s_tile), lambda i, j: (i, 0, j)),
            pl.BlockSpec((gc, k), lambda i, j: (0, 0)),
            pl.BlockSpec((gc, 1), lambda i, j: (0, 0)),
        ],
        out_specs=pl.BlockSpec((1, gc, s_tile), lambda i, j: (i, 0, j)),
        compiler_params=pltpu.CompilerParams(
            dimension_semantics=("parallel", "parallel"),
            vmem_limit_bytes=VMEM_LIMIT_BYTES),
    )(patches, wmat, b)


# ----------------------------------------------------------------------------
# Layout glue (plain JAX): patch extraction, sub-pixel weights, pixel shuffle.
# ----------------------------------------------------------------------------
def _im2col3d(x, k, stride):
    """x: (N, C, D, H, W) (already padded) -> patches (N, C*k^3, S), out dims.

    Lane-dense layout: the flattened output-voxel axis S = Do*Ho*Wo is last.
    Feature (row) order is (c, kd, kh, kw), matching weight.reshape(Cout, -1).
    """
    # TODO(synk): fuse patch extraction into the matmul kernel (shifted in-VMEM
    # windows / manual DMA) so the k^3-amplified patches never round-trip HBM.
    n, c, d, h, w = x.shape
    do = (d - k) // stride + 1
    ho = (h - k) // stride + 1
    wo = (w - k) // stride + 1
    cols = []
    for kd in range(k):
        for kh in range(k):
            for kw in range(k):
                cols.append(x[:, :,
                              kd:kd + stride * do:stride,
                              kh:kh + stride * ho:stride,
                              kw:kw + stride * wo:stride])
    p = jnp.stack(cols, axis=2)                     # (N, C, k^3, Do, Ho, Wo)
    return p.reshape(n, c * k ** 3, do * ho * wo), (do, ho, wo)


def conv_block(x, w, b, alpha, stride, norm_act, out_dtype):
    """Conv3d(k=3, pad=1, stride) [+ InstanceNorm + PReLU].  w: (Cout,Cin,3,3,3).

    When norm_act is True the conv bias is cancelled exactly by the non-affine
    InstanceNorm, so it is skipped (b unused on that path).
    """
    n = x.shape[0]
    cout = w.shape[0]
    k = w.shape[-1]
    pad = (k - 1) // 2
    xp = jnp.pad(x, ((0, 0), (0, 0), (pad, pad), (pad, pad), (pad, pad)))
    patches, (do, ho, wo) = _im2col3d(xp.astype(MATMUL_DTYPE), k, stride)
    wmat = w.reshape(cout, -1)
    if norm_act:
        y = _conv_norm_act(patches, wmat, alpha, cout, out_dtype)
    else:
        y = _conv_bias(patches, wmat, b, out_dtype)
    return y.reshape(n, cout, do, ho, wo)           # no transpose needed


# (output parity, 2x2x2-window offset) -> ConvTranspose kernel tap index.
_TAP_IDX = {(0, 0): 1, (1, 0): 2, (1, 1): 0}


def _subpixel_weight_matrix(w_t):
    """ConvTranspose3d(k=3,s=2,p=1,op=1) weight (Cin,Cout,3,3,3) -> (8*Cout, Cin*8).

    Row order: parity (pd,ph,pw) major, Cout minor.  Column order: (cin, od,oh,ow)
    matching the 2x2x2-window im2col of the input padded by one trailing zero.
    """
    cin, cout = w_t.shape[0], w_t.shape[1]
    zero = jnp.zeros((cout, cin), w_t.dtype)
    rows = []
    for pd in (0, 1):
        for ph in (0, 1):
            for pw in (0, 1):
                taps = []
                for od in (0, 1):
                    for oh in (0, 1):
                        for ow in (0, 1):
                            kd = _TAP_IDX.get((pd, od))
                            kh = _TAP_IDX.get((ph, oh))
                            kw = _TAP_IDX.get((pw, ow))
                            if kd is None or kh is None or kw is None:
                                taps.append(zero)
                            else:
                                taps.append(w_t[:, :, kd, kh, kw].T)  # (Cout,Cin)
                rows.append(jnp.stack(taps, axis=-1).reshape(cout, cin * 8))
    return jnp.concatenate(rows, axis=0)


def convT_block(x, w_t, b, alpha, norm_act, out_dtype):
    """ConvTranspose3d(k=3, s=2, p=1, output_padding=1) [+ InstanceNorm + PReLU].

    Sub-pixel decomposition: all 8 output parities come from ONE stride-1
    matmul over a 2x2x2 window of the input grid (no zero-dilated tensor),
    followed by a pixel-shuffle interleave.
    """
    n, cin, d, h, w = x.shape
    cout = w_t.shape[1]
    xp = jnp.pad(x, ((0, 0), (0, 0), (0, 1), (0, 1), (0, 1)))
    patches, _ = _im2col3d(xp.astype(MATMUL_DTYPE), 2, 1)   # (N, Cin*8, D*H*W)
    wc = _subpixel_weight_matrix(w_t)                       # (8*Cout, Cin*8)
    if norm_act:
        # Grouped stats: the real InstanceNorm pools all 8 parities per channel.
        y = _conv_norm_act(patches, wc, alpha, cout, out_dtype)
    else:
        y = _conv_bias(patches, wc, jnp.tile(b, 8), out_dtype)
    # Pixel-shuffle (N, 8*Cout, D*H*W) -> (N, Cout, 2D, 2H, 2W).
    y = y.reshape(n, 2, 2, 2, cout, d, h, w)
    y = jnp.transpose(y, (0, 4, 5, 1, 6, 2, 7, 3))
    return y.reshape(n, cout, 2 * d, 2 * h, 2 * w)


# ----------------------------------------------------------------------------
# Full UNet forward (channels=(4,8,16), strides=(2,2), num_res_units=0).
# ----------------------------------------------------------------------------
@jax.jit
def unet_forward(x, params):
    # Encoder (each: Conv stride 2 -> InstanceNorm -> Dropout(0) -> PReLU).
    e0 = conv_block(x, params["d0_w"], params["d0_b"], params["d0_a"], 2, True,
                    ACT_DTYPE)
    e1 = conv_block(e0, params["d1_w"], params["d1_b"], params["d1_a"], 2, True,
                    ACT_DTYPE)
    # Bottom (stride 1).
    bm = conv_block(e1, params["bt_w"], params["bt_b"], params["bt_a"], 1, True,
                    ACT_DTYPE)
    # Inner SkipConnection: cat([x, sub(x)]) -> up (ConvTranspose -> IN -> PReLU).
    cat1 = jnp.concatenate([e1, bm], axis=1)
    u1 = convT_block(cat1, params["u1_w"], params["u1_b"], params["u1_a"], True,
                     ACT_DTYPE)
    # Outer SkipConnection -> top up layer (conv_only: ConvTranspose + bias).
    cat0 = jnp.concatenate([e0, u1], axis=1)
    return convT_block(cat0, params["u0_w"], params["u0_b"], params["u0_a"],
                       False, jnp.float32)


# ----------------------------------------------------------------------------
# Deterministic parameter construction.
# ----------------------------------------------------------------------------
def _init_conv(key, cin, cout, k):
    k1, k2 = jax.random.split(key)
    fan_in = cin * k ** 3
    w = jax.random.normal(k1, (cout, cin, k, k, k), jnp.float32) / jnp.sqrt(fan_in)
    b = jax.random.normal(k2, (cout,), jnp.float32) * 0.01
    return w, b


def _init_convT(key, cin, cout, k):
    k1, k2 = jax.random.split(key)
    fan_in = cout * k ** 3
    w = jax.random.normal(k1, (cin, cout, k, k, k), jnp.float32) / jnp.sqrt(fan_in)
    b = jax.random.normal(k2, (cout,), jnp.float32) * 0.01
    return w, b


def make_params(key):
    ks = jax.random.split(key, 5)
    p = {}
    p["d0_w"], p["d0_b"] = _init_conv(ks[0], 1, 4, 3)
    p["d1_w"], p["d1_b"] = _init_conv(ks[1], 4, 8, 3)
    p["bt_w"], p["bt_b"] = _init_conv(ks[2], 8, 16, 3)
    p["u1_w"], p["u1_b"] = _init_convT(ks[3], 24, 4, 3)
    p["u0_w"], p["u0_b"] = _init_convT(ks[4], 8, 2, 3)
    # PReLU single-parameter, PyTorch default init 0.25 (u0 alpha unused: conv_only).
    for name in ("d0", "d1", "bt", "u1", "u0"):
        p[f"{name}_a"] = jnp.float32(0.25)
    return p


if __name__ == "__main__":
    root = jax.random.PRNGKey(0)
    pkey, xkey = jax.random.split(root)
    params = make_params(pkey)

    # Input: batch=2, in_channels=1, spatial 32^3 (multiple of 2^2 as required).
    x = jax.random.normal(xkey, (2, 1, 32, 32, 32), jnp.float32)

    out = jax.block_until_ready(unet_forward(x, params))

    assert out.shape == (2, 2, 32, 32, 32), out.shape
    assert jnp.all(jnp.isfinite(out))
    print("KERNEL_OK")
</pallas_src>

<mosaic_0001>
module attributes {stable_mosaic.version = 11 : i64} {
  func.func @_fused_conv_in_prelu_kernel(%arg0: i32, %arg1: memref<1xf32, #tpu.memory_space<smem>>, %arg2: memref<1x27x4096xbf16, #tpu.memory_space<vmem>>, %arg3: memref<4x27xbf16, #tpu.memory_space<vmem>>, %arg4: memref<1x4x4096xbf16, #tpu.memory_space<vmem>>) attributes {dimension_semantics = [#tpu.dimension_semantics<parallel>], iteration_bounds = array<i64: 2>, scalar_prefetch = 0 : i64, scratch_operands = 0 : i64, tpu.core_type = #tpu.core_type<tc>, window_params = [{transform_indices = @transform_0, window_bounds = array<i64: 1>}, {transform_indices = @transform_1, window_bounds = array<i64: 1, 27, 4096>}, {pipeline_mode = #tpu.pipeline_mode<synchronous>, transform_indices = @transform_2, window_bounds = array<i64: 4, 27>}, {transform_indices = @transform_3, window_bounds = array<i64: 1, 4, 4096>}]} {
    %c0 = arith.constant 0 : index
    %c0_0 = arith.constant 0 : index
    %0 = vector.load %arg3[%c0, %c0_0] : memref<4x27xbf16, #tpu.memory_space<vmem>>, vector<4x27xbf16>
    %c0_1 = arith.constant 0 : index
    %c0_2 = arith.constant 0 : index
    %c0_3 = arith.constant 0 : index
    %1 = vector.load %arg2[%c0_1, %c0_2, %c0_3] : memref<1x27x4096xbf16, #tpu.memory_space<vmem>>, vector<1x27x4096xbf16>
    %2 = vector.shape_cast %1 : vector<1x27x4096xbf16> to vector<27x4096xbf16>
    %cst = arith.constant dense<0.000000e+00> : vector<4x4096xf32>
    %3 = tpu.matmul %0, %2, %cst {dimension_numbers = #tpu.dot_dimension_numbers<[1], [0], [0], [1], [0, 0, 1, 1], [], []>} : vector<4x27xbf16>, vector<27x4096xbf16>, vector<4x4096xf32> -> vector<4x4096xf32>
    %cst_4 = arith.constant dense<0.000000e+00> : vector<4xf32>
    %4 = vector.multi_reduction <add>, %3, %cst_4 [1] : vector<4x4096xf32> to vector<4xf32>
    %5 = vector.shape_cast %4 : vector<4xf32> to vector<4x1xf32>
    %cst_5 = arith.constant 4.096000e+03 : f32
    %6 = vector.broadcast %cst_5 : f32 to vector<4x1xf32>
    %7 = arith.divf %5, %6 : vector<4x1xf32>
    %8 = arith.mulf %3, %3 : vector<4x4096xf32>
    %cst_6 = arith.constant dense<0.000000e+00> : vector<4xf32>
    %9 = vector.multi_reduction <add>, %8, %cst_6 [1] : vector<4x4096xf32> to vector<4xf32>
    %10 = vector.shape_cast %9 : vector<4xf32> to vector<4x1xf32>
    %cst_7 = arith.constant 4.096000e+03 : f32
    %11 = vector.broadcast %cst_7 : f32 to vector<4x1xf32>
    %12 = arith.divf %10, %11 : vector<4x1xf32>
    %13 = arith.mulf %7, %7 : vector<4x1xf32>
    %14 = arith.subf %12, %13 : vector<4x1xf32>
    %cst_8 = arith.constant 9.99999974E-6 : f32
    %15 = vector.broadcast %cst_8 : f32 to vector<4x1xf32>
    %16 = arith.addf %14, %15 : vector<4x1xf32>
    %17 = math.rsqrt %16 : vector<4x1xf32>
    %cst_9 = arith.constant 0.000000e+00 : f32
    %18 = vector.broadcast %cst_9 : f32 to vector<4x1xf32>
    %19 = arith.subf %18, %7 : vector<4x1xf32>
    %20 = arith.mulf %19, %17 : vector<4x1xf32>
    %21 = vector.broadcast %17 : vector<4x1xf32> to vector<4x4096xf32>
    %22 = arith.mulf %3, %21 : vector<4x4096xf32>
    %23 = vector.broadcast %20 : vector<4x1xf32> to vector<4x4096xf32>
    %24 = arith.addf %22, %23 : vector<4x4096xf32>
    %c0_10 = arith.constant 0 : index
    %25 = memref.load %arg1[%c0_10] : memref<1xf32, #tpu.memory_space<smem>>
    %cst_11 = arith.constant 0.000000e+00 : f32
    %26 = vector.broadcast %cst_11 : f32 to vector<4x4096xf32>
    %27 = arith.cmpf oge, %24, %26 : vector<4x4096xf32>
    %28 = vector.broadcast %25 : f32 to vector<4x4096xf32>
    %29 = arith.mulf %28, %24 : vector<4x4096xf32>
    %30 = arith.select %27, %24, %29 : vector<4x4096xi1>, vector<4x4096xf32>
    %31 = arith.truncf %30 : vector<4x4096xf32> to vector<4x4096xbf16>
    %c0_12 = arith.constant 0 : index
    %c0_13 = arith.constant 0 : index
    %c0_14 = arith.constant 0 : index
    %32 = vector.load %arg4[%c0_12, %c0_13, %c0_14] : memref<1x4x4096xbf16, #tpu.memory_space<vmem>>, vector<1x4x4096xbf16>
    %33 = vector.shape_cast %32 : vector<1x4x4096xbf16> to vector<4x4096xbf16>
    %34 = vector.shape_cast %31 : vector<4x4096xbf16> to vector<1x4x4096xbf16>
    tpu.vector_store %arg4[%c0_12, %c0_13, %c0_14], %34 {strides = array<i32>} : memref<1x4x4096xbf16, #tpu.memory_space<vmem>>, vector<1x4x4096xbf16>,
    return
  }
  func.func @transform_0(%arg0: i32) -> i32 {
    %c0_i32 = arith.constant 0 : i32
    %c0_i32_0 = arith.constant 0 : i32
    return %c0_i32 : i32
  }
  func.func @transform_1(%arg0: i32) -> (i32, i32, i32) {
    %c0_i32 = arith.constant 0 : i32
    %c0_i32_0 = arith.constant 0 : i32
    %c0_i32_1 = arith.constant 0 : i32
    return %arg0, %c0_i32, %c0_i32_0 : i32, i32, i32
  }
  func.func @transform_2(%arg0: i32) -> (i32, i32) {
    %c0_i32 = arith.constant 0 : i32
    %c0_i32_0 = arith.constant 0 : i32
    %c0_i32_1 = arith.constant 0 : i32
    return %c0_i32, %c0_i32_0 : i32, i32
  }
  func.func @transform_3(%arg0: i32) -> (i32, i32, i32) {
    %c0_i32 = arith.constant 0 : i32
    %c0_i32_0 = arith.constant 0 : i32
    %c0_i32_1 = arith.constant 0 : i32
    return %arg0, %c0_i32, %c0_i32_0 : i32, i32, i32
  }
}

module attributes {stable_mosaic.version = 11 : i64} {
  func.func @_fused_conv_in_prelu_kernel(%arg0: i32, %arg1: memref<1xf32, #tpu.memory_space<smem>>, %arg2: memref<1x108x512xbf16, #tpu.memory_space<vmem>>, %arg3: memref<8x108xbf16, #tpu.memory_space<vmem>>, %arg4: memref<1x8x512xbf16, #tpu.memory_space<vmem>>) attributes {dimension_semantics = [#tpu.dimension_semantics<parallel>], iteration_bounds = array<i64: 2>, scalar_prefetch = 0 : i64, scratch_operands = 0 : i64, tpu.core_type = #tpu.core_type<tc>, window_params = [{transform_indices = @transform_0, window_bounds = array<i64: 1>}, {transform_indices = @transform_1, window_bounds = array<i64: 1, 108, 512>}, {pipeline_mode = #tpu.pipeline_mode<synchronous>, transform_indices = @transform_2, window_bounds = array<i64: 8, 108>}, {transform_indices = @transform_3, window_bounds = array<i64: 1, 8, 512>}]} {
    %c0 = arith.constant 0 : index
    %c0_0 = arith.constant 0 : index
    %0 = vector.load %arg3[%c0, %c0_0] : memref<8x108xbf16, #tpu.memory_space<vmem>>, vector<8x108xbf16>
    %c0_1 = arith.constant 0 : index
    %c0_2 = arith.constant 0 : index
    %c0_3 = arith.constant 0 : index
    %1 = vector.load %arg2[%c0_1, %c0_2, %c0_3] : memref<1x108x512xbf16, #tpu.memory_space<vmem>>, vector<1x108x512xbf16>
    %2 = vector.shape_cast %1 : vector<1x108x512xbf16> to vector<108x512xbf16>
    %cst = arith.constant dense<0.000000e+00> : vector<8x512xf32>
    %3 = tpu.matmul %0, %2, %cst {dimension_numbers = #tpu.dot_dimension_numbers<[1], [0], [0], [1], [0, 0, 1, 1], [], []>} : vector<8x108xbf16>, vector<108x512xbf16>, vector<8x512xf32> -> vector<8x512xf32>
    %cst_4 = arith.constant dense<0.000000e+00> : vector<8xf32>
    %4 = vector.multi_reduction <add>, %3, %cst_4 [1] : vector<8x512xf32> to vector<8xf32>
    %5 = vector.shape_cast %4 : vector<8xf32> to vector<8x1xf32>
    %cst_5 = arith.constant 5.120000e+02 : f32
    %6 = vector.broadcast %cst_5 : f32 to vector<8x1xf32>
    %7 = arith.divf %5, %6 : vector<8x1xf32>
    %8 = arith.mulf %3, %3 : vector<8x512xf32>
    %cst_6 = arith.constant dense<0.000000e+00> : vector<8xf32>
    %9 = vector.multi_reduction <add>, %8, %cst_6 [1] : vector<8x512xf32> to vector<8xf32>
    %10 = vector.shape_cast %9 : vector<8xf32> to vector<8x1xf32>
    %cst_7 = arith.constant 5.120000e+02 : f32
    %11 = vector.broadcast %cst_7 : f32 to vector<8x1xf32>
    %12 = arith.divf %10, %11 : vector<8x1xf32>
    %13 = arith.mulf %7, %7 : vector<8x1xf32>
    %14 = arith.subf %12, %13 : vector<8x1xf32>
    %cst_8 = arith.constant 9.99999974E-6 : f32
    %15 = vector.broadcast %cst_8 : f32 to vector<8x1xf32>
    %16 = arith.addf %14, %15 : vector<8x1xf32>
    %17 = math.rsqrt %16 : vector<8x1xf32>
    %cst_9 = arith.constant 0.000000e+00 : f32
    %18 = vector.broadcast %cst_9 : f32 to vector<8x1xf32>
    %19 = arith.subf %18, %7 : vector<8x1xf32>
    %20 = arith.mulf %19, %17 : vector<8x1xf32>
    %21 = vector.broadcast %17 : vector<8x1xf32> to vector<8x512xf32>
    %22 = arith.mulf %3, %21 : vector<8x512xf32>
    %23 = vector.broadcast %20 : vector<8x1xf32> to vector<8x512xf32>
    %24 = arith.addf %22, %23 : vector<8x512xf32>
    %c0_10 = arith.constant 0 : index
    %25 = memref.load %arg1[%c0_10] : memref<1xf32, #tpu.memory_space<smem>>
    %cst_11 = arith.constant 0.000000e+00 : f32
    %26 = vector.broadcast %cst_11 : f32 to vector<8x512xf32>
    %27 = arith.cmpf oge, %24, %26 : vector<8x512xf32>
    %28 = vector.broadcast %25 : f32 to vector<8x512xf32>
    %29 = arith.mulf %28, %24 : vector<8x512xf32>
    %30 = arith.select %27, %24, %29 : vector<8x512xi1>, vector<8x512xf32>
    %31 = arith.truncf %30 : vector<8x512xf32> to vector<8x512xbf16>
    %c0_12 = arith.constant 0 : index
    %c0_13 = arith.constant 0 : index
    %c0_14 = arith.constant 0 : index
    %32 = vector.load %arg4[%c0_12, %c0_13, %c0_14] : memref<1x8x512xbf16, #tpu.memory_space<vmem>>, vector<1x8x512xbf16>
    %33 = vector.shape_cast %32 : vector<1x8x512xbf16> to vector<8x512xbf16>
    %34 = vector.shape_cast %31 : vector<8x512xbf16> to vector<1x8x512xbf16>
    tpu.vector_store %arg4[%c0_12, %c0_13, %c0_14], %34 {strides = array<i32>} : memref<1x8x512xbf16, #tpu.memory_space<vmem>>, vector<1x8x512xbf16>,
    return
  }
  func.func @transform_0(%arg0: i32) -> i32 {
    %c0_i32 = arith.constant 0 : i32
    %c0_i32_0 = arith.constant 0 : i32
    return %c0_i32 : i32
  }
  func.func @transform_1(%arg0: i32) -> (i32, i32, i32) {
    %c0_i32 = arith.constant 0 : i32
    %c0_i32_0 = arith.constant 0 : i32
    %c0_i32_1 = arith.constant 0 : i32
    return %arg0, %c0_i32, %c0_i32_0 : i32, i32, i32
  }
  func.func @transform_2(%arg0: i32) -> (i32, i32) {
    %c0_i32 = arith.constant 0 : i32
    %c0_i32_0 = arith.constant 0 : i32
    %c0_i32_1 = arith.constant 0 : i32
    return %c0_i32, %c0_i32_0 : i32, i32
  }
  func.func @transform_3(%arg0: i32) -> (i32, i32, i32) {
    %c0_i32 = arith.constant 0 : i32
    %c0_i32_0 = arith.constant 0 : i32
    %c0_i32_1 = arith.constant 0 : i32
    return %arg0, %c0_i32, %c0_i32_0 : i32, i32, i32
  }
}

module attributes {stable_mosaic.version = 11 : i64} {
  func.func @_fused_conv_in_prelu_kernel(%arg0: i32, %arg1: memref<1xf32, #tpu.memory_space<smem>>, %arg2: memref<1x216x512xbf16, #tpu.memory_space<vmem>>, %arg3: memref<16x216xbf16, #tpu.memory_space<vmem>>, %arg4: memref<1x16x512xbf16, #tpu.memory_space<vmem>>) attributes {dimension_semantics = [#tpu.dimension_semantics<parallel>], iteration_bounds = array<i64: 2>, scalar_prefetch = 0 : i64, scratch_operands = 0 : i64, tpu.core_type = #tpu.core_type<tc>, window_params = [{transform_indices = @transform_0, window_bounds = array<i64: 1>}, {transform_indices = @transform_1, window_bounds = array<i64: 1, 216, 512>}, {pipeline_mode = #tpu.pipeline_mode<synchronous>, transform_indices = @transform_2, window_bounds = array<i64: 16, 216>}, {transform_indices = @transform_3, window_bounds = array<i64: 1, 16, 512>}]} {
    %c0 = arith.constant 0 : index
    %c0_0 = arith.constant 0 : index
    %0 = vector.load %arg3[%c0, %c0_0] : memref<16x216xbf16, #tpu.memory_space<vmem>>, vector<16x216xbf16>
    %c0_1 = arith.constant 0 : index
    %c0_2 = arith.constant 0 : index
    %c0_3 = arith.constant 0 : index
    %1 = vector.load %arg2[%c0_1, %c0_2, %c0_3] : memref<1x216x512xbf16, #tpu.memory_space<vmem>>, vector<1x216x512xbf16>
    %2 = vector.shape_cast %1 : vector<1x216x512xbf16> to vector<216x512xbf16>
    %cst = arith.constant dense<0.000000e+00> : vector<16x512xf32>
    %3 = tpu.matmul %0, %2, %cst {dimension_numbers = #tpu.dot_dimension_numbers<[1], [0], [0], [1], [0, 0, 1, 1], [], []>} : vector<16x216xbf16>, vector<216x512xbf16>, vector<16x512xf32> -> vector<16x512xf32>
    %cst_4 = arith.constant dense<0.000000e+00> : vector<16xf32>
    %4 = vector.multi_reduction <add>, %3, %cst_4 [1] : vector<16x512xf32> to vector<16xf32>
    %5 = vector.shape_cast %4 : vector<16xf32> to vector<16x1xf32>
    %cst_5 = arith.constant 5.120000e+02 : f32
    %6 = vector.broadcast %cst_5 : f32 to vector<16x1xf32>
    %7 = arith.divf %5, %6 : vector<16x1xf32>
    %8 = arith.mulf %3, %3 : vector<16x512xf32>
    %cst_6 = arith.constant dense<0.000000e+00> : vector<16xf32>
    %9 = vector.multi_reduction <add>, %8, %cst_6 [1] : vector<16x512xf32> to vector<16xf32>
    %10 = vector.shape_cast %9 : vector<16xf32> to vector<16x1xf32>
    %cst_7 = arith.constant 5.120000e+02 : f32
    %11 = vector.broadcast %cst_7 : f32 to vector<16x1xf32>
    %12 = arith.divf %10, %11 : vector<16x1xf32>
    %13 = arith.mulf %7, %7 : vector<16x1xf32>
    %14 = arith.subf %12, %13 : vector<16x1xf32>
    %cst_8 = arith.constant 9.99999974E-6 : f32
    %15 = vector.broadcast %cst_8 : f32 to vector<16x1xf32>
    %16 = arith.addf %14, %15 : vector<16x1xf32>
    %17 = math.rsqrt %16 : vector<16x1xf32>
    %cst_9 = arith.constant 0.000000e+00 : f32
    %18 = vector.broadcast %cst_9 : f32 to vector<16x1xf32>
    %19 = arith.subf %18, %7 : vector<16x1xf32>
    %20 = arith.mulf %19, %17 : vector<16x1xf32>
    %21 = vector.broadcast %17 : vector<16x1xf32> to vector<16x512xf32>
    %22 = arith.mulf %3, %21 : vector<16x512xf32>
    %23 = vector.broadcast %20 : vector<16x1xf32> to vector<16x512xf32>
    %24 = arith.addf %22, %23 : vector<16x512xf32>
    %c0_10 = arith.constant 0 : index
    %25 = memref.load %arg1[%c0_10] : memref<1xf32, #tpu.memory_space<smem>>
    %cst_11 = arith.constant 0.000000e+00 : f32
    %26 = vector.broadcast %cst_11 : f32 to vector<16x512xf32>
    %27 = arith.cmpf oge, %24, %26 : vector<16x512xf32>
    %28 = vector.broadcast %25 : f32 to vector<16x512xf32>
    %29 = arith.mulf %28, %24 : vector<16x512xf32>
    %30 = arith.select %27, %24, %29 : vector<16x512xi1>, vector<16x512xf32>
    %31 = arith.truncf %30 : vector<16x512xf32> to vector<16x512xbf16>
    %c0_12 = arith.constant 0 : index
    %c0_13 = arith.constant 0 : index
    %c0_14 = arith.constant 0 : index
    %32 = vector.load %arg4[%c0_12, %c0_13, %c0_14] : memref<1x16x512xbf16, #tpu.memory_space<vmem>>, vector<1x16x512xbf16>
    %33 = vector.shape_cast %32 : vector<1x16x512xbf16> to vector<16x512xbf16>
    %34 = vector.shape_cast %31 : vector<16x512xbf16> to vector<1x16x512xbf16>
    tpu.vector_store %arg4[%c0_12, %c0_13, %c0_14], %34 {strides = array<i32>} : memref<1x16x512xbf16, #tpu.memory_space<vmem>>, vector<1x16x512xbf16>,
    return
  }
  func.func @transform_0(%arg0: i32) -> i32 {
    %c0_i32 = arith.constant 0 : i32
    %c0_i32_0 = arith.constant 0 : i32
    return %c0_i32 : i32
  }
  func.func @transform_1(%arg0: i32) -> (i32, i32, i32) {
    %c0_i32 = arith.constant 0 : i32
    %c0_i32_0 = arith.constant 0 : i32
    %c0_i32_1 = arith.constant 0 : i32
    return %arg0, %c0_i32, %c0_i32_0 : i32, i32, i32
  }
  func.func @transform_2(%arg0: i32) -> (i32, i32) {
    %c0_i32 = arith.constant 0 : i32
    %c0_i32_0 = arith.constant 0 : i32
    %c0_i32_1 = arith.constant 0 : i32
    return %c0_i32, %c0_i32_0 : i32, i32
  }
  func.func @transform_3(%arg0: i32) -> (i32, i32, i32) {
    %c0_i32 = arith.constant 0 : i32
    %c0_i32_0 = arith.constant 0 : i32
    %c0_i32_1 = arith.constant 0 : i32
    return %arg0, %c0_i32, %c0_i32_0 : i32, i32, i32
  }
}

module attributes {stable_mosaic.version = 11 : i64} {
  func.func @_fused_conv_in_prelu_kernel(%arg0: i32, %arg1: memref<1xf32, #tpu.memory_space<smem>>, %arg2: memref<1x192x512xbf16, #tpu.memory_space<vmem>>, %arg3: memref<32x192xbf16, #tpu.memory_space<vmem>>, %arg4: memref<1x32x512xbf16, #tpu.memory_space<vmem>>) attributes {dimension_semantics = [#tpu.dimension_semantics<parallel>], iteration_bounds = array<i64: 2>, scalar_prefetch = 0 : i64, scratch_operands = 0 : i64, tpu.core_type = #tpu.core_type<tc>, window_params = [{transform_indices = @transform_0, window_bounds = array<i64: 1>}, {transform_indices = @transform_1, window_bounds = array<i64: 1, 192, 512>}, {pipeline_mode = #tpu.pipeline_mode<synchronous>, transform_indices = @transform_2, window_bounds = array<i64: 32, 192>}, {transform_indices = @transform_3, window_bounds = array<i64: 1, 32, 512>}]} {
    %c0 = arith.constant 0 : index
    %c0_0 = arith.constant 0 : index
    %0 = vector.load %arg3[%c0, %c0_0] : memref<32x192xbf16, #tpu.memory_space<vmem>>, vector<32x192xbf16>
    %c0_1 = arith.constant 0 : index
    %c0_2 = arith.constant 0 : index
    %c0_3 = arith.constant 0 : index
    %1 = vector.load %arg2[%c0_1, %c0_2, %c0_3] : memref<1x192x512xbf16, #tpu.memory_space<vmem>>, vector<1x192x512xbf16>
    %2 = vector.shape_cast %1 : vector<1x192x512xbf16> to vector<192x512xbf16>
    %cst = arith.constant dense<0.000000e+00> : vector<32x512xf32>
    %3 = tpu.matmul %0, %2, %cst {dimension_numbers = #tpu.dot_dimension_numbers<[1], [0], [0], [1], [0, 0, 1, 1], [], []>} : vector<32x192xbf16>, vector<192x512xbf16>, vector<32x512xf32> -> vector<32x512xf32>
    %4 = tpu.iota {dimensions = array<i32: 0>} : vector<32x32xi32>
    %c4_i32 = arith.constant 4 : i32
    %c0_i32 = arith.constant 0 : i32
    %5 = arith.cmpi eq, %c4_i32, %c0_i32 : i32
    %c1_i32 = arith.constant 1 : i32
    %6 = arith.select %5, %c1_i32, %c4_i32 : i32
    %7 = vector.broadcast %6 : i32 to vector<32x32xi32>
    %8 = arith.remsi %4, %7 : vector<32x32xi32>
    %c0_i32_4 = arith.constant 0 : i32
    %9 = vector.broadcast %c0_i32_4 : i32 to vector<32x32xi32>
    %10 = arith.cmpi ne, %8, %9 : vector<32x32xi32>
    %c0_i32_5 = arith.constant 0 : i32
    %11 = vector.broadcast %c0_i32_5 : i32 to vector<32x32xi32>
    %12 = arith.cmpi slt, %8, %11 : vector<32x32xi32>
    %c0_i32_6 = arith.constant 0 : i32
    %13 = arith.cmpi slt, %6, %c0_i32_6 : i32
    %14 = vector.broadcast %13 : i1 to vector<32x32xi1>
    %15 = vector.broadcast %14 : vector<32x32xi1> to vector<32x32xi1>
    %16 = arith.xori %12, %15 : vector<32x32xi1>
    %17 = arith.andi %16, %10 : vector<32x32xi1>
    %18 = vector.broadcast %6 : i32 to vector<32x32xi32>
    %19 = arith.addi %8, %18 : vector<32x32xi32>
    %20 = arith.select %17, %19, %8 : vector<32x32xi1>, vector<32x32xi32>
    %21 = tpu.iota {dimensions = array<i32: 1>} : vector<32x32xi32>
    %c4_i32_7 = arith.constant 4 : i32
    %c0_i32_8 = arith.constant 0 : i32
    %22 = arith.cmpi eq, %c4_i32_7, %c0_i32_8 : i32
    %c1_i32_9 = arith.constant 1 : i32
    %23 = arith.select %22, %c1_i32_9, %c4_i32_7 : i32
    %24 = vector.broadcast %23 : i32 to vector<32x32xi32>
    %25 = arith.remsi %21, %24 : vector<32x32xi32>
    %c0_i32_10 = arith.constant 0 : i32
    %26 = vector.broadcast %c0_i32_10 : i32 to vector<32x32xi32>
    %27 = arith.cmpi ne, %25, %26 : vector<32x32xi32>
    %c0_i32_11 = arith.constant 0 : i32
    %28 = vector.broadcast %c0_i32_11 : i32 to vector<32x32xi32>
    %29 = arith.cmpi slt, %25, %28 : vector<32x32xi32>
    %c0_i32_12 = arith.constant 0 : i32
    %30 = arith.cmpi slt, %23, %c0_i32_12 : i32
    %31 = vector.broadcast %30 : i1 to vector<32x32xi1>
    %32 = vector.broadcast %31 : vector<32x32xi1> to vector<32x32xi1>
    %33 = arith.xori %29, %32 : vector<32x32xi1>
    %34 = arith.andi %33, %27 : vector<32x32xi1>
    %35 = vector.broadcast %23 : i32 to vector<32x32xi32>
    %36 = arith.addi %25, %35 : vector<32x32xi32>
    %37 = arith.select %34, %36, %25 : vector<32x32xi1>, vector<32x32xi32>
    %38 = arith.cmpi eq, %20, %37 : vector<32x32xi32>
    %cst_13 = arith.constant 2.44140625E-4 : f32
    %cst_14 = arith.constant 0.000000e+00 : f32
    %39 = vector.broadcast %cst_13 : f32 to vector<32x32xf32>
    %40 = vector.broadcast %cst_14 : f32 to vector<32x32xf32>
    %41 = arith.select %38, %39, %40 : vector<32x32xi1>, vector<32x32xf32>
    %cst_15 = arith.constant dense<0.000000e+00> : vector<32x512xf32>
    %42 = tpu.matmul %41, %3, %cst_15 {dimension_numbers = #tpu.dot_dimension_numbers<[1], [0], [0], [1], [0, 0, 1, 1], [], []>} : vector<32x32xf32>, vector<32x512xf32>, vector<32x512xf32> -> vector<32x512xf32>
    %cst_16 = arith.constant dense<0.000000e+00> : vector<32xf32>
    %43 = vector.multi_reduction <add>, %42, %cst_16 [1] : vector<32x512xf32> to vector<32xf32>
    %44 = vector.shape_cast %43 : vector<32xf32> to vector<32x1xf32>
    %45 = arith.mulf %3, %3 : vector<32x512xf32>
    %cst_17 = arith.constant dense<0.000000e+00> : vector<32x512xf32>
    %46 = tpu.matmul %41, %45, %cst_17 {dimension_numbers = #tpu.dot_dimension_numbers<[1], [0], [0], [1], [0, 0, 1, 1], [], []>} : vector<32x32xf32>, vector<32x512xf32>, vector<32x512xf32> -> vector<32x512xf32>
    %cst_18 = arith.constant dense<0.000000e+00> : vector<32xf32>
    %47 = vector.multi_reduction <add>, %46, %cst_18 [1] : vector<32x512xf32> to vector<32xf32>
    %48 = vector.shape_cast %47 : vector<32xf32> to vector<32x1xf32>
    %49 = arith.mulf %44, %44 : vector<32x1xf32>
    %50 = arith.subf %48, %49 : vector<32x1xf32>
    %cst_19 = arith.constant 9.99999974E-6 : f32
    %51 = vector.broadcast %cst_19 : f32 to vector<32x1xf32>
    %52 = arith.addf %50, %51 : vector<32x1xf32>
    %53 = math.rsqrt %52 : vector<32x1xf32>
    %cst_20 = arith.constant 0.000000e+00 : f32
    %54 = vector.broadcast %cst_20 : f32 to vector<32x1xf32>
    %55 = arith.subf %54, %44 : vector<32x1xf32>
    %56 = arith.mulf %55, %53 : vector<32x1xf32>
    %57 = vector.broadcast %53 : vector<32x1xf32> to vector<32x512xf32>
    %58 = arith.mulf %3, %57 : vector<32x512xf32>
    %59 = vector.broadcast %56 : vector<32x1xf32> to vector<32x512xf32>
    %60 = arith.addf %58, %59 : vector<32x512xf32>
    %c0_21 = arith.constant 0 : index
    %61 = memref.load %arg1[%c0_21] : memref<1xf32, #tpu.memory_space<smem>>
    %cst_22 = arith.constant 0.000000e+00 : f32
    %62 = vector.broadcast %cst_22 : f32 to vector<32x512xf32>
    %63 = arith.cmpf oge, %60, %62 : vector<32x512xf32>
    %64 = vector.broadcast %61 : f32 to vector<32x512xf32>
    %65 = arith.mulf %64, %60 : vector<32x512xf32>
    %66 = arith.select %63, %60, %65 : vector<32x512xi1>, vector<32x512xf32>
    %67 = arith.truncf %66 : vector<32x512xf32> to vector<32x512xbf16>
    %c0_23 = arith.constant 0 : index
    %c0_24 = arith.constant 0 : index
    %c0_25 = arith.constant 0 : index
    %68 = vector.load %arg4[%c0_23, %c0_24, %c0_25] : memref<1x32x512xbf16, #tpu.memory_space<vmem>>, vector<1x32x512xbf16>
    %69 = vector.shape_cast %68 : vector<1x32x512xbf16> to vector<32x512xbf16>
    %70 = vector.shape_cast %67 : vector<32x512xbf16> to vector<1x32x512xbf16>
    tpu.vector_store %arg4[%c0_23, %c0_24, %c0_25], %70 {strides = array<i32>} : memref<1x32x512xbf16, #tpu.memory_space<vmem>>, vector<1x32x512xbf16>,
    return
  }
  func.func @transform_0(%arg0: i32) -> i32 {
    %c0_i32 = arith.constant 0 : i32
    %c0_i32_0 = arith.constant 0 : i32
    return %c0_i32 : i32
  }
  func.func @transform_1(%arg0: i32) -> (i32, i32, i32) {
    %c0_i32 = arith.constant 0 : i32
    %c0_i32_0 = arith.constant 0 : i32
    %c0_i32_1 = arith.constant 0 : i32
    return %arg0, %c0_i32, %c0_i32_0 : i32, i32, i32
  }
  func.func @transform_2(%arg0: i32) -> (i32, i32) {
    %c0_i32 = arith.constant 0 : i32
    %c0_i32_0 = arith.constant 0 : i32
    %c0_i32_1 = arith.constant 0 : i32
    return %c0_i32, %c0_i32_0 : i32, i32
  }
  func.func @transform_3(%arg0: i32) -> (i32, i32, i32) {
    %c0_i32 = arith.constant 0 : i32
    %c0_i32_0 = arith.constant 0 : i32
    %c0_i32_1 = arith.constant 0 : i32
    return %arg0, %c0_i32, %c0_i32_0 : i32, i32, i32
  }
}

module attributes {stable_mosaic.version = 11 : i64} {
  func.func @_conv_bias_kernel(%arg0: i32, %arg1: i32, %arg2: memref<1x64x4096xbf16, #tpu.memory_space<vmem>>, %arg3: memref<16x64xbf16, #tpu.memory_space<vmem>>, %arg4: memref<16x1xf32, #tpu.memory_space<vmem>>, %arg5: memref<1x16x4096xf32, #tpu.memory_space<vmem>>) attributes {dimension_semantics = [#tpu.dimension_semantics<parallel>, #tpu.dimension_semantics<parallel>], iteration_bounds = array<i64: 2, 1>, scalar_prefetch = 0 : i64, scratch_operands = 0 : i64, tpu.core_type = #tpu.core_type<tc>, window_params = [{transform_indices = @transform_0, window_bounds = array<i64: 1, 64, 4096>}, {pipeline_mode = #tpu.pipeline_mode<synchronous>, transform_indices = @transform_1, window_bounds = array<i64: 16, 64>}, {pipeline_mode = #tpu.pipeline_mode<synchronous>, transform_indices = @transform_2, window_bounds = array<i64: 16, 1>}, {transform_indices = @transform_3, window_bounds = array<i64: 1, 16, 4096>}]} {
    %c0 = arith.constant 0 : index
    %c0_0 = arith.constant 0 : index
    %0 = vector.load %arg3[%c0, %c0_0] : memref<16x64xbf16, #tpu.memory_space<vmem>>, vector<16x64xbf16>
    %c0_1 = arith.constant 0 : index
    %c0_2 = arith.constant 0 : index
    %c0_3 = arith.constant 0 : index
    %1 = vector.load %arg2[%c0_1, %c0_2, %c0_3] : memref<1x64x4096xbf16, #tpu.memory_space<vmem>>, vector<1x64x4096xbf16>
    %2 = vector.shape_cast %1 : vector<1x64x4096xbf16> to vector<64x4096xbf16>
    %cst = arith.constant dense<0.000000e+00> : vector<16x4096xf32>
    %3 = tpu.matmul %0, %2, %cst {dimension_numbers = #tpu.dot_dimension_numbers<[1], [0], [0], [1], [0, 0, 1, 1], [], []>} : vector<16x64xbf16>, vector<64x4096xbf16>, vector<16x4096xf32> -> vector<16x4096xf32>
    %c0_4 = arith.constant 0 : index
    %c0_5 = arith.constant 0 : index
    %4 = vector.load %arg4[%c0_4, %c0_5] : memref<16x1xf32, #tpu.memory_space<vmem>>, vector<16x1xf32>
    %5 = vector.broadcast %4 : vector<16x1xf32> to vector<16x4096xf32>
    %6 = arith.addf %3, %5 : vector<16x4096xf32>
    %c0_6 = arith.constant 0 : index
    %c0_7 = arith.constant 0 : index
    %c0_8 = arith.constant 0 : index
    %7 = vector.load %arg5[%c0_6, %c0_7, %c0_8] : memref<1x16x4096xf32, #tpu.memory_space<vmem>>, vector<1x16x4096xf32>
    %8 = vector.shape_cast %7 : vector<1x16x4096xf32> to vector<16x4096xf32>
    %9 = vector.shape_cast %6 : vector<16x4096xf32> to vector<1x16x4096xf32>
    tpu.vector_store %arg5[%c0_6, %c0_7, %c0_8], %9 {strides = array<i32>} : memref<1x16x4096xf32, #tpu.memory_space<vmem>>, vector<1x16x4096xf32>,
    return
  }
  func.func @transform_0(%arg0: i32, %arg1: i32) -> (i32, i32, i32) {
    %c0_i32 = arith.constant 0 : i32
    %c0_i32_0 = arith.constant 0 : i32
    return %arg0, %c0_i32, %arg1 : i32, i32, i32
  }
  func.func @transform_1(%arg0: i32, %arg1: i32) -> (i32, i32) {
    %c0_i32 = arith.constant 0 : i32
    %c0_i32_0 = arith.constant 0 : i32
    %c0_i32_1 = arith.constant 0 : i32
    return %c0_i32, %c0_i32_0 : i32, i32
  }
  func.func @transform_2(%arg0: i32, %arg1: i32) -> (i32, i32) {
    %c0_i32 = arith.constant 0 : i32
    %c0_i32_0 = arith.constant 0 : i32
    %c0_i32_1 = arith.constant 0 : i32
    return %c0_i32, %c0_i32_0 : i32, i32
  }
  func.func @transform_3(%arg0: i32, %arg1: i32) -> (i32, i32, i32) {
    %c0_i32 = arith.constant 0 : i32
    %c0_i32_0 = arith.constant 0 : i32
    return %arg0, %c0_i32, %arg1 : i32, i32, i32
  }
}

</mosaic_0001>

<llo_original>
// kernel: tile.8
$region0: #{tile.8}
  #allocation2 [shape = 's32[1]{0}', space=sflag, size = 0x4, scoped, tag = 'scoped memory for tile.8']
  %s0 = inlined_call_operand.hbm [shape: f32[2], index: 0, kind: input, shape index: {}]
  %s1 = inlined_call_operand.vmem [shape: f32[8,2], index: 1, kind: output, shape index: {}]
  $region1: #{tile.8} parent=0
    #allocation0 [shape = 'u8[512]{0}', space=vmem, size = 0x400, scoped, tag = 'operand span for operand 0']
    #allocation1 [shape = 's32[1]{0}', space=sflag, size = 0x4, scoped, tag = 'scoped memory for tile.8']
    %2 = vsyncpa [#allocation1], 0
    // Predicated region
    $region2: #{tile.8} parent=1 // pred_check
      _
    $region3: #{tile.8} parent=1 // pred_check_branch
      %4 = sbr.rel (0) target = $region5
    $region4: #{tile.8} parent=1 // pred_region
      %s6 = ssub.s32 16, 16
      %7 = vsyncadd [#allocation1], %s6
      %s9 = sshll.u32 [#allocation0], 4
      %s10 = int_to_ptr.vmem [resolvable:$true] %s9
      %12 = dma.hbm_to_vmem [thread:$0]  %s0, 16, %s10, [#allocation1]
    $region5: #{tile.8} parent=1 // pred_fallthru
      _
    // Predicated region
    $region6: #{tile.8} parent=1 // pred_check
      _
    $region7: #{tile.8} parent=1 // pred_check_branch
      %14 = sbr.rel (0) target = $region9
    $region8: #{tile.8} parent=1 // pred_region
      %15 = dma.done [#allocation1], 16
    $region9: #{tile.8} parent=1 // pred_fallthru
      _
    %v16 = vld [vmem:[#allocation0] ss:$0 sm:$0xff]
    %17 = vst [vmem:[%s1] sm:$0xff] %v16
    %18 = vsyncpa [#allocation1], 1

// kernel: tile.0
$region0: #{tile.0}
  %s0 = inlined_call_operand.vmem [shape: f32[8,2], index: 0, kind: input, shape index: {}]
  %s1 = inlined_call_operand.vmem [shape: f32[16,1], index: 1, kind: output, shape index: {}]
  %v2 = vld [vmem:[%s0] sm:$0xff]
  %vm3 = vcmask 7168
  %4 = vst.msk [vmem:[%s1] ss:$2 sm:$0xff] %vm3, %v2
  %v5 = vld [vmem:[%s0] sm:$0xff]
  %6 = vrot.lane.b32.xlu0 %v5, 127
  %v7 = vpop.permute.xlu0 %6
  %vm8 = vcmask 7168
  %s9 = scalar_lea.vmem %s1, 1
  %10 = vst.msk [vmem:[%s9] ss:$2 sm:$0xff] %vm8, %v7

// kernel: unet_forward.5
$region0: #{unet_forward.5}
  #allocation0 [shape = 'u32[]', space=smem, size = 0x4, offset = 0x4, fixed_abs, tag = 'smem constant byte address 0x4 - core index']
  #allocation1 [shape = 'u32[144,128]{1,0:T(1,128)}', space=vmem, size = 0x12000, scoped, tag = 'internal scratch']
  #allocation2 [shape = 'f32[1]{0:T(128)S(6)}', space=smem, size = 0x200, scoped, tag = 'scoped memory for unet_forward.5']
  %s0 = inlined_call_operand.<no memory space> [shape: f32[1], index: 0, kind: input, shape index: {}]
  %s1 = inlined_call_operand.vmem [shape: bf16[2,27,4096], index: 1, kind: input, shape index: {}]
  %s2 = inlined_call_operand.vmem [shape: bf16[4,27], index: 2, kind: input, shape index: {}]
  %s3 = inlined_call_operand.vmem [shape: bf16[2,4,4096], index: 3, kind: output, shape index: {}]
  %s4 = sld [smem:[#allocation0]]
  $region45: #{unet_forward.5} parent=0
    _
  %s6 = ssub.s32 1, %s4
  %s7 = scalar_select 0, %s6, %s4
  %8 = sst [smem:[#allocation2]] %s0
  loop: start=0, step=1, limit=4
  $region2: #{unet_forward.5} parent=0 // loop_pre_header
    _
  $region3: #{unet_forward.5} parent=0 // loop_header
    %s10 = sphi 0, %s14
    %p11 = scmp.ge.s32.totalorder %s10, 4
    %s18 = sphi 0, %s18
    %s20 = sphi 0, %s18
    %s21 = sphi 0, %s20
    %s35 = sphi 0, %s21
    %s41 = sphi 0, %s43
    %s44 = sphi 0, %s41
    %s45 = sphi 0, %s44
    %s61 = sphi 0, %s45
    %s65 = sphi 0, %s65
    %s67 = sphi 0, %s65
    %s68 = sphi 0, %s67
    %s82 = sphi 0, %s68
    %s88 = sphi 0, %s90
    %s91 = sphi 0, %s88
    %s92 = sphi 0, %s91
    %s108 = sphi 0, %s92
  $region4: #{unet_forward.5} parent=0 // loop_header_branch
    %13 = sbr.rel (%p11) target = $region8
  $region5: #{unet_forward.5} parent=0 // loop_body
    %s15 = ssub.s32 %s10, 1
    %s16 = ssub.s32 %s10, 2
    %s17 = sadd.s32 %s10, 1
    %s19 = sadd.s32 %s18, 1
    %p22 = scmp.eq.s32.totalorder %s10, 1
    %p23 = scmp.ne.s32.totalorder %s18, %s20
    %p24 = scmp.eq.s32.totalorder %s10, 0
    %p25 = por %p23, %p24
    %p26 = scmp.ne.s32.totalorder %s18, %s20
    %p27 = scmp.eq.s32.totalorder %s15, 1
    %p28 = por %p26, %p27
    %p29 = scmp.ne.s32.totalorder %s20, %s21
    %p30 = scmp.eq.s32.totalorder %s15, 0
    %p31 = por %p29, %p30
    %p32 = scmp.ne.s32.totalorder %s20, %s21
    %p33 = scmp.eq.s32.totalorder %s16, 1
    %p34 = por %p32, %p33
    %p36 = scmp.ne.s32.totalorder %s21, %s35
    %p37 = scmp.eq.s32.totalorder %s16, 0
    %p38 = por %p36, %p37
    %s39 = ssub.s32 %s10, %s17
    %p40 = scmp.eq.s32.totalorder %s39, 0
    %s42 = sadd.s32 %s41, 1
    %s43 = scalar_select %p40, %s41, %s42
    %p46 = pneg %p40
    %p47 = scmp.eq.s32.totalorder %s10, 1
    %p48 = por %p46, %p47
    %p49 = scmp.ne.s32.totalorder %s41, %s44
    %p50 = scmp.eq.s32.totalorder %s10, 0
    %p51 = por %p49, %p50
    %p52 = scmp.ne.s32.totalorder %s41, %s44
    %p53 = scmp.eq.s32.totalorder %s15, 1
    %p54 = por %p52, %p53
    %p55 = scmp.ne.s32.totalorder %s44, %s45
    %p56 = scmp.eq.s32.totalorder %s15, 0
    %p57 = por %p55, %p56
    %p58 = scmp.ne.s32.totalorder %s44, %s45
    %p59 = scmp.eq.s32.totalorder %s16, 1
    %p60 = por %p58, %p59
    %p62 = scmp.ne.s32.totalorder %s45, %s61
    %p63 = scmp.eq.s32.totalorder %s16, 0
    %p64 = por %p62, %p63
    %s66 = sadd.s32 %s65, 1
    %p69 = scmp.eq.s32.totalorder %s10, 1
    %p70 = scmp.ne.s32.totalorder %s65, %s67
    %p71 = scmp.eq.s32.totalorder %s10, 0
    %p72 = por %p70, %p71
    %p73 = scmp.ne.s32.totalorder %s65, %s67
    %p74 = scmp.eq.s32.totalorder %s15, 1
    %p75 = por %p73, %p74
    %p76 = scmp.ne.s32.totalorder %s67, %s68
    %p77 = scmp.eq.s32.totalorder %s15, 0
    %p78 = por %p76, %p77
    %p79 = scmp.ne.s32.totalorder %s67, %s68
    %p80 = scmp.eq.s32.totalorder %s16, 1
    %p81 = por %p79, %p80
    %p83 = scmp.ne.s32.totalorder %s68, %s82
    %p84 = scmp.eq.s32.totalorder %s16, 0
    %p85 = por %p83, %p84
    %s86 = ssub.s32 %s10, %s17
    %p87 = scmp.eq.s32.totalorder %s86, 0
    %s89 = sadd.s32 %s88, 1
    %s90 = scalar_select %p87, %s88, %s89
    %p93 = pneg %p87
    %p94 = scmp.eq.s32.totalorder %s10, 1
    %p95 = por %p93, %p94
    %p96 = scmp.ne.s32.totalorder %s88, %s91
    %p97 = scmp.eq.s32.totalorder %s10, 0
    %p98 = por %p96, %p97
    %p99 = scmp.ne.s32.totalorder %s88, %s91
    %p100 = scmp.eq.s32.totalorder %s15, 1
    %p101 = por %p99, %p100
    %p102 = scmp.ne.s32.totalorder %s91, %s92
    %p103 = scmp.eq.s32.totalorder %s15, 0
    %p104 = por %p102, %p103
    %p105 = scmp.ne.s32.totalorder %s91, %s92
    %p106 = scmp.eq.s32.totalorder %s16, 1
    %p107 = por %p105, %p106
    %p109 = scmp.ne.s32.totalorder %s92, %s108
    %p110 = scmp.eq.s32.totalorder %s16, 0
    %p111 = por %p109, %p110
    %p112 = scmp.le.s32.totalorder 1, %s10
    %p113 = scmp.lt.s32.totalorder %s10, 3
    %p114 = pnand %p112, %p113
    %p115 = pneg %p114
    // Predicated region
    $region9: #{unet_forward.5} parent=5 // pred_check
      _
    $region10: #{unet_forward.5} parent=5 // pred_check_branch
      %117 = sbr.rel (%p114) target = $region12
    $region11: #{unet_forward.5} parent=5 // pred_region
      %s118 = ssub.s32 %s10, 1
      // Predicated region
      $region13: #{unet_forward.5} parent=11 // pred_check
        %p119 = pneg %p31
      $region14: #{unet_forward.5} parent=11 // pred_check_branch
        %121 = sbr.rel (%p119) target = $region16
      $region15: #{unet_forward.5} parent=11 // pred_region
        _
      $region16: #{unet_forward.5} parent=11 // pred_fallthru
        _
      // Predicated region
      $region17: #{unet_forward.5} parent=11 // pred_check
        %p122 = pneg %p78
      $region18: #{unet_forward.5} parent=11 // pred_check_branch
        %124 = sbr.rel (%p122) target = $region20
      $region19: #{unet_forward.5} parent=11 // pred_region
        _
      $region20: #{unet_forward.5} parent=11 // pred_fallthru
        _
    $region12: #{unet_forward.5} parent=5 // pred_fallthru
      _
    %p125 = scmp.lt.s32.totalorder %s10, 2
    // Predicated region
    $region21: #{unet_forward.5} parent=5 // pred_check
      %p126 = pneg %p125
    $region22: #{unet_forward.5} parent=5 // pred_check_branch
      %128 = sbr.rel (%p126) target = $region24
    $region23: #{unet_forward.5} parent=5 // pred_region
      // Predicated region
      $region25: #{unet_forward.5} parent=23 // pred_check
        %p129 = pneg %p51
      $region26: #{unet_forward.5} parent=23 // pred_check_branch
        %131 = sbr.rel (%p129) target = $region28
      $region27: #{unet_forward.5} parent=23 // pred_region
        %p132 = scmp.lt.s32.totalorder %s10, 1
        %s133 = scalar_select %p132, %s10, 1
        %s134 = smul.addr %s133, 128
        %s135 = smul.addr %s134, 4
        %s136 = scalar_lea.vmem %s1, %s135
      $region28: #{unet_forward.5} parent=23 // pred_fallthru
        _
    $region24: #{unet_forward.5} parent=5 // pred_fallthru
      _
    %p137 = scmp.le.s32.totalorder 1, %s10
    %p138 = scmp.lt.s32.totalorder %s10, 3
    %p139 = pnand %p137, %p138
    %p140 = pneg %p139
    // Predicated region
    $region29: #{unet_forward.5} parent=5 // pred_check
      _
    $region30: #{unet_forward.5} parent=5 // pred_check_branch
      %142 = sbr.rel (%p139) target = $region32
    $region31: #{unet_forward.5} parent=5 // pred_region
      %s143 = ssub.s32 %s10, 1
      %p144 = pneg %p31
      %p145 = pneg %p28
      %p146 = scmp.lt.s32.totalorder %s15, 1
      %s147 = scalar_select %p146, %s15, 1
      %s148 = smul.addr %s147, 128
      %s149 = smul.addr %s148, 4
      %s150 = scalar_lea.vmem %s1, %s149
      %p151 = pneg %p57
      %p152 = pneg %p54
      %p153 = pneg %p78
      %p154 = pneg %p75
      %p155 = pneg %p104
      %p156 = pneg %p101
      %p157 = scmp.lt.s32.totalorder %s15, 1
      %s158 = scalar_select %p157, %s15, 1
      %s159 = smul.addr %s158, 32
      %s160 = smul.addr %s159, 2
      %s161 = scalar_lea.vmem %s3, %s160
      %p162 = scmp.lt.s32.totalorder %s15, 1
      %s163 = scalar_select %p162, %s15, 1
      %s164 = smul.addr %s163, 128
      %s165 = smul.addr %s164, 4
      %s166 = scalar_lea.vmem %s1, %s165
      %p167 = scmp.lt.s32.totalorder %s15, 1
      %s168 = scalar_select %p167, %s15, 1
      %s169 = smul.addr %s168, 32
      %s170 = smul.addr %s169, 2
      %s171 = scalar_lea.vmem %s3, %s170
      %v173 = vld [vmem:[%s2] sm:$0x3]
      %v174 = vld [vmem:[%s166] sm:$0xff]
      %v175 = vld [vmem:[%s166 + $0x8] sm:$0xff]
      %v176 = vld [vmem:[%s166 + $0x10] sm:$0xff]
      %v177 = vld [vmem:[%s166 + $0x18] sm:$0xff]
      %v178 = vld [vmem:[%s166 + $0x20] sm:$0xff]
      %v179 = vld [vmem:[%s166 + $0x28] sm:$0xff]
      %v180 = vld [vmem:[%s166 + $0x30] sm:$0xff]
      %v181 = vld [vmem:[%s166 + $0x38] sm:$0xff]
      %v182 = vld [vmem:[%s166 + $0x40] sm:$0xff]
      %v183 = vld [vmem:[%s166 + $0x48] sm:$0xff]
      %v184 = vld [vmem:[%s166 + $0x50] sm:$0xff]
      %v185 = vld [vmem:[%s166 + $0x58] sm:$0xff]
      %v186 = vld [vmem:[%s166 + $0x60] sm:$0xff]
      %v187 = vld [vmem:[%s166 + $0x68] sm:$0xff]
      %v188 = vld [vmem:[%s166 + $0x70] sm:$0xff]
      %v189 = vld [vmem:[%s166 + $0x78] sm:$0xff]
      %v190 = vld [vmem:[%s166 + $0x80] sm:$0xff]
      %v191 = vld [vmem:[%s166 + $0x88] sm:$0xff]
      %v192 = vld [vmem:[%s166 + $0x90] sm:$0xff]
      %v193 = vld [vmem:[%s166 + $0x98] sm:$0xff]
      %v194 = vld [vmem:[%s166 + $0xa0] sm:$0xff]
      %v195 = vld [vmem:[%s166 + $0xa8] sm:$0xff]
      %v196 = vld [vmem:[%s166 + $0xb0] sm:$0xff]
      %v197 = vld [vmem:[%s166 + $0xb8] sm:$0xff]
      %v198 = vld [vmem:[%s166 + $0xc0] sm:$0xff]
      %v199 = vld [vmem:[%s166 + $0xc8] sm:$0xff]
      %v200 = vld [vmem:[%s166 + $0xd0] sm:$0xff]
      %v201 = vld [vmem:[%s166 + $0xd8] sm:$0xff]
      %v202 = vld [vmem:[%s166 + $0xe0] sm:$0xff]
      %v203 = vld [vmem:[%s166 + $0xe8] sm:$0xff]
      %v204 = vld [vmem:[%s166 + $0xf0] sm:$0xff]
      %v205 = vld [vmem:[%s166 + $0xf8] sm:$0xff]
      %v206 = vld [vmem:[%s166 + $0x100] sm:$0xff]
      %v207 = vld [vmem:[%s166 + $0x108] sm:$0xff]
      %v208 = vld [vmem:[%s166 + $0x110] sm:$0xff]
      %v209 = vld [vmem:[%s166 + $0x118] sm:$0xff]
      %v210 = vld [vmem:[%s166 + $0x120] sm:$0xff]
      %v211 = vld [vmem:[%s166 + $0x128] sm:$0xff]
      %v212 = vld [vmem:[%s166 + $0x130] sm:$0xff]
      %v213 = vld [vmem:[%s166 + $0x138] sm:$0xff]
      %v214 = vld [vmem:[%s166 + $0x140] sm:$0xff]
      %v215 = vld [vmem:[%s166 + $0x148] sm:$0xff]
      %v216 = vld [vmem:[%s166 + $0x150] sm:$0xff]
      %v217 = vld [vmem:[%s166 + $0x158] sm:$0xff]
      %v218 = vld [vmem:[%s166 + $0x160] sm:$0xff]
      %v219 = vld [vmem:[%s166 + $0x168] sm:$0xff]
      %v220 = vld [vmem:[%s166 + $0x170] sm:$0xff]
      %v221 = vld [vmem:[%s166 + $0x178] sm:$0xff]
      %v222 = vld [vmem:[%s166 + $0x180] sm:$0x33]
      %v223 = vld [vmem:[%s166 + $0x188] sm:$0x33]
      %v224 = vld [vmem:[%s166 + $0x190] sm:$0x33]
      %v225 = vld [vmem:[%s166 + $0x198] sm:$0x33]
      %v226 = vld [vmem:[%s166 + $0x1a0] sm:$0x33]
      %v227 = vld [vmem:[%s166 + $0x1a8] sm:$0x33]
      %v228 = vld [vmem:[%s166 + $0x1b0] sm:$0x33]
      %v229 = vld [vmem:[%s166 + $0x1b8] sm:$0x33]
      %v230 = vld [vmem:[%s166 + $0x1c0] sm:$0x33]
      %v231 = vld [vmem:[%s166 + $0x1c8] sm:$0x33]
      %v232 = vld [vmem:[%s166 + $0x1d0] sm:$0x33]
      %v233 = vld [vmem:[%s166 + $0x1d8] sm:$0x33]
      %v234 = vld [vmem:[%s166 + $0x1e0] sm:$0x33]
      %v235 = vld [vmem:[%s166 + $0x1e8] sm:$0x33]
      %v236 = vld [vmem:[%s166 + $0x1f0] sm:$0x33]
      %v237 = vld [vmem:[%s166 + $0x1f8] sm:$0x33]
      %v302 = vunpack.c.l.b16 %v174
      %v303 = vunpack.c.h.b16 %v174
      %v304 = vunpack.c.l.b16 %v175
      %v305 = vunpack.c.h.b16 %v175
      %v306 = vunpack.c.l.b16 %v176
      %v307 = vunpack.c.h.b16 %v176
      %v308 = vunpack.c.l.b16 %v177
      %v309 = vunpack.c.h.b16 %v177
      %v310 = vunpack.c.l.b16 %v178
      %v311 = vunpack.c.h.b16 %v178
      %v312 = vunpack.c.l.b16 %v179
      %v313 = vunpack.c.h.b16 %v179
      %v314 = vunpack.c.l.b16 %v180
      %v315 = vunpack.c.h.b16 %v180
      %v316 = vunpack.c.l.b16 %v181
      %v317 = vunpack.c.h.b16 %v181
      %v318 = vunpack.c.l.b16 %v182
      %v319 = vunpack.c.h.b16 %v182
      %v320 = vunpack.c.l.b16 %v183
      %v321 = vunpack.c.h.b16 %v183
      %v322 = vunpack.c.l.b16 %v184
      %v323 = vunpack.c.h.b16 %v184
      %v324 = vunpack.c.l.b16 %v185
      %v325 = vunpack.c.h.b16 %v185
      %v326 = vunpack.c.l.b16 %v186
      %v327 = vunpack.c.h.b16 %v186
      %v328 = vunpack.c.l.b16 %v187
      %v329 = vunpack.c.h.b16 %v187
      %v330 = vunpack.c.l.b16 %v188
      %v331 = vunpack.c.h.b16 %v188
      %v332 = vunpack.c.l.b16 %v189
      %v333 = vunpack.c.h.b16 %v189
      %v334 = vunpack.c.l.b16 %v190
      %v335 = vunpack.c.h.b16 %v190
      %v336 = vunpack.c.l.b16 %v191
      %v337 = vunpack.c.h.b16 %v191
      %v338 = vunpack.c.l.b16 %v192
      %v339 = vunpack.c.h.b16 %v192
      %v340 = vunpack.c.l.b16 %v193
      %v341 = vunpack.c.h.b16 %v193
      %v342 = vunpack.c.l.b16 %v194
      %v343 = vunpack.c.h.b16 %v194
      %v344 = vunpack.c.l.b16 %v195
      %v345 = vunpack.c.h.b16 %v195
      %v346 = vunpack.c.l.b16 %v196
      %v347 = vunpack.c.h.b16 %v196
      %v348 = vunpack.c.l.b16 %v197
      %v349 = vunpack.c.h.b16 %v197
      %v350 = vunpack.c.l.b16 %v198
      %v351 = vunpack.c.h.b16 %v198
      %v352 = vunpack.c.l.b16 %v199
      %v353 = vunpack.c.h.b16 %v199
      %v354 = vunpack.c.l.b16 %v200
      %v355 = vunpack.c.h.b16 %v200
      %v356 = vunpack.c.l.b16 %v201
      %v357 = vunpack.c.h.b16 %v201
      %v358 = vunpack.c.l.b16 %v202
      %v359 = vunpack.c.h.b16 %v202
      %v360 = vunpack.c.l.b16 %v203
      %v361 = vunpack.c.h.b16 %v203
      %v362 = vunpack.c.l.b16 %v204
      %v363 = vunpack.c.h.b16 %v204
      %v364 = vunpack.c.l.b16 %v205
      %v365 = vunpack.c.h.b16 %v205
      %v366 = vunpack.c.l.b16 %v206
      %v367 = vunpack.c.h.b16 %v206
      %v368 = vunpack.c.l.b16 %v207
      %v369 = vunpack.c.h.b16 %v207
      %v370 = vunpack.c.l.b16 %v208
      %v371 = vunpack.c.h.b16 %v208
      %v372 = vunpack.c.l.b16 %v209
      %v373 = vunpack.c.h.b16 %v209
      %v374 = vunpack.c.l.b16 %v210
      %v375 = vunpack.c.h.b16 %v210
      %v376 = vunpack.c.l.b16 %v211
      %v377 = vunpack.c.h.b16 %v211
      %v378 = vunpack.c.l.b16 %v212
      %v379 = vunpack.c.h.b16 %v212
      %v380 = vunpack.c.l.b16 %v213
      %v381 = vunpack.c.h.b16 %v213
      %v382 = vunpack.c.l.b16 %v214
      %v383 = vunpack.c.h.b16 %v214
      %v384 = vunpack.c.l.b16 %v215
      %v385 = vunpack.c.h.b16 %v215
      %v386 = vunpack.c.l.b16 %v216
      %v387 = vunpack.c.h.b16 %v216
      %v388 = vunpack.c.l.b16 %v217
      %v389 = vunpack.c.h.b16 %v217
      %v390 = vunpack.c.l.b16 %v218
      %v391 = vunpack.c.h.b16 %v218
      %v392 = vunpack.c.l.b16 %v219
      %v393 = vunpack.c.h.b16 %v219
      %v394 = vunpack.c.l.b16 %v220
      %v395 = vunpack.c.h.b16 %v220
      %v396 = vunpack.c.l.b16 %v221
      %v397 = vunpack.c.h.b16 %v221
      %v398 = vunpack.c.l.b16 %v222
      %v399 = vunpack.c.h.b16 %v222
      %v400 = vunpack.c.l.b16 %v223
      %v401 = vunpack.c.h.b16 %v223
      %v402 = vunpack.c.l.b16 %v224
      %v403 = vunpack.c.h.b16 %v224
      %v404 = vunpack.c.l.b16 %v225
      %v405 = vunpack.c.h.b16 %v225
      %v406 = vunpack.c.l.b16 %v226
      %v407 = vunpack.c.h.b16 %v226
      %v408 = vunpack.c.l.b16 %v227
      %v409 = vunpack.c.h.b16 %v227
      %v410 = vunpack.c.l.b16 %v228
      %v411 = vunpack.c.h.b16 %v228
      %v412 = vunpack.c.l.b16 %v229
      %v413 = vunpack.c.h.b16 %v229
      %v414 = vunpack.c.l.b16 %v230
      %v415 = vunpack.c.h.b16 %v230
      %v416 = vunpack.c.l.b16 %v231
      %v417 = vunpack.c.h.b16 %v231
      %v418 = vunpack.c.l.b16 %v232
      %v419 = vunpack.c.h.b16 %v232
      %v420 = vunpack.c.l.b16 %v233
      %v421 = vunpack.c.h.b16 %v233
      %v422 = vunpack.c.l.b16 %v234
      %v423 = vunpack.c.h.b16 %v234
      %v424 = vunpack.c.l.b16 %v235
      %v425 = vunpack.c.h.b16 %v235
      %v426 = vunpack.c.l.b16 %v236
      %v427 = vunpack.c.h.b16 %v236
      %v428 = vunpack.c.l.b16 %v237
      %v429 = vunpack.c.h.b16 %v237
      %v430 = vpack.c.b16 %v334, %v302
      %v431 = vpack.c.b16 %v335, %v303
      %v432 = vpack.c.b16 %v336, %v304
      %v433 = vpack.c.b16 %v337, %v305
      %v434 = vpack.c.b16 %v338, %v306
      %v435 = vpack.c.b16 %v339, %v307
      %v436 = vpack.c.b16 %v340, %v308
      %v437 = vpack.c.b16 %v341, %v309
      %v438 = vpack.c.b16 %v342, %v310
      %v439 = vpack.c.b16 %v343, %v311
      %v440 = vpack.c.b16 %v344, %v312
      %v441 = vpack.c.b16 %v345, %v313
      %v442 = vpack.c.b16 %v346, %v314
      %v443 = vpack.c.b16 %v347, %v315
      %v444 = vpack.c.b16 %v348, %v316
      %v445 = vpack.c.b16 %v349, %v317
      %v446 = vpack.c.b16 %v350, %v318
      %v447 = vpack.c.b16 %v351, %v319
      %v448 = vpack.c.b16 %v352, %v320
      %v449 = vpack.c.b16 %v353, %v321
      %v450 = vpack.c.b16 %v354, %v322
      %v451 = vpack.c.b16 %v355, %v323
      %v452 = vpack.c.b16 %v356, %v324
      %v453 = vpack.c.b16 %v357, %v325
      %v454 = vpack.c.b16 %v358, %v326
      %v455 = vpack.c.b16 %v359, %v327
      %v456 = vpack.c.b16 %v360, %v328
      %v457 = vpack.c.b16 %v361, %v329
      %v458 = vpack.c.b16 %v362, %v330
      %v459 = vpack.c.b16 %v363, %v331
      %v460 = vpack.c.b16 %v364, %v332
      %v461 = vpack.c.b16 %v365, %v333
      %v462 = vpack.c.b16 %v398, %v366
      %v463 = vpack.c.b16 %v399, %v367
      %v464 = vpack.c.b16 %v400, %v368
      %v465 = vpack.c.b16 %v401, %v369
      %v466 = vpack.c.b16 %v402, %v370
      %v467 = vpack.c.b16 %v403, %v371
      %v468 = vpack.c.b16 %v404, %v372
      %v469 = vpack.c.b16 %v405, %v373
      %v470 = vpack.c.b16 %v406, %v374
      %v471 = vpack.c.b16 %v407, %v375
      %v472 = vpack.c.b16 %v408, %v376
      %v473 = vpack.c.b16 %v409, %v377
      %v474 = vpack.c.b16 %v410, %v378
      %v475 = vpack.c.b16 %v411, %v379
      %v476 = vpack.c.b16 %v412, %v380
      %v477 = vpack.c.b16 %v413, %v381
      %v478 = vpack.c.b16 %v414, %v382
      %v479 = vpack.c.b16 %v415, %v383
      %v480 = vpack.c.b16 %v416, %v384
      %v481 = vpack.c.b16 %v417, %v385
      %v482 = vpack.c.b16 %v418, %v386
      %v483 = vpack.c.b16 %v419, %v387
      %v484 = vpack.c.b16 %v420, %v388
      %v485 = vpack.c.b16 %v421, %v389
      %v486 = vpack.c.b16 %v422, %v390
      %v487 = vpack.c.b16 %v423, %v391
      %v488 = vpack.c.b16 %v424, %v392
      %v489 = vpack.c.b16 %v425, %v393
      %v490 = vpack.c.b16 %v426, %v394
      %v491 = vpack.c.b16 %v427, %v395
      %v492 = vpack.c.b16 %v428, %v396
      %v493 = vpack.c.b16 %v429, %v397
      %vm526 = vcmask 220160
      %v528 = vsel %vm526, %v173, 0
      %vm530 = vcmask 1044480
      %vm531 = vcmask 1045504
      %v532 = vsel %vm530, 4294967295, 65535
      %v533 = vsel %vm531, %v532, 0
      %v535 = vand.u32 %v462, %v533
      %v538 = vand.u32 %v463, %v533
      %v541 = vand.u32 %v464, %v533
      %v544 = vand.u32 %v465, %v533
      %v547 = vand.u32 %v466, %v533
      %v550 = vand.u32 %v467, %v533
      %v553 = vand.u32 %v468, %v533
      %v556 = vand.u32 %v469, %v533
      %v559 = vand.u32 %v470, %v533
      %v562 = vand.u32 %v471, %v533
      %v565 = vand.u32 %v472, %v533
      %v568 = vand.u32 %v473, %v533
      %v571 = vand.u32 %v474, %v533
      %v574 = vand.u32 %v475, %v533
      %v577 = vand.u32 %v476, %v533
      %v580 = vand.u32 %v477, %v533
      %v583 = vand.u32 %v478, %v533
      %v586 = vand.u32 %v479, %v533
      %v589 = vand.u32 %v480, %v533
      %v592 = vand.u32 %v481, %v533
      %v595 = vand.u32 %v482, %v533
      %v598 = vand.u32 %v483, %v533
      %v601 = vand.u32 %v484, %v533
      %v604 = vand.u32 %v485, %v533
      %v607 = vand.u32 %v486, %v533
      %v610 = vand.u32 %v487, %v533
      %v613 = vand.u32 %v488, %v533
      %v616 = vand.u32 %v489, %v533
      %v619 = vand.u32 %v490, %v533
      %v622 = vand.u32 %v491, %v533
      %v625 = vand.u32 %v492, %v533
      %v628 = vand.u32 %v493, %v533
      %630 = vmatprep.subr.bf16.mxu0 %v431
      %631 = vmatpush1.bf16.msra.mxu0 %v430
      %632 = vmatprep.subr.bf16.mxu0 %v538
      %633 = vmatpush1.bf16.msra.mxu0 %v535
      %634 = vmatprep.subr.bf16.mxu0 0
      %635 = vmatpush1.bf16.msra.mxu0 0
      %636 = vmatprep.subr.bf16.mxu0 0
      %637 = vmatpush1.bf16.msra.mxu0 0
      %638 = vmatprep.subr.bf16.mxu0 0
      %639 = vmatpush1.bf16.msra.mxu0 0
      %640 = vmatprep.subr.bf16.mxu0 0
      %641 = vmatpush1.bf16.msra.mxu0 0
      %642 = vmatprep.subr.bf16.mxu0 0
      %643 = vmatpush1.bf16.msra.mxu0 0
      %644 = vmatprep.subr.bf16.mxu0 0
      %645 = vmatpush1.bf16.msra.mxu0 0
      %646 = vmatprep.subr.bf16.mxu0 0
      %647 = vmatpush1.bf16.msra.mxu0 0
      %648 = vmatprep.subr.bf16.mxu0 0
      %649 = vmatpush1.bf16.msra.mxu0 0
      %650 = vmatprep.subr.bf16.mxu0 0
      %651 = vmatpush1.bf16.msra.mxu0 0
      %652 = vmatprep.subr.bf16.mxu0 0
      %653 = vmatpush1.bf16.msra.mxu0 0
      %654 = vmatprep.subr.bf16.mxu0 0
      %655 = vmatpush1.bf16.msra.mxu0 0
      %656 = vmatprep.subr.bf16.mxu0 0
      %657 = vmatpush1.bf16.msra.mxu0 0
      %658 = vmatprep.subr.bf16.mxu0 0
      %659 = vmatpush1.bf16.msra.mxu0 0
      %660 = vmatprep.subr.bf16.mxu0 0
      %661 = vmatpush1.bf16.msra.mxu0 0
      %662 = vmatprep.mubr.bf16.mxu0 0
      %663 = vmatmul.mubr.bf16.gmra.mrb[0].mxu0 %v528
      %v664 = vpop.f32.mrb[0].mxu0
      %v665 = vadd.f32 0.0, %v664
      %v666 = vpop.f32.mrb[0].mxu0
      %v667 = vadd.f32 0.0, %v666
      %v668 = vpop.f32.mrb[0].mxu0
      %v669 = vpop.f32.mrb[0].mxu0
      %670 = vdwg.mxu0
      %671 = vmatprep.subr.bf16.mxu0 %v433
      %672 = vmatpush1.bf16.msra.mxu0 %v432
      %673 = vmatprep.subr.bf16.mxu0 %v544
      %674 = vmatpush1.bf16.msra.mxu0 %v541
      %675 = vmatprep.subr.bf16.mxu0 0
      %676 = vmatpush1.bf16.msra.mxu0 0
      %677 = vmatprep.subr.bf16.mxu0 0
      %678 = vmatpush1.bf16.msra.mxu0 0
      %679 = vmatprep.subr.bf16.mxu0 0
      %680 = vmatpush1.bf16.msra.mxu0 0
      %681 = vmatprep.subr.bf16.mxu0 0
      %682 = vmatpush1.bf16.msra.mxu0 0
      %683 = vmatprep.subr.bf16.mxu0 0
      %684 = vmatpush1.bf16.msra.mxu0 0
      %685 = vmatprep.subr.bf16.mxu0 0
      %686 = vmatpush1.bf16.msra.mxu0 0
      %687 = vmatprep.subr.bf16.mxu0 0
      %688 = vmatpush1.bf16.msra.mxu0 0
      %689 = vmatprep.subr.bf16.mxu0 0
      %690 = vmatpush1.bf16.msra.mxu0 0
      %691 = vmatprep.subr.bf16.mxu0 0
      %692 = vmatpush1.bf16.msra.mxu0 0
      %693 = vmatprep.subr.bf16.mxu0 0
      %694 = vmatpush1.bf16.msra.mxu0 0
      %695 = vmatprep.subr.bf16.mxu0 0
      %696 = vmatpush1.bf16.msra.mxu0 0
      %697 = vmatprep.subr.bf16.mxu0 0
      %698 = vmatpush1.bf16.msra.mxu0 0
      %699 = vmatprep.subr.bf16.mxu0 0
      %700 = vmatpush1.bf16.msra.mxu0 0
      %701 = vmatprep.subr.bf16.mxu0 0
      %702 = vmatpush1.bf16.msra.mxu0 0
      %703 = vmatprep.mubr.bf16.mxu0 0
      %704 = vmatmul.mubr.bf16.gmra.mrb[0].mxu0 %v528
      %v705 = vpop.f32.mrb[0].mxu0
      %v706 = vadd.f32 0.0, %v705
      %v707 = vpop.f32.mrb[0].mxu0
      %v708 = vadd.f32 0.0, %v707
      %v709 = vpop.f32.mrb[0].mxu0
      %v710 = vpop.f32.mrb[0].mxu0
      %711 = vdwg.mxu0
      %712 = vmatprep.subr.bf16.mxu0 %v435
      %713 = vmatpush1.bf16.msra.mxu0 %v434
      %714 = vmatprep.subr.bf16.mxu0 %v550
      %715 = vmatpush1.bf16.msra.mxu0 %v547
      %716 = vmatprep.subr.bf16.mxu0 0
      %717 = vmatpush1.bf16.msra.mxu0 0
      %718 = vmatprep.subr.bf16.mxu0 0
      %719 = vmatpush1.bf16.msra.mxu0 0
      %720 = vmatprep.subr.bf16.mxu0 0
      %721 = vmatpush1.bf16.msra.mxu0 0
      %722 = vmatprep.subr.bf16.mxu0 0
      %723 = vmatpush1.bf16.msra.mxu0 0
      %724 = vmatprep.subr.bf16.mxu0 0
      %725 = vmatpush1.bf16.msra.mxu0 0
      %726 = vmatprep.subr.bf16.mxu0 0
      %727 = vmatpush1.bf16.msra.mxu0 0
      %728 = vmatprep.subr.bf16.mxu0 0
      %729 = vmatpush1.bf16.msra.mxu0 0
      %730 = vmatprep.subr.bf16.mxu0 0
      %731 = vmatpush1.bf16.msra.mxu0 0
      %732 = vmatprep.subr.bf16.mxu0 0
      %733 = vmatpush1.bf16.msra.mxu0 0
      %734 = vmatprep.subr.bf16.mxu0 0
      %735 = vmatpush1.bf16.msra.mxu0 0
      %736 = vmatprep.subr.bf16.mxu0 0
      %737 = vmatpush1.bf16.msra.mxu0 0
      %738 = vmatprep.subr.bf16.mxu0 0
      %739 = vmatpush1.bf16.msra.mxu0 0
      %740 = vmatprep.subr.bf16.mxu0 0
      %741 = vmatpush1.bf16.msra.mxu0 0
      %742 = vmatprep.subr.bf16.mxu0 0
      %743 = vmatpush1.bf16.msra.mxu0 0
      %744 = vmatprep.mubr.bf16.mxu0 0
      %745 = vmatmul.mubr.bf16.gmra.mrb[0].mxu0 %v528
      %v746 = vpop.f32.mrb[0].mxu0
      %v747 = vadd.f32 0.0, %v746
      %v748 = vpop.f32.mrb[0].mxu0
      %v749 = vadd.f32 0.0, %v748
      %v750 = vpop.f32.mrb[0].mxu0
      %v751 = vpop.f32.mrb[0].mxu0
      %752 = vdwg.mxu0
      %753 = vmatprep.subr.bf16.mxu0 %v437
      %754 = vmatpush1.bf16.msra.mxu0 %v436
      %755 = vmatprep.subr.bf16.mxu0 %v556
      %756 = vmatpush1.bf16.msra.mxu0 %v553
      %757 = vmatprep.subr.bf16.mxu0 0
      %758 = vmatpush1.bf16.msra.mxu0 0
      %759 = vmatprep.subr.bf16.mxu0 0
      %760 = vmatpush1.bf16.msra.mxu0 0
      %761 = vmatprep.subr.bf16.mxu0 0
      %762 = vmatpush1.bf16.msra.mxu0 0
      %763 = vmatprep.subr.bf16.mxu0 0
      %764 = vmatpush1.bf16.msra.mxu0 0
      %765 = vmatprep.subr.bf16.mxu0 0
      %766 = vmatpush1.bf16.msra.mxu0 0
      %767 = vmatprep.subr.bf16.mxu0 0
      %768 = vmatpush1.bf16.msra.mxu0 0
      %769 = vmatprep.subr.bf16.mxu0 0
      %770 = vmatpush1.bf16.msra.mxu0 0
      %771 = vmatprep.subr.bf16.mxu0 0
      %772 = vmatpush1.bf16.msra.mxu0 0
      %773 = vmatprep.subr.bf16.mxu0 0
      %774 = vmatpush1.bf16.msra.mxu0 0
      %775 = vmatprep.subr.bf16.mxu0 0
      %776 = vmatpush1.bf16.msra.mxu0 0
      %777 = vmatprep.subr.bf16.mxu0 0
      %778 = vmatpush1.bf16.msra.mxu0 0
      %779 = vmatprep.subr.bf16.mxu0 0
      %780 = vmatpush1.bf16.msra.mxu0 0
      %781 = vmatprep.subr.bf16.mxu0 0
      %782 = vmatpush1.bf16.msra.mxu0 0
      %783 = vmatprep.subr.bf16.mxu0 0
      %784 = vmatpush1.bf16.msra.mxu0 0
      %785 = vmatprep.mubr.bf16.mxu0 0
      %786 = vmatmul.mubr.bf16.gmra.mrb[0].mxu0 %v528
      %v787 = vpop.f32.mrb[0].mxu0
      %v788 = vadd.f32 0.0, %v787
      %v789 = vpop.f32.mrb[0].mxu0
      %v790 = vadd.f32 0.0, %v789
      %v791 = vpop.f32.mrb[0].mxu0
      %v792 = vpop.f32.mrb[0].mxu0
      %793 = vdwg.mxu0
      %794 = vmatprep.subr.bf16.mxu0 %v439
      %795 = vmatpush1.bf16.msra.mxu0 %v438
      %796 = vmatprep.subr.bf16.mxu0 %v562
      %797 = vmatpush1.bf16.msra.mxu0 %v559
      %798 = vmatprep.subr.bf16.mxu0 0
      %799 = vmatpush1.bf16.msra.mxu0 0
      %800 = vmatprep.subr.bf16.mxu0 0
      %801 = vmatpush1.bf16.msra.mxu0 0
      %802 = vmatprep.subr.bf16.mxu0 0
      %803 = vmatpush1.bf16.msra.mxu0 0
      %804 = vmatprep.subr.bf16.mxu0 0
      %805 = vmatpush1.bf16.msra.mxu0 0
      %806 = vmatprep.subr.bf16.mxu0 0
      %807 = vmatpush1.bf16.msra.mxu0 0
      %808 = vmatprep.subr.bf16.mxu0 0
      %809 = vmatpush1.bf16.msra.mxu0 0
      %810 = vmatprep.subr.bf16.mxu0 0
      %811 = vmatpush1.bf16.msra.mxu0 0
      %812 = vmatprep.subr.bf16.mxu0 0
      %813 = vmatpush1.bf16.msra.mxu0 0
      %814 = vmatprep.subr.bf16.mxu0 0
      %815 = vmatpush1.bf16.msra.mxu0 0
      %816 = vmatprep.subr.bf16.mxu0 0
      %817 = vmatpush1.bf16.msra.mxu0 0
      %818 = vmatprep.subr.bf16.mxu0 0
      %819 = vmatpush1.bf16.msra.mxu0 0
      %820 = vmatprep.subr.bf16.mxu0 0
      %821 = vmatpush1.bf16.msra.mxu0 0
      %822 = vmatprep.subr.bf16.mxu0 0
      %823 = vmatpush1.bf16.msra.mxu0 0
      %824 = vmatprep.subr.bf16.mxu0 0
      %825 = vmatpush1.bf16.msra.mxu0 0
      %826 = vmatprep.mubr.bf16.mxu0 0
      %827 = vmatmul.mubr.bf16.gmra.mrb[0].mxu0 %v528
      %v828 = vpop.f32.mrb[0].mxu0
      %v829 = vadd.f32 0.0, %v828
      %v830 = vpop.f32.mrb[0].mxu0
      %v831 = vadd.f32 0.0, %v830
      %v832 = vpop.f32.mrb[0].mxu0
      %v833 = vpop.f32.mrb[0].mxu0
      %834 = vdwg.mxu0
      %835 = vmatprep.subr.bf16.mxu0 %v441
      %836 = vmatpush1.bf16.msra.mxu0 %v440
      %837 = vmatprep.subr.bf16.mxu0 %v568
      %838 = vmatpush1.bf16.msra.mxu0 %v565
      %839 = vmatprep.subr.bf16.mxu0 0
      %840 = vmatpush1.bf16.msra.mxu0 0
      %841 = vmatprep.subr.bf16.mxu0 0
      %842 = vmatpush1.bf16.msra.mxu0 0
      %843 = vmatprep.subr.bf16.mxu0 0
      %844 = vmatpush1.bf16.msra.mxu0 0
      %845 = vmatprep.subr.bf16.mxu0 0
      %846 = vmatpush1.bf16.msra.mxu0 0
      %847 = vmatprep.subr.bf16.mxu0 0
      %848 = vmatpush1.bf16.msra.mxu0 0
      %849 = vmatprep.subr.bf16.mxu0 0
      %850 = vmatpush1.bf16.msra.mxu0 0
      %851 = vmatprep.subr.bf16.mxu0 0
      %852 = vmatpush1.bf16.msra.mxu0 0
      %853 = vmatprep.subr.bf16.mxu0 0
      %854 = vmatpush1.bf16.msra.mxu0 0
      %855 = vmatprep.subr.bf16.mxu0 0
      %856 = vmatpush1.bf16.msra.mxu0 0
      %857 = vmatprep.subr.bf16.mxu0 0
      %858 = vmatpush1.bf16.msra.mxu0 0
      %859 = vmatprep.subr.bf16.mxu0 0
      %860 = vmatpush1.bf16.msra.mxu0 0
      %861 = vmatprep.subr.bf16.mxu0 0
      %862 = vmatpush1.bf16.msra.mxu0 0
      %863 = vmatprep.subr.bf16.mxu0 0
      %864 = vmatpush1.bf16.msra.mxu0 0
      %865 = vmatprep.subr.bf16.mxu0 0
      %866 = vmatpush1.bf16.msra.mxu0 0
      %867 = vmatprep.mubr.bf16.mxu0 0
      %868 = vmatmul.mubr.bf16.gmra.mrb[0].mxu0 %v528
      %v869 = vpop.f32.mrb[0].mxu0
      %v870 = vadd.f32 0.0, %v869
      %v871 = vpop.f32.mrb[0].mxu0
      %v872 = vadd.f32 0.0, %v871
      %v873 = vpop.f32.mrb[0].mxu0
      %v874 = vpop.f32.mrb[0].mxu0
      %875 = vdwg.mxu0
      %876 = vmatprep.subr.bf16.mxu0 %v443
      %877 = vmatpush1.bf16.msra.mxu0 %v442
      %878 = vmatprep.subr.bf16.mxu0 %v574
      %879 = vmatpush1.bf16.msra.mxu0 %v571
      %880 = vmatprep.subr.bf16.mxu0 0
      %881 = vmatpush1.bf16.msra.mxu0 0
      %882 = vmatprep.subr.bf16.mxu0 0
      %883 = vmatpush1.bf16.msra.mxu0 0
      %884 = vmatprep.subr.bf16.mxu0 0
      %885 = vmatpush1.bf16.msra.mxu0 0
      %886 = vmatprep.subr.bf16.mxu0 0
      %887 = vmatpush1.bf16.msra.mxu0 0
      %888 = vmatprep.subr.bf16.mxu0 0
      %889 = vmatpush1.bf16.msra.mxu0 0
      %890 = vmatprep.subr.bf16.mxu0 0
      %891 = vmatpush1.bf16.msra.mxu0 0
      %892 = vmatprep.subr.bf16.mxu0 0
      %893 = vmatpush1.bf16.msra.mxu0 0
      %894 = vmatprep.subr.bf16.mxu0 0
      %895 = vmatpush1.bf16.msra.mxu0 0
      %896 = vmatprep.subr.bf16.mxu0 0
      %897 = vmatpush1.bf16.msra.mxu0 0
      %898 = vmatprep.subr.bf16.mxu0 0
      %899 = vmatpush1.bf16.msra.mxu0 0
      %900 = vmatprep.subr.bf16.mxu0 0
      %901 = vmatpush1.bf16.msra.mxu0 0
      %902 = vmatprep.subr.bf16.mxu0 0
      %903 = vmatpush1.bf16.msra.mxu0 0
      %904 = vmatprep.subr.bf16.mxu0 0
      %905 = vmatpush1.bf16.msra.mxu0 0
      %906 = vmatprep.subr.bf16.mxu0 0
      %907 = vmatpush1.bf16.msra.mxu0 0
      %908 = vmatprep.mubr.bf16.mxu0 0
      %909 = vmatmul.mubr.bf16.gmra.mrb[0].mxu0 %v528
      %v910 = vpop.f32.mrb[0].mxu0
      %v911 = vadd.f32 0.0, %v910
      %v912 = vpop.f32.mrb[0].mxu0
      %v913 = vadd.f32 0.0, %v912
      %v914 = vpop.f32.mrb[0].mxu0
      %v915 = vpop.f32.mrb[0].mxu0
      %916 = vdwg.mxu0
      %917 = vmatprep.subr.bf16.mxu0 %v445
      %918 = vmatpush1.bf16.msra.mxu0 %v444
      %919 = vmatprep.subr.bf16.mxu0 %v580
      %920 = vmatpush1.bf16.msra.mxu0 %v577
      %921 = vmatprep.subr.bf16.mxu0 0
      %922 = vmatpush1.bf16.msra.mxu0 0
      %923 = vmatprep.subr.bf16.mxu0 0
      %924 = vmatpush1.bf16.msra.mxu0 0
      %925 = vmatprep.subr.bf16.mxu0 0
      %926 = vmatpush1.bf16.msra.mxu0 0
      %927 = vmatprep.subr.bf16.mxu0 0
      %928 = vmatpush1.bf16.msra.mxu0 0
      %929 = vmatprep.subr.bf16.mxu0 0
      %930 = vmatpush1.bf16.msra.mxu0 0
      %931 = vmatprep.subr.bf16.mxu0 0
      %932 = vmatpush1.bf16.msra.mxu0 0
      %933 = vmatprep.subr.bf16.mxu0 0
      %934 = vmatpush1.bf16.msra.mxu0 0
      %935 = vmatprep.subr.bf16.mxu0 0
      %936 = vmatpush1.bf16.msra.mxu0 0
      %937 = vmatprep.subr.bf16.mxu0 0
      %938 = vmatpush1.bf16.msra.mxu0 0
      %939 = vmatprep.subr.bf16.mxu0 0
      %940 = vmatpush1.bf16.msra.mxu0 0
      %941 = vmatprep.subr.bf16.mxu0 0
      %942 = vmatpush1.bf16.msra.mxu0 0
      %943 = vmatprep.subr.bf16.mxu0 0
      %944 = vmatpush1.bf16.msra.mxu0 0
      %945 = vmatprep.subr.bf16.mxu0 0
      %946 = vmatpush1.bf16.msra.mxu0 0
      %947 = vmatprep.subr.bf16.mxu0 0
      %948 = vmatpush1.bf16.msra.mxu0 0
      %949 = vmatprep.mubr.bf16.mxu0 0
      %950 = vmatmul.mubr.bf16.gmra.mrb[0].mxu0 %v528
      %v951 = vpop.f32.mrb[0].mxu0
      %v952 = vadd.f32 0.0, %v951
      %v953 = vpop.f32.mrb[0].mxu0
      %v954 = vadd.f32 0.0, %v953
      %v955 = vpop.f32.mrb[0].mxu0
      %v956 = vpop.f32.mrb[0].mxu0
      %957 = vdwg.mxu0
      %958 = vmatprep.subr.bf16.mxu0 %v447
      %959 = vmatpush1.bf16.msra.mxu0 %v446
      %960 = vmatprep.subr.bf16.mxu0 %v586
      %961 = vmatpush1.bf16.msra.mxu0 %v583
      %962 = vmatprep.subr.bf16.mxu0 0
      %963 = vmatpush1.bf16.msra.mxu0 0
      %964 = vmatprep.subr.bf16.mxu0 0
      %965 = vmatpush1.bf16.msra.mxu0 0
      %966 = vmatprep.subr.bf16.mxu0 0
      %967 = vmatpush1.bf16.msra.mxu0 0
      %968 = vmatprep.subr.bf16.mxu0 0
      %969 = vmatpush1.bf16.msra.mxu0 0
      %970 = vmatprep.subr.bf16.mxu0 0
      %971 = vmatpush1.bf16.msra.mxu0 0
      %972 = vmatprep.subr.bf16.mxu0 0
      %973 = vmatpush1.bf16.msra.mxu0 0
      %974 = vmatprep.subr.bf16.mxu0 0
      %975 = vmatpush1.bf16.msra.mxu0 0
      %976 = vmatprep.subr.bf16.mxu0 0
      %977 = vmatpush1.bf16.msra.mxu0 0
      %978 = vmatprep.subr.bf16.mxu0 0
      %979 = vmatpush1.bf16.msra.mxu0 0
      %980 = vmatprep.subr.bf16.mxu0 0
      %981 = vmatpush1.bf16.msra.mxu0 0
      %982 = vmatprep.subr.bf16.mxu0 0
      %983 = vmatpush1.bf16.msra.mxu0 0
      %984 = vmatprep.subr.bf16.mxu0 0
      %985 = vmatpush1.bf16.msra.mxu0 0
      %986 = vmatprep.subr.bf16.mxu0 0
      %987 = vmatpush1.bf16.msra.mxu0 0
      %988 = vmatprep.subr.bf16.mxu0 0
      %989 = vmatpush1.bf16.msra.mxu0 0
      %990 = vmatprep.mubr.bf16.mxu0 0
      %991 = vmatmul.mubr.bf16.gmra.mrb[0].mxu0 %v528
      %v992 = vpop.f32.mrb[0].mxu0
      %v993 = vadd.f32 0.0, %v992
      %v994 = vpop.f32.mrb[0].mxu0
      %v995 = vadd.f32 0.0, %v994
      %v996 = vpop.f32.mrb[0].mxu0
      %v997 = vpop.f32.mrb[0].mxu0
      %998 = vdwg.mxu0
      %999 = vmatprep.subr.bf16.mxu0 %v449
      %1000 = vmatpush1.bf16.msra.mxu0 %v448
      %1001 = vmatprep.subr.bf16.mxu0 %v592
      %1002 = vmatpush1.bf16.msra.mxu0 %v589
      %1003 = vmatprep.subr.bf16.mxu0 0
      %1004 = vmatpush1.bf16.msra.mxu0 0
      %1005 = vmatprep.subr.bf16.mxu0 0
      %1006 = vmatpush1.bf16.msra.mxu0 0
      %1007 = vmatprep.subr.bf16.mxu0 0
      %1008 = vmatpush1.bf16.msra.mxu0 0
      %1009 = vmatprep.subr.bf16.mxu0 0
      %1010 = vmatpush1.bf16.msra.mxu0 0
      %1011 = vmatprep.subr.bf16.mxu0 0
      %1012 = vmatpush1.bf16.msra.mxu0 0
      %1013 = vmatprep.subr.bf16.mxu0 0
      %1014 = vmatpush1.bf16.msra.mxu0 0
      %1015 = vmatprep.subr.bf16.mxu0 0
      %1016 = vmatpush1.bf16.msra.mxu0 0
      %1017 = vmatprep.subr.bf16.mxu0 0
      %1018 = vmatpush1.bf16.msra.mxu0 0
      %1019 = vmatprep.subr.bf16.mxu0 0
      %1020 = vmatpush1.bf16.msra.mxu0 0
      %1021 = vmatprep.subr.bf16.mxu0 0
      %1022 = vmatpush1.bf16.msra.mxu0 0
      %1023 = vmatprep.subr.bf16.mxu0 0
      %1024 = vmatpush1.bf16.msra.mxu0 0
      %1025 = vmatprep.subr.bf16.mxu0 0
      %1026 = vmatpush1.bf16.msra.mxu0 0
      %1027 = vmatprep.subr.bf16.mxu0 0
      %1028 = vmatpush1.bf16.msra.mxu0 0
      %1029 = vmatprep.subr.bf16.mxu0 0
      %1030 = vmatpush1.bf16.msra.mxu0 0
      %1031 = vmatprep.mubr.bf16.mxu0 0
      %1032 = vmatmul.mubr.bf16.gmra.mrb[0].mxu0 %v528
      %v1033 = vpop.f32.mrb[0].mxu0
      %v1034 = vadd.f32 0.0, %v1033
      %v1035 = vpop.f32.mrb[0].mxu0
      %v1036 = vadd.f32 0.0, %v1035
      %v1037 = vpop.f32.mrb[0].mxu0
      %v1038 = vpop.f32.mrb[0].mxu0
      %1039 = vdwg.mxu0
      %1040 = vmatprep.subr.bf16.mxu0 %v451
      %1041 = vmatpush1.bf16.msra.mxu0 %v450
      %1042 = vmatprep.subr.bf16.mxu0 %v598
      %1043 = vmatpush1.bf16.msra.mxu0 %v595
      %1044 = vmatprep.subr.bf16.mxu0 0
      %1045 = vmatpush1.bf16.msra.mxu0 0
      %1046 = vmatprep.subr.bf16.mxu0 0
      %1047 = vmatpush1.bf16.msra.mxu0 0
      %1048 = vmatprep.subr.bf16.mxu0 0
      %1049 = vmatpush1.bf16.msra.mxu0 0
      %1050 = vmatprep.subr.bf16.mxu0 0
      %1051 = vmatpush1.bf16.msra.mxu0 0
      %1052 = vmatprep.subr.bf16.mxu0 0
      %1053 = vmatpush1.bf16.msra.mxu0 0
      %1054 = vmatprep.subr.bf16.mxu0 0
      %1055 = vmatpush1.bf16.msra.mxu0 0
      %1056 = vmatprep.subr.bf16.mxu0 0
      %1057 = vmatpush1.bf16.msra.mxu0 0
      %1058 = vmatprep.subr.bf16.mxu0 0
      %1059 = vmatpush1.bf16.msra.mxu0 0
      %1060 = vmatprep.subr.bf16.mxu0 0
      %1061 = vmatpush1.bf16.msra.mxu0 0
      %1062 = vmatprep.subr.bf16.mxu0 0
      %1063 = vmatpush1.bf16.msra.mxu0 0
      %1064 = vmatprep.subr.bf16.mxu0 0
      %1065 = vmatpush1.bf16.msra.mxu0 0
      %1066 = vmatprep.subr.bf16.mxu0 0
      %1067 = vmatpush1.bf16.msra.mxu0 0
      %1068 = vmatprep.subr.bf16.mxu0 0
      %1069 = vmatpush1.bf16.msra.mxu0 0
      %1070 = vmatprep.subr.bf16.mxu0 0
      %1071 = vmatpush1.bf16.msra.mxu0 0
      %1072 = vmatprep.mubr.bf16.mxu0 0
      %1073 = vmatmul.mubr.bf16.gmra.mrb[0].mxu0 %v528
      %v1074 = vpop.f32.mrb[0].mxu0
      %v1075 = vadd.f32 0.0, %v1074
      %v1076 = vpop.f32.mrb[0].mxu0
      %v1077 = vadd.f32 0.0, %v1076
      %v1078 = vpop.f32.mrb[0].mxu0
      %v1079 = vpop.f32.mrb[0].mxu0
      %1080 = vdwg.mxu0
      %1081 = vmatprep.subr.bf16.mxu0 %v453
      %1082 = vmatpush1.bf16.msra.mxu0 %v452
      %1083 = vmatprep.subr.bf16.mxu0 %v604
      %1084 = vmatpush1.bf16.msra.mxu0 %v601
      %1085 = vmatprep.subr.bf16.mxu0 0
      %1086 = vmatpush1.bf16.msra.mxu0 0
      %1087 = vmatprep.subr.bf16.mxu0 0
      %1088 = vmatpush1.bf16.msra.mxu0 0
      %1089 = vmatprep.subr.bf16.mxu0 0
      %1090 = vmatpush1.bf16.msra.mxu0 0
      %1091 = vmatprep.subr.bf16.mxu0 0
      %1092 = vmatpush1.bf16.msra.mxu0 0
      %1093 = vmatprep.subr.bf16.mxu0 0
      %1094 = vmatpush1.bf16.msra.mxu0 0
      %1095 = vmatprep.subr.bf16.mxu0 0
      %1096 = vmatpush1.bf16.msra.mxu0 0
      %1097 = vmatprep.subr.bf16.mxu0 0
      %1098 = vmatpush1.bf16.msra.mxu0 0
      %1099 = vmatprep.subr.bf16.mxu0 0
      %1100 = vmatpush1.bf16.msra.mxu0 0
      %1101 = vmatprep.subr.bf16.mxu0 0
      %1102 = vmatpush1.bf16.msra.mxu0 0
      %1103 = vmatprep.subr.bf16.mxu0 0
      %1104 = vmatpush1.bf16.msra.mxu0 0
      %1105 = vmatprep.subr.bf16.mxu0 0
      %1106 = vmatpush1.bf16.msra.mxu0 0
      %1107 = vmatprep.subr.bf16.mxu0 0
      %1108 = vmatpush1.bf16.msra.mxu0 0
      %1109 = vmatprep.subr.bf16.mxu0 0
      %1110 = vmatpush1.bf16.msra.mxu0 0
      %1111 = vmatprep.subr.bf16.mxu0 0
      %1112 = vmatpush1.bf16.msra.mxu0 0
      %1113 = vmatprep.mubr.bf16.mxu0 0
      %1114 = vmatmul.mubr.bf16.gmra.mrb[0].mxu0 %v528
      %v1115 = vpop.f32.mrb[0].mxu0
      %v1116 = vadd.f32 0.0, %v1115
      %v1117 = vpop.f32.mrb[0].mxu0
      %v1118 = vadd.f32 0.0, %v1117
      %v1119 = vpop.f32.mrb[0].mxu0
      %v1120 = vpop.f32.mrb[0].mxu0
      %1121 = vdwg.mxu0
      %1122 = vmatprep.subr.bf16.mxu0 %v455
      %1123 = vmatpush1.bf16.msra.mxu0 %v454
      %1124 = vmatprep.subr.bf16.mxu0 %v610
      %1125 = vmatpush1.bf16.msra.mxu0 %v607
      %1126 = vmatprep.subr.bf16.mxu0 0
      %1127 = vmatpush1.bf16.msra.mxu0 0
      %1128 = vmatprep.subr.bf16.mxu0 0
      %1129 = vmatpush1.bf16.msra.mxu0 0
      %1130 = vmatprep.subr.bf16.mxu0 0
      %1131 = vmatpush1.bf16.msra.mxu0 0
      %1132 = vmatprep.subr.bf16.mxu0 0
      %1133 = vmatpush1.bf16.msra.mxu0 0
      %1134 = vmatprep.subr.bf16.mxu0 0
      %1135 = vmatpush1.bf16.msra.mxu0 0
      %1136 = vmatprep.subr.bf16.mxu0 0
      %1137 = vmatpush1.bf16.msra.mxu0 0
      %1138 = vmatprep.subr.bf16.mxu0 0
      %1139 = vmatpush1.bf16.msra.mxu0 0
      %1140 = vmatprep.subr.bf16.mxu0 0
      %1141 = vmatpush1.bf16.msra.mxu0 0
      %1142 = vmatprep.subr.bf16.mxu0 0
      %1143 = vmatpush1.bf16.msra.mxu0 0
      %1144 = vmatprep.subr.bf16.mxu0 0
      %1145 = vmatpush1.bf16.msra.mxu0 0
      %1146 = vmatprep.subr.bf16.mxu0 0
      %1147 = vmatpush1.bf16.msra.mxu0 0
      %1148 = vmatprep.subr.bf16.mxu0 0
      %1149 = vmatpush1.bf16.msra.mxu0 0
      %1150 = vmatprep.subr.bf16.mxu0 0
      %1151 = vmatpush1.bf16.msra.mxu0 0
      %1152 = vmatprep.subr.bf16.mxu0 0
      %1153 = vmatpush1.bf16.msra.mxu0 0
      %1154 = vmatprep.mubr.bf16.mxu0 0
      %1155 = vmatmul.mubr.bf16.gmra.mrb[0].mxu0 %v528
      %v1156 = vpop.f32.mrb[0].mxu0
      %v1157 = vadd.f32 0.0, %v1156
      %v1158 = vpop.f32.mrb[0].mxu0
      %v1159 = vadd.f32 0.0, %v1158
      %v1160 = vpop.f32.mrb[0].mxu0
      %v1161 = vpop.f32.mrb[0].mxu0
      %1162 = vdwg.mxu0
      %1163 = vmatprep.subr.bf16.mxu0 %v457
      %1164 = vmatpush1.bf16.msra.mxu0 %v456
      %1165 = vmatprep.subr.bf16.mxu0 %v616
      %1166 = vmatpush1.bf16.msra.mxu0 %v613
      %1167 = vmatprep.subr.bf16.mxu0 0
      %1168 = vmatpush1.bf16.msra.mxu0 0
      %1169 = vmatprep.subr.bf16.mxu0 0
      %1170 = vmatpush1.bf16.msra.mxu0 0
      %1171 = vmatprep.subr.bf16.mxu0 0
      %1172 = vmatpush1.bf16.msra.mxu0 0
      %1173 = vmatprep.subr.bf16.mxu0 0
      %1174 = vmatpush1.bf16.msra.mxu0 0
      %1175 = vmatprep.subr.bf16.mxu0 0
      %1176 = vmatpush1.bf16.msra.mxu0 0
      %1177 = vmatprep.subr.bf16.mxu0 0
      %1178 = vmatpush1.bf16.msra.mxu0 0
      %1179 = vmatprep.subr.bf16.mxu0 0
      %1180 = vmatpush1.bf16.msra.mxu0 0
      %1181 = vmatprep.subr.bf16.mxu0 0
      %1182 = vmatpush1.bf16.msra.mxu0 0
      %1183 = vmatprep.subr.bf16.mxu0 0
      %1184 = vmatpush1.bf16.msra.mxu0 0
      %1185 = vmatprep.subr.bf16.mxu0 0
      %1186 = vmatpush1.bf16.msra.mxu0 0
      %1187 = vmatprep.subr.bf16.mxu0 0
      %1188 = vmatpush1.bf16.msra.mxu0 0
      %1189 = vmatprep.subr.bf16.mxu0 0
      %1190 = vmatpush1.bf16.msra.mxu0 0
      %1191 = vmatprep.subr.bf16.mxu0 0
      %1192 = vmatpush1.bf16.msra.mxu0 0
      %1193 = vmatprep.subr.bf16.mxu0 0
      %1194 = vmatpush1.bf16.msra.mxu0 0
      %1195 = vmatprep.mubr.bf16.mxu0 0
      %1196 = vmatmul.mubr.bf16.gmra.mrb[0].mxu0 %v528
      %v1197 = vpop.f32.mrb[0].mxu0
      %v1198 = vadd.f32 0.0, %v1197
      %v1199 = vpop.f32.mrb[0].mxu0
      %v1200 = vadd.f32 0.0, %v1199
      %v1201 = vpop.f32.mrb[0].mxu0
      %v1202 = vpop.f32.mrb[0].mxu0
      %1203 = vdwg.mxu0
      %1204 = vmatprep.subr.bf16.mxu0 %v459
      %1205 = vmatpush1.bf16.msra.mxu0 %v458
      %1206 = vmatprep.subr.bf16.mxu0 %v622
      %1207 = vmatpush1.bf16.msra.mxu0 %v619
      %1208 = vmatprep.subr.bf16.mxu0 0
      %1209 = vmatpush1.bf16.msra.mxu0 0
      %1210 = vmatprep.subr.bf16.mxu0 0
      %1211 = vmatpush1.bf16.msra.mxu0 0
      %1212 = vmatprep.subr.bf16.mxu0 0
      %1213 = vmatpush1.bf16.msra.mxu0 0
      %1214 = vmatprep.subr.bf16.mxu0 0
      %1215 = vmatpush1.bf16.msra.mxu0 0
      %1216 = vmatprep.subr.bf16.mxu0 0
      %1217 = vmatpush1.bf16.msra.mxu0 0
      %1218 = vmatprep.subr.bf16.mxu0 0
      %1219 = vmatpush1.bf16.msra.mxu0 0
      %1220 = vmatprep.subr.bf16.mxu0 0
      %1221 = vmatpush1.bf16.msra.mxu0 0
      %1222 = vmatprep.subr.bf16.mxu0 0
      %1223 = vmatpush1.bf16.msra.mxu0 0
      %1224 = vmatprep.subr.bf16.mxu0 0
      %1225 = vmatpush1.bf16.msra.mxu0 0
      %1226 = vmatprep.subr.bf16.mxu0 0
      %1227 = vmatpush1.bf16.msra.mxu0 0
      %1228 = vmatprep.subr.bf16.mxu0 0
      %1229 = vmatpush1.bf16.msra.mxu0 0
      %1230 = vmatprep.subr.bf16.mxu0 0
      %1231 = vmatpush1.bf16.msra.mxu0 0
      %1232 = vmatprep.subr.bf16.mxu0 0
      %1233 = vmatpush1.bf16.msra.mxu0 0
      %1234 = vmatprep.subr.bf16.mxu0 0
      %1235 = vmatpush1.bf16.msra.mxu0 0
      %1236 = vmatprep.mubr.bf16.mxu0 0
      %1237 = vmatmul.mubr.bf16.gmra.mrb[0].mxu0 %v528
      %v1238 = vpop.f32.mrb[0].mxu0
      %v1239 = vadd.f32 0.0, %v1238
      %v1240 = vpop.f32.mrb[0].mxu0
      %v1241 = vadd.f32 0.0, %v1240
      %v1242 = vpop.f32.mrb[0].mxu0
      %v1243 = vpop.f32.mrb[0].mxu0
      %1244 = vdwg.mxu0
      %1245 = vmatprep.subr.bf16.mxu0 %v461
      %1246 = vmatpush1.bf16.msra.mxu0 %v460
      %1247 = vmatprep.subr.bf16.mxu0 %v628
      %1248 = vmatpush1.bf16.msra.mxu0 %v625
      %1249 = vmatprep.subr.bf16.mxu0 0
      %1250 = vmatpush1.bf16.msra.mxu0 0
      %1251 = vmatprep.subr.bf16.mxu0 0
      %1252 = vmatpush1.bf16.msra.mxu0 0
      %1253 = vmatprep.subr.bf16.mxu0 0
      %1254 = vmatpush1.bf16.msra.mxu0 0
      %1255 = vmatprep.subr.bf16.mxu0 0
      %1256 = vmatpush1.bf16.msra.mxu0 0
      %1257 = vmatprep.subr.bf16.mxu0 0
      %1258 = vmatpush1.bf16.msra.mxu0 0
      %1259 = vmatprep.subr.bf16.mxu0 0
      %1260 = vmatpush1.bf16.msra.mxu0 0
      %1261 = vmatprep.subr.bf16.mxu0 0
      %1262 = vmatpush1.bf16.msra.mxu0 0
      %1263 = vmatprep.subr.bf16.mxu0 0
      %1264 = vmatpush1.bf16.msra.mxu0 0
      %1265 = vmatprep.subr.bf16.mxu0 0
      %1266 = vmatpush1.bf16.msra.mxu0 0
      %1267 = vmatprep.subr.bf16.mxu0 0
      %1268 = vmatpush1.bf16.msra.mxu0 0
      %1269 = vmatprep.subr.bf16.mxu0 0
      %1270 = vmatpush1.bf16.msra.mxu0 0
      %1271 = vmatprep.subr.bf16.mxu0 0
      %1272 = vmatpush1.bf16.msra.mxu0 0
      %1273 = vmatprep.subr.bf16.mxu0 0
      %1274 = vmatpush1.bf16.msra.mxu0 0
      %1275 = vmatprep.subr.bf16.mxu0 0
      %1276 = vmatpush1.bf16.msra.mxu0 0
      %1277 = vmatprep.mubr.bf16.mxu0 0
      %1278 = vmatmul.mubr.bf16.gmra.mrb[0].mxu0 %v528
      %v1279 = vpop.f32.mrb[0].mxu0
      %v1280 = vadd.f32 0.0, %v1279
      %v1281 = vpop.f32.mrb[0].mxu0
      %v1282 = vadd.f32 0.0, %v1281
      %v1283 = vpop.f32.mrb[0].mxu0
      %v1284 = vpop.f32.mrb[0].mxu0
      %1285 = vdwg.mxu0
      %vm1286 = vcmask 1043456
      %v1287 = vsel %vm1286, %v665, 0.0
      %v1288 = vsel %vm1286, %v667, 0.0
      %v1289 = vadd.f32 %v1287, %v1288
      %v1290 = vsel %vm1286, %v706, 0.0
      %v1291 = vadd.f32 %v1289, %v1290
      %v1292 = vsel %vm1286, %v708, 0.0
      %v1293 = vadd.f32 %v1291, %v1292
      %v1294 = vsel %vm1286, %v747, 0.0
      %v1295 = vadd.f32 %v1293, %v1294
      %v1296 = vsel %vm1286, %v749, 0.0
      %v1297 = vadd.f32 %v1295, %v1296
      %v1298 = vsel %vm1286, %v788, 0.0
      %v1299 = vadd.f32 %v1297, %v1298
      %v1300 = vsel %vm1286, %v790, 0.0
      %v1301 = vadd.f32 %v1299, %v1300
      %v1302 = vsel %vm1286, %v829, 0.0
      %v1303 = vadd.f32 %v1301, %v1302
      %v1304 = vsel %vm1286, %v831, 0.0
      %v1305 = vadd.f32 %v1303, %v1304
      %v1306 = vsel %vm1286, %v870, 0.0
      %v1307 = vadd.f32 %v1305, %v1306
      %v1308 = vsel %vm1286, %v872, 0.0
      %v1309 = vadd.f32 %v1307, %v1308
      %v1310 = vsel %vm1286, %v911, 0.0
      %v1311 = vadd.f32 %v1309, %v1310
      %v1312 = vsel %vm1286, %v913, 0.0
      %v1313 = vadd.f32 %v1311, %v1312
      %v1314 = vsel %vm1286, %v952, 0.0
      %v1315 = vadd.f32 %v1313, %v1314
      %v1316 = vsel %vm1286, %v954, 0.0
      %v1317 = vadd.f32 %v1315, %v1316
      %v1318 = vsel %vm1286, %v993, 0.0
      %v1319 = vadd.f32 %v1317, %v1318
      %v1320 = vsel %vm1286, %v995, 0.0
      %v1321 = vadd.f32 %v1319, %v1320
      %v1322 = vsel %vm1286, %v1034, 0.0
      %v1323 = vadd.f32 %v1321, %v1322
      %v1324 = vsel %vm1286, %v1036, 0.0
      %v1325 = vadd.f32 %v1323, %v1324
      %v1326 = vsel %vm1286, %v1075, 0.0
      %v1327 = vadd.f32 %v1325, %v1326
      %v1328 = vsel %vm1286, %v1077, 0.0
      %v1329 = vadd.f32 %v1327, %v1328
      %v1330 = vsel %vm1286, %v1116, 0.0
      %v1331 = vadd.f32 %v1329, %v1330
      %v1332 = vsel %vm1286, %v1118, 0.0
      %v1333 = vadd.f32 %v1331, %v1332
      %v1334 = vsel %vm1286, %v1157, 0.0
      %v1335 = vadd.f32 %v1333, %v1334
      %v1336 = vsel %vm1286, %v1159, 0.0
      %v1337 = vadd.f32 %v1335, %v1336
      %v1338 = vsel %vm1286, %v1198, 0.0
      %v1339 = vadd.f32 %v1337, %v1338
      %v1340 = vsel %vm1286, %v1200, 0.0
      %v1341 = vadd.f32 %v1339, %v1340
      %v1342 = vsel %vm1286, %v1239, 0.0
      %v1343 = vadd.f32 %v1341, %v1342
      %v1344 = vsel %vm1286, %v1241, 0.0
      %v1345 = vadd.f32 %v1343, %v1344
      %v1346 = vsel %vm1286, %v1280, 0.0
      %v1347 = vadd.f32 %v1345, %v1346
      %v1348 = vsel %vm1286, %v1282, 0.0
      %v1349 = vadd.f32 %v1347, %v1348
      %1350 = vadd.xlane.f32.xlu0 %v1349
      %v1351 = vpop.xlane.xlu0 %1350
      %v1352 = vrcp.pop 4096.0
      %v1353 = vmul.f32 %v1351, %v1352
      %v1354 = vmul.f32 %v665, %v665
      %v1355 = vmul.f32 %v667, %v667
      %v1356 = vmul.f32 %v706, %v706
      %v1357 = vmul.f32 %v708, %v708
      %v1358 = vmul.f32 %v747, %v747
      %v1359 = vmul.f32 %v749, %v749
      %v1360 = vmul.f32 %v788, %v788
      %v1361 = vmul.f32 %v790, %v790
      %v1362 = vmul.f32 %v829, %v829
      %v1363 = vmul.f32 %v831, %v831
      %v1364 = vmul.f32 %v870, %v870
      %v1365 = vmul.f32 %v872, %v872
      %v1366 = vmul.f32 %v911, %v911
      %v1367 = vmul.f32 %v913, %v913
      %v1368 = vmul.f32 %v952, %v952
      %v1369 = vmul.f32 %v954, %v954
      %v1370 = vmul.f32 %v993, %v993
      %v1371 = vmul.f32 %v995, %v995
      %v1372 = vmul.f32 %v1034, %v1034
      %v1373 = vmul.f32 %v1036, %v1036
      %v1374 = vmul.f32 %v1075, %v1075
      %v1375 = vmul.f32 %v1077, %v1077
      %v1376 = vmul.f32 %v1116, %v1116
      %v1377 = vmul.f32 %v1118, %v1118
      %v1378 = vmul.f32 %v1157, %v1157
      %v1379 = vmul.f32 %v1159, %v1159
      %v1380 = vmul.f32 %v1198, %v1198
      %v1381 = vmul.f32 %v1200, %v1200
      %v1382 = vmul.f32 %v1239, %v1239
      %v1383 = vmul.f32 %v1241, %v1241
      %v1384 = vmul.f32 %v1280, %v1280
      %v1385 = vmul.f32 %v1282, %v1282
      %v1386 = vsel %vm1286, %v1354, 0.0
      %v1387 = vsel %vm1286, %v1355, 0.0
      %v1388 = vadd.f32 %v1386, %v1387
      %v1389 = vsel %vm1286, %v1356, 0.0
      %v1390 = vadd.f32 %v1388, %v1389
      %v1391 = vsel %vm1286, %v1357, 0.0
      %v1392 = vadd.f32 %v1390, %v1391
      %v1393 = vsel %vm1286, %v1358, 0.0
      %v1394 = vadd.f32 %v1392, %v1393
      %v1395 = vsel %vm1286, %v1359, 0.0
      %v1396 = vadd.f32 %v1394, %v1395
      %v1397 = vsel %vm1286, %v1360, 0.0
      %v1398 = vadd.f32 %v1396, %v1397
      %v1399 = vsel %vm1286, %v1361, 0.0
      %v1400 = vadd.f32 %v1398, %v1399
      %v1401 = vsel %vm1286, %v1362, 0.0
      %v1402 = vadd.f32 %v1400, %v1401
      %v1403 = vsel %vm1286, %v1363, 0.0
      %v1404 = vadd.f32 %v1402, %v1403
      %v1405 = vsel %vm1286, %v1364, 0.0
      %v1406 = vadd.f32 %v1404, %v1405
      %v1407 = vsel %vm1286, %v1365, 0.0
      %v1408 = vadd.f32 %v1406, %v1407
      %v1409 = vsel %vm1286, %v1366, 0.0
      %v1410 = vadd.f32 %v1408, %v1409
      %v1411 = vsel %vm1286, %v1367, 0.0
      %v1412 = vadd.f32 %v1410, %v1411
      %v1413 = vsel %vm1286, %v1368, 0.0
      %v1414 = vadd.f32 %v1412, %v1413
      %v1415 = vsel %vm1286, %v1369, 0.0
      %v1416 = vadd.f32 %v1414, %v1415
      %v1417 = vsel %vm1286, %v1370, 0.0
      %v1418 = vadd.f32 %v1416, %v1417
      %v1419 = vsel %vm1286, %v1371, 0.0
      %v1420 = vadd.f32 %v1418, %v1419
      %v1421 = vsel %vm1286, %v1372, 0.0
      %v1422 = vadd.f32 %v1420, %v1421
      %v1423 = vsel %vm1286, %v1373, 0.0
      %v1424 = vadd.f32 %v1422, %v1423
      %v1425 = vsel %vm1286, %v1374, 0.0
      %v1426 = vadd.f32 %v1424, %v1425
      %v1427 = vsel %vm1286, %v1375, 0.0
      %v1428 = vadd.f32 %v1426, %v1427
      %v1429 = vsel %vm1286, %v1376, 0.0
      %v1430 = vadd.f32 %v1428, %v1429
      %v1431 = vsel %vm1286, %v1377, 0.0
      %v1432 = vadd.f32 %v1430, %v1431
      %v1433 = vsel %vm1286, %v1378, 0.0
      %v1434 = vadd.f32 %v1432, %v1433
      %v1435 = vsel %vm1286, %v1379, 0.0
      %v1436 = vadd.f32 %v1434, %v1435
      %v1437 = vsel %vm1286, %v1380, 0.0
      %v1438 = vadd.f32 %v1436, %v1437
      %v1439 = vsel %vm1286, %v1381, 0.0
      %v1440 = vadd.f32 %v1438, %v1439
      %v1441 = vsel %vm1286, %v1382, 0.0
      %v1442 = vadd.f32 %v1440, %v1441
      %v1443 = vsel %vm1286, %v1383, 0.0
      %v1444 = vadd.f32 %v1442, %v1443
      %v1445 = vsel %vm1286, %v1384, 0.0
      %v1446 = vadd.f32 %v1444, %v1445
      %v1447 = vsel %vm1286, %v1385, 0.0
      %v1448 = vadd.f32 %v1446, %v1447
      %1449 = vadd.xlane.f32.xlu0 %v1448
      %v1450 = vpop.xlane.xlu0 %1449
      %v1451 = vmul.f32 %v1450, %v1352
      %v1452 = vmul.f32 %v1353, %v1353
      %v1453 = vsub.f32 %v1451, %v1452
      %v1454 = vadd.f32 %v1453, 1e-05
      %v1455 = vrsqrt.pop %v1454
      %v1456 = vsub.f32 0.0, %v1353
      %v1457 = vmul.f32 %v1456, %v1455
      %v1458 = vmul.f32 %v665, %v1455
      %v1459 = vmul.f32 %v667, %v1455
      %v1460 = vmul.f32 %v706, %v1455
      %v1461 = vmul.f32 %v708, %v1455
      %v1462 = vmul.f32 %v747, %v1455
      %v1463 = vmul.f32 %v749, %v1455
      %v1464 = vmul.f32 %v788, %v1455
      %v1465 = vmul.f32 %v790, %v1455
      %v1466 = vmul.f32 %v829, %v1455
      %v1467 = vmul.f32 %v831, %v1455
      %v1468 = vmul.f32 %v870, %v1455
      %v1469 = vmul.f32 %v872, %v1455
      %v1470 = vmul.f32 %v911, %v1455
      %v1471 = vmul.f32 %v913, %v1455
      %v1472 = vmul.f32 %v952, %v1455
      %v1473 = vmul.f32 %v954, %v1455
      %v1474 = vmul.f32 %v993, %v1455
      %v1475 = vmul.f32 %v995, %v1455
      %v1476 = vmul.f32 %v1034, %v1455
      %v1477 = vmul.f32 %v1036, %v1455
      %v1478 = vmul.f32 %v1075, %v1455
      %v1479 = vmul.f32 %v1077, %v1455
      %v1480 = vmul.f32 %v1116, %v1455
      %v1481 = vmul.f32 %v1118, %v1455
      %v1482 = vmul.f32 %v1157, %v1455
      %v1483 = vmul.f32 %v1159, %v1455
      %v1484 = vmul.f32 %v1198, %v1455
      %v1485 = vmul.f32 %v1200, %v1455
      %v1486 = vmul.f32 %v1239, %v1455
      %v1487 = vmul.f32 %v1241, %v1455
      %v1488 = vmul.f32 %v1280, %v1455
      %v1489 = vmul.f32 %v1282, %v1455
      %v1490 = vadd.f32 %v1458, %v1457
      %v1491 = vadd.f32 %v1459, %v1457
      %v1492 = vadd.f32 %v1460, %v1457
      %v1493 = vadd.f32 %v1461, %v1457
      %v1494 = vadd.f32 %v1462, %v1457
      %v1495 = vadd.f32 %v1463, %v1457
      %v1496 = vadd.f32 %v1464, %v1457
      %v1497 = vadd.f32 %v1465, %v1457
      %v1498 = vadd.f32 %v1466, %v1457
      %v1499 = vadd.f32 %v1467, %v1457
      %v1500 = vadd.f32 %v1468, %v1457
      %v1501 = vadd.f32 %v1469, %v1457
      %v1502 = vadd.f32 %v1470, %v1457
      %v1503 = vadd.f32 %v1471, %v1457
      %v1504 = vadd.f32 %v1472, %v1457
      %v1505 = vadd.f32 %v1473, %v1457
      %v1506 = vadd.f32 %v1474, %v1457
      %v1507 = vadd.f32 %v1475, %v1457
      %v1508 = vadd.f32 %v1476, %v1457
      %v1509 = vadd.f32 %v1477, %v1457
      %v1510 = vadd.f32 %v1478, %v1457
      %v1511 = vadd.f32 %v1479, %v1457
      %v1512 = vadd.f32 %v1480, %v1457
      %v1513 = vadd.f32 %v1481, %v1457
      %v1514 = vadd.f32 %v1482, %v1457
      %v1515 = vadd.f32 %v1483, %v1457
      %v1516 = vadd.f32 %v1484, %v1457
      %v1517 = vadd.f32 %v1485, %v1457
      %v1518 = vadd.f32 %v1486, %v1457
      %v1519 = vadd.f32 %v1487, %v1457
      %v1520 = vadd.f32 %v1488, %v1457
      %v1521 = vadd.f32 %v1489, %v1457
      %s1522 = sld [smem:[#allocation2]]
      %vm1523 = vcmp.ge.f32.partialorder %v1490, 0.0
      %vm1524 = vcmp.ge.f32.partialorder %v1491, 0.0
      %vm1525 = vcmp.ge.f32.partialorder %v1492, 0.0
      %vm1526 = vcmp.ge.f32.partialorder %v1493, 0.0
      %vm1527 = vcmp.ge.f32.partialorder %v1494, 0.0
      %vm1528 = vcmp.ge.f32.partialorder %v1495, 0.0
      %vm1529 = vcmp.ge.f32.partialorder %v1496, 0.0
      %vm1530 = vcmp.ge.f32.partialorder %v1497, 0.0
      %vm1531 = vcmp.ge.f32.partialorder %v1498, 0.0
      %vm1532 = vcmp.ge.f32.partialorder %v1499, 0.0
      %vm1533 = vcmp.ge.f32.partialorder %v1500, 0.0
      %vm1534 = vcmp.ge.f32.partialorder %v1501, 0.0
      %vm1535 = vcmp.ge.f32.partialorder %v1502, 0.0
      %vm1536 = vcmp.ge.f32.partialorder %v1503, 0.0
      %vm1537 = vcmp.ge.f32.partialorder %v1504, 0.0
      %vm1538 = vcmp.ge.f32.partialorder %v1505, 0.0
      %vm1539 = vcmp.ge.f32.partialorder %v1506, 0.0
      %vm1540 = vcmp.ge.f32.partialorder %v1507, 0.0
      %vm1541 = vcmp.ge.f32.partialorder %v1508, 0.0
      %vm1542 = vcmp.ge.f32.partialorder %v1509, 0.0
      %vm1543 = vcmp.ge.f32.partialorder %v1510, 0.0
      %vm1544 = vcmp.ge.f32.partialorder %v1511, 0.0
      %vm1545 = vcmp.ge.f32.partialorder %v1512, 0.0
      %vm1546 = vcmp.ge.f32.partialorder %v1513, 0.0
      %vm1547 = vcmp.ge.f32.partialorder %v1514, 0.0
      %vm1548 = vcmp.ge.f32.partialorder %v1515, 0.0
      %vm1549 = vcmp.ge.f32.partialorder %v1516, 0.0
      %vm1550 = vcmp.ge.f32.partialorder %v1517, 0.0
      %vm1551 = vcmp.ge.f32.partialorder %v1518, 0.0
      %vm1552 = vcmp.ge.f32.partialorder %v1519, 0.0
      %vm1553 = vcmp.ge.f32.partialorder %v1520, 0.0
      %vm1554 = vcmp.ge.f32.partialorder %v1521, 0.0
      %v1555 = vstv %s1522
      %v1556 = vmul.f32 %v1555, %v1490
      %v1557 = vmul.f32 %v1555, %v1491
      %v1558 = vmul.f32 %v1555, %v1492
      %v1559 = vmul.f32 %v1555, %v1493
      %v1560 = vmul.f32 %v1555, %v1494
      %v1561 = vmul.f32 %v1555, %v1495
      %v1562 = vmul.f32 %v1555, %v1496
      %v1563 = vmul.f32 %v1555, %v1497
      %v1564 = vmul.f32 %v1555, %v1498
      %v1565 = vmul.f32 %v1555, %v1499
      %v1566 = vmul.f32 %v1555, %v1500
      %v1567 = vmul.f32 %v1555, %v1501
      %v1568 = vmul.f32 %v1555, %v1502
      %v1569 = vmul.f32 %v1555, %v1503
      %v1570 = vmul.f32 %v1555, %v1504
      %v1571 = vmul.f32 %v1555, %v1505
      %v1572 = vmul.f32 %v1555, %v1506
      %v1573 = vmul.f32 %v1555, %v1507
      %v1574 = vmul.f32 %v1555, %v1508
      %v1575 = vmul.f32 %v1555, %v1509
      %v1576 = vmul.f32 %v1555, %v1510
      %v1577 = vmul.f32 %v1555, %v1511
      %v1578 = vmul.f32 %v1555, %v1512
      %v1579 = vmul.f32 %v1555, %v1513
      %v1580 = vmul.f32 %v1555, %v1514
      %v1581 = vmul.f32 %v1555, %v1515
      %v1582 = vmul.f32 %v1555, %v1516
      %v1583 = vmul.f32 %v1555, %v1517
      %v1584 = vmul.f32 %v1555, %v1518
      %v1585 = vmul.f32 %v1555, %v1519
      %v1586 = vmul.f32 %v1555, %v1520
      %v1587 = vmul.f32 %v1555, %v1521
      %v1588 = vsel %vm1523, %v1490, %v1556
      %v1589 = vsel %vm1524, %v1491, %v1557
      %v1590 = vsel %vm1525, %v1492, %v1558
      %v1591 = vsel %vm1526, %v1493, %v1559
      %v1592 = vsel %vm1527, %v1494, %v1560
      %v1593 = vsel %vm1528, %v1495, %v1561
      %v1594 = vsel %vm1529, %v1496, %v1562
      %v1595 = vsel %vm1530, %v1497, %v1563
      %v1596 = vsel %vm1531, %v1498, %v1564
      %v1597 = vsel %vm1532, %v1499, %v1565
      %v1598 = vsel %vm1533, %v1500, %v1566
      %v1599 = vsel %vm1534, %v1501, %v1567
      %v1600 = vsel %vm1535, %v1502, %v1568
      %v1601 = vsel %vm1536, %v1503, %v1569
      %v1602 = vsel %vm1537, %v1504, %v1570
      %v1603 = vsel %vm1538, %v1505, %v1571
      %v1604 = vsel %vm1539, %v1506, %v1572
      %v1605 = vsel %vm1540, %v1507, %v1573
      %v1606 = vsel %vm1541, %v1508, %v1574
      %v1607 = vsel %vm1542, %v1509, %v1575
      %v1608 = vsel %vm1543, %v1510, %v1576
      %v1609 = vsel %vm1544, %v1511, %v1577
      %v1610 = vsel %vm1545, %v1512, %v1578
      %v1611 = vsel %vm1546, %v1513, %v1579
      %v1612 = vsel %vm1547, %v1514, %v1580
      %v1613 = vsel %vm1548, %v1515, %v1581
      %v1614 = vsel %vm1549, %v1516, %v1582
      %v1615 = vsel %vm1550, %v1517, %v1583
      %v1616 = vsel %vm1551, %v1518, %v1584
      %v1617 = vsel %vm1552, %v1519, %v1585
      %v1618 = vsel %vm1553, %v1520, %v1586
      %v1619 = vsel %vm1554, %v1521, %v1587
      %v1620 = vpack.c.bf16 %v1588, %v1588
      %v1621 = vpack.c.bf16 %v1589, %v1589
      %v1622 = vpack.c.bf16 %v1590, %v1590
      %v1623 = vpack.c.bf16 %v1591, %v1591
      %v1624 = vpack.c.bf16 %v1592, %v1592
      %v1625 = vpack.c.bf16 %v1593, %v1593
      %v1626 = vpack.c.bf16 %v1594, %v1594
      %v1627 = vpack.c.bf16 %v1595, %v1595
      %v1628 = vpack.c.bf16 %v1596, %v1596
      %v1629 = vpack.c.bf16 %v1597, %v1597
      %v1630 = vpack.c.bf16 %v1598, %v1598
      %v1631 = vpack.c.bf16 %v1599, %v1599
      %v1632 = vpack.c.bf16 %v1600, %v1600
      %v1633 = vpack.c.bf16 %v1601, %v1601
      %v1634 = vpack.c.bf16 %v1602, %v1602
      %v1635 = vpack.c.bf16 %v1603, %v1603
      %v1636 = vpack.c.bf16 %v1604, %v1604
      %v1637 = vpack.c.bf16 %v1605, %v1605
      %v1638 = vpack.c.bf16 %v1606, %v1606
      %v1639 = vpack.c.bf16 %v1607, %v1607
      %v1640 = vpack.c.bf16 %v1608, %v1608
      %v1641 = vpack.c.bf16 %v1609, %v1609
      %v1642 = vpack.c.bf16 %v1610, %v1610
      %v1643 = vpack.c.bf16 %v1611, %v1611
      %v1644 = vpack.c.bf16 %v1612, %v1612
      %v1645 = vpack.c.bf16 %v1613, %v1613
      %v1646 = vpack.c.bf16 %v1614, %v1614
      %v1647 = vpack.c.bf16 %v1615, %v1615
      %v1648 = vpack.c.bf16 %v1616, %v1616
      %v1649 = vpack.c.bf16 %v1617, %v1617
      %v1650 = vpack.c.bf16 %v1618, %v1618
      %v1651 = vpack.c.bf16 %v1619, %v1619
      %v1684 = vcombine.low %v1620, %v1621
      %v1685 = vcombine.low %v1622, %v1623
      %v1687 = vunpack.c.l.s4 1983009808
      %v1688 = vunpack.c.0.s8 %v1687
      %v1689 = vlaneseq
      %v1690 = vshrl.u32 %v1689, 7
      %v1691 = vsub.s32 %v1688, %v1690
      %v1692 = vrot.slane %v1684, %v1691
      %v1694 = vunpack.c.l.s4 1983009808
      %v1695 = vunpack.c.0.s8 %v1694
      %v1696 = vlaneseq
      %v1697 = vshrl.u32 %v1696, 7
      %v1698 = vsub.s32 %v1695, %v1697
      %v1699 = vrot.slane %v1685, %v1698
      %v1700 = vcombine.low %v1692, %v1699
      %v1701 = vcombine.low %v1624, %v1625
      %v1702 = vcombine.low %v1626, %v1627
      %v1704 = vunpack.c.l.s4 1983009808
      %v1705 = vunpack.c.0.s8 %v1704
      %v1706 = vlaneseq
      %v1707 = vshrl.u32 %v1706, 7
      %v1708 = vsub.s32 %v1705, %v1707
      %v1709 = vrot.slane %v1701, %v1708
      %v1711 = vunpack.c.l.s4 1983009808
      %v1712 = vunpack.c.0.s8 %v1711
      %v1713 = vlaneseq
      %v1714 = vshrl.u32 %v1713, 7
      %v1715 = vsub.s32 %v1712, %v1714
      %v1716 = vrot.slane %v1702, %v1715
      %v1717 = vcombine.low %v1709, %v1716
      %v1718 = vcombine.low %v1628, %v1629
      %v1719 = vcombine.low %v1630, %v1631
      %v1721 = vunpack.c.l.s4 1983009808
      %v1722 = vunpack.c.0.s8 %v1721
      %v1723 = vlaneseq
      %v1724 = vshrl.u32 %v1723, 7
      %v1725 = vsub.s32 %v1722, %v1724
      %v1726 = vrot.slane %v1718, %v1725
      %v1728 = vunpack.c.l.s4 1983009808
      %v1729 = vunpack.c.0.s8 %v1728
      %v1730 = vlaneseq
      %v1731 = vshrl.u32 %v1730, 7
      %v1732 = vsub.s32 %v1729, %v1731
      %v1733 = vrot.slane %v1719, %v1732
      %v1734 = vcombine.low %v1726, %v1733
      %v1735 = vcombine.low %v1632, %v1633
      %v1736 = vcombine.low %v1634, %v1635
      %v1738 = vunpack.c.l.s4 1983009808
      %v1739 = vunpack.c.0.s8 %v1738
      %v1740 = vlaneseq
      %v1741 = vshrl.u32 %v1740, 7
      %v1742 = vsub.s32 %v1739, %v1741
      %v1743 = vrot.slane %v1735, %v1742
      %v1745 = vunpack.c.l.s4 1983009808
      %v1746 = vunpack.c.0.s8 %v1745
      %v1747 = vlaneseq
      %v1748 = vshrl.u32 %v1747, 7
      %v1749 = vsub.s32 %v1746, %v1748
      %v1750 = vrot.slane %v1736, %v1749
      %v1751 = vcombine.low %v1743, %v1750
      %v1752 = vcombine.low %v1636, %v1637
      %v1753 = vcombine.low %v1638, %v1639
      %v1755 = vunpack.c.l.s4 1983009808
      %v1756 = vunpack.c.0.s8 %v1755
      %v1757 = vlaneseq
      %v1758 = vshrl.u32 %v1757, 7
      %v1759 = vsub.s32 %v1756, %v1758
      %v1760 = vrot.slane %v1752, %v1759
      %v1762 = vunpack.c.l.s4 1983009808
      %v1763 = vunpack.c.0.s8 %v1762
      %v1764 = vlaneseq
      %v1765 = vshrl.u32 %v1764, 7
      %v1766 = vsub.s32 %v1763, %v1765
      %v1767 = vrot.slane %v1753, %v1766
      %v1768 = vcombine.low %v1760, %v1767
      %v1769 = vcombine.low %v1640, %v1641
      %v1770 = vcombine.low %v1642, %v1643
      %v1772 = vunpack.c.l.s4 1983009808
      %v1773 = vunpack.c.0.s8 %v1772
      %v1774 = vlaneseq
      %v1775 = vshrl.u32 %v1774, 7
      %v1776 = vsub.s32 %v1773, %v1775
      %v1777 = vrot.slane %v1769, %v1776
      %v1779 = vunpack.c.l.s4 1983009808
      %v1780 = vunpack.c.0.s8 %v1779
      %v1781 = vlaneseq
      %v1782 = vshrl.u32 %v1781, 7
      %v1783 = vsub.s32 %v1780, %v1782
      %v1784 = vrot.slane %v1770, %v1783
      %v1785 = vcombine.low %v1777, %v1784
      %v1786 = vcombine.low %v1644, %v1645
      %v1787 = vcombine.low %v1646, %v1647
      %v1789 = vunpack.c.l.s4 1983009808
      %v1790 = vunpack.c.0.s8 %v1789
      %v1791 = vlaneseq
      %v1792 = vshrl.u32 %v1791, 7
      %v1793 = vsub.s32 %v1790, %v1792
      %v1794 = vrot.slane %v1786, %v1793
      %v1796 = vunpack.c.l.s4 1983009808
      %v1797 = vunpack.c.0.s8 %v1796
      %v1798 = vlaneseq
      %v1799 = vshrl.u32 %v1798, 7
      %v1800 = vsub.s32 %v1797, %v1799
      %v1801 = vrot.slane %v1787, %v1800
      %v1802 = vcombine.low %v1794, %v1801
      %v1803 = vcombine.low %v1648, %v1649
      %v1804 = vcombine.low %v1650, %v1651
      %v1806 = vunpack.c.l.s4 1983009808
      %v1807 = vunpack.c.0.s8 %v1806
      %v1808 = vlaneseq
      %v1809 = vshrl.u32 %v1808, 7
      %v1810 = vsub.s32 %v1807, %v1809
      %v1811 = vrot.slane %v1803, %v1810
      %v1813 = vunpack.c.l.s4 1983009808
      %v1814 = vunpack.c.0.s8 %v1813
      %v1815 = vlaneseq
      %v1816 = vshrl.u32 %v1815, 7
      %v1817 = vsub.s32 %v1814, %v1816
      %v1818 = vrot.slane %v1804, %v1817
      %v1819 = vcombine.low %v1811, %v1818
      %1828 = vst [vmem:[%s171] sm:$0xff] %v1700
      %1829 = vst [vmem:[%s171 + $0x8] sm:$0xff] %v1717
      %1830 = vst [vmem:[%s171 + $0x10] sm:$0xff] %v1734
      %1831 = vst [vmem:[%s171 + $0x18] sm:$0xff] %v1751
      %1832 = vst [vmem:[%s171 + $0x20] sm:$0xff] %v1768
      %1833 = vst [vmem:[%s171 + $0x28] sm:$0xff] %v1785
      %1834 = vst [vmem:[%s171 + $0x30] sm:$0xff] %v1802
      %1835 = vst [vmem:[%s171 + $0x38] sm:$0xff] %v1819
      %p1836 = scmp.lt.s32.totalorder %s15, 1
      %s1837 = scalar_select %p1836, %s15, 1
      %s1838 = smul.addr %s1837, 32
      %s1839 = smul.addr %s1838, 2
      %s1840 = scalar_lea.vmem %s3, %s1839
      // Predicated region
      $region33: #{unet_forward.5} parent=31 // pred_check
        %p1841 = pneg %p101
      $region34: #{unet_forward.5} parent=31 // pred_check_branch
        %1843 = sbr.rel (%p1841) target = $region36
      $region35: #{unet_forward.5} parent=31 // pred_region
        _
      $region36: #{unet_forward.5} parent=31 // pred_fallthru
        _
    $region32: #{unet_forward.5} parent=5 // pred_fallthru
      _
    %p1844 = scmp.le.s32.totalorder 2, %s10
    // Predicated region
    $region37: #{unet_forward.5} parent=5 // pred_check
      %p1845 = pneg %p1844
    $region38: #{unet_forward.5} parent=5 // pred_check_branch
      %1847 = sbr.rel (%p1845) target = $region40
    $region39: #{unet_forward.5} parent=5 // pred_region
      %s1848 = ssub.s32 %s10, 2
      // Predicated region
      $region41: #{unet_forward.5} parent=39 // pred_check
        %p1849 = pneg %p107
      $region42: #{unet_forward.5} parent=39 // pred_check_branch
        %1851 = sbr.rel (%p1849) target = $region44
      $region43: #{unet_forward.5} parent=39 // pred_region
        %p1852 = scmp.lt.s32.totalorder %s16, 1
        %s1853 = scalar_select %p1852, %s16, 1
        %s1854 = smul.addr %s1853, 32
        %s1855 = smul.addr %s1854, 2
        %s1856 = scalar_lea.vmem %s3, %s1855
      $region44: #{unet_forward.5} parent=39 // pred_fallthru
        _
    $region40: #{unet_forward.5} parent=5 // pred_fallthru
      _
  $region6: #{unet_forward.5} parent=0 // loop_footer
    %s14 = sadd.s32 1, %s10
  $region7: #{unet_forward.5} parent=0 // loop_footer_branch
    %9 = sbr.rel target = $region3
  $region8: #{unet_forward.5} parent=0 // loop_exit
    _

// kernel: unet_forward.6
$region0: #{unet_forward.6}
  #allocation0 [shape = 'u32[]', space=smem, size = 0x4, offset = 0x4, fixed_abs, tag = 'smem constant byte address 0x4 - core index']
  #allocation1 [shape = 'u32[144,128]{1,0:T(1,128)}', space=vmem, size = 0x12000, scoped, tag = 'internal scratch']
  #allocation2 [shape = 'f32[1]{0:T(128)S(6)}', space=smem, size = 0x200, scoped, tag = 'scoped memory for unet_forward.6']
  %s0 = inlined_call_operand.<no memory space> [shape: f32[1], index: 0, kind: input, shape index: {}]
  %s1 = inlined_call_operand.vmem [shape: bf16[2,108,512], index: 1, kind: input, shape index: {}]
  %s2 = inlined_call_operand.vmem [shape: bf16[8,108], index: 2, kind: input, shape index: {}]
  %s3 = inlined_call_operand.vmem [shape: bf16[2,8,512], index: 3, kind: output, shape index: {}]
  %s4 = sld [smem:[#allocation0]]
  $region45: #{unet_forward.6} parent=0
    _
  %s6 = ssub.s32 1, %s4
  %s7 = scalar_select 0, %s6, %s4
  %8 = sst [smem:[#allocation2]] %s0
  loop: start=0, step=1, limit=4
  $region2: #{unet_forward.6} parent=0 // loop_pre_header
    _
  $region3: #{unet_forward.6} parent=0 // loop_header
    %s10 = sphi 0, %s14
    %p11 = scmp.ge.s32.totalorder %s10, 4
    %s18 = sphi 0, %s18
    %s20 = sphi 0, %s18
    %s21 = sphi 0, %s20
    %s35 = sphi 0, %s21
    %s41 = sphi 0, %s43
    %s44 = sphi 0, %s41
    %s45 = sphi 0, %s44
    %s61 = sphi 0, %s45
    %s65 = sphi 0, %s65
    %s67 = sphi 0, %s65
    %s68 = sphi 0, %s67
    %s82 = sphi 0, %s68
    %s88 = sphi 0, %s90
    %s91 = sphi 0, %s88
    %s92 = sphi 0, %s91
    %s108 = sphi 0, %s92
  $region4: #{unet_forward.6} parent=0 // loop_header_branch
    %13 = sbr.rel (%p11) target = $region8
  $region5: #{unet_forward.6} parent=0 // loop_body
    %s15 = ssub.s32 %s10, 1
    %s16 = ssub.s32 %s10, 2
    %s17 = sadd.s32 %s10, 1
    %s19 = sadd.s32 %s18, 1
    %p22 = scmp.eq.s32.totalorder %s10, 1
    %p23 = scmp.ne.s32.totalorder %s18, %s20
    %p24 = scmp.eq.s32.totalorder %s10, 0
    %p25 = por %p23, %p24
    %p26 = scmp.ne.s32.totalorder %s18, %s20
    %p27 = scmp.eq.s32.totalorder %s15, 1
    %p28 = por %p26, %p27
    %p29 = scmp.ne.s32.totalorder %s20, %s21
    %p30 = scmp.eq.s32.totalorder %s15, 0
    %p31 = por %p29, %p30
    %p32 = scmp.ne.s32.totalorder %s20, %s21
    %p33 = scmp.eq.s32.totalorder %s16, 1
    %p34 = por %p32, %p33
    %p36 = scmp.ne.s32.totalorder %s21, %s35
    %p37 = scmp.eq.s32.totalorder %s16, 0
    %p38 = por %p36, %p37
    %s39 = ssub.s32 %s10, %s17
    %p40 = scmp.eq.s32.totalorder %s39, 0
    %s42 = sadd.s32 %s41, 1
    %s43 = scalar_select %p40, %s41, %s42
    %p46 = pneg %p40
    %p47 = scmp.eq.s32.totalorder %s10, 1
    %p48 = por %p46, %p47
    %p49 = scmp.ne.s32.totalorder %s41, %s44
    %p50 = scmp.eq.s32.totalorder %s10, 0
    %p51 = por %p49, %p50
    %p52 = scmp.ne.s32.totalorder %s41, %s44
    %p53 = scmp.eq.s32.totalorder %s15, 1
    %p54 = por %p52, %p53
    %p55 = scmp.ne.s32.totalorder %s44, %s45
    %p56 = scmp.eq.s32.totalorder %s15, 0
    %p57 = por %p55, %p56
    %p58 = scmp.ne.s32.totalorder %s44, %s45
    %p59 = scmp.eq.s32.totalorder %s16, 1
    %p60 = por %p58, %p59
    %p62 = scmp.ne.s32.totalorder %s45, %s61
    %p63 = scmp.eq.s32.totalorder %s16, 0
    %p64 = por %p62, %p63
    %s66 = sadd.s32 %s65, 1
    %p69 = scmp.eq.s32.totalorder %s10, 1
    %p70 = scmp.ne.s32.totalorder %s65, %s67
    %p71 = scmp.eq.s32.totalorder %s10, 0
    %p72 = por %p70, %p71
    %p73 = scmp.ne.s32.totalorder %s65, %s67
    %p74 = scmp.eq.s32.totalorder %s15, 1
    %p75 = por %p73, %p74
    %p76 = scmp.ne.s32.totalorder %s67, %s68
    %p77 = scmp.eq.s32.totalorder %s15, 0
    %p78 = por %p76, %p77
    %p79 = scmp.ne.s32.totalorder %s67, %s68
    %p80 = scmp.eq.s32.totalorder %s16, 1
    %p81 = por %p79, %p80
    %p83 = scmp.ne.s32.totalorder %s68, %s82
    %p84 = scmp.eq.s32.totalorder %s16, 0
    %p85 = por %p83, %p84
    %s86 = ssub.s32 %s10, %s17
    %p87 = scmp.eq.s32.totalorder %s86, 0
    %s89 = sadd.s32 %s88, 1
    %s90 = scalar_select %p87, %s88, %s89
    %p93 = pneg %p87
    %p94 = scmp.eq.s32.totalorder %s10, 1
    %p95 = por %p93, %p94
    %p96 = scmp.ne.s32.totalorder %s88, %s91
    %p97 = scmp.eq.s32.totalorder %s10, 0
    %p98 = por %p96, %p97
    %p99 = scmp.ne.s32.totalorder %s88, %s91
    %p100 = scmp.eq.s32.totalorder %s15, 1
    %p101 = por %p99, %p100
    %p102 = scmp.ne.s32.totalorder %s91, %s92
    %p103 = scmp.eq.s32.totalorder %s15, 0
    %p104 = por %p102, %p103
    %p105 = scmp.ne.s32.totalorder %s91, %s92
    %p106 = scmp.eq.s32.totalorder %s16, 1
    %p107 = por %p105, %p106
    %p109 = scmp.ne.s32.totalorder %s92, %s108
    %p110 = scmp.eq.s32.totalorder %s16, 0
    %p111 = por %p109, %p110
    %p112 = scmp.le.s32.totalorder 1, %s10
    %p113 = scmp.lt.s32.totalorder %s10, 3
    %p114 = pnand %p112, %p113
    %p115 = pneg %p114
    // Predicated region
    $region9: #{unet_forward.6} parent=5 // pred_check
      _
    $region10: #{unet_forward.6} parent=5 // pred_check_branch
      %117 = sbr.rel (%p114) target = $region12
    $region11: #{unet_forward.6} parent=5 // pred_region
      %s118 = ssub.s32 %s10, 1
      // Predicated region
      $region13: #{unet_forward.6} parent=11 // pred_check
        %p119 = pneg %p31
      $region14: #{unet_forward.6} parent=11 // pred_check_branch
        %121 = sbr.rel (%p119) target = $region16
      $region15: #{unet_forward.6} parent=11 // pred_region
        _
      $region16: #{unet_forward.6} parent=11 // pred_fallthru
        _
      // Predicated region
      $region17: #{unet_forward.6} parent=11 // pred_check
        %p122 = pneg %p78
      $region18: #{unet_forward.6} parent=11 // pred_check_branch
        %124 = sbr.rel (%p122) target = $region20
      $region19: #{unet_forward.6} parent=11 // pred_region
        _
      $region20: #{unet_forward.6} parent=11 // pred_fallthru
        _
    $region12: #{unet_forward.6} parent=5 // pred_fallthru
      _
    %p125 = scmp.lt.s32.totalorder %s10, 2
    // Predicated region
    $region21: #{unet_forward.6} parent=5 // pred_check
      %p126 = pneg %p125
    $region22: #{unet_forward.6} parent=5 // pred_check_branch
      %128 = sbr.rel (%p126) target = $region24
    $region23: #{unet_forward.6} parent=5 // pred_region
      // Predicated region
      $region25: #{unet_forward.6} parent=23 // pred_check
        %p129 = pneg %p51
      $region26: #{unet_forward.6} parent=23 // pred_check_branch
        %131 = sbr.rel (%p129) target = $region28
      $region27: #{unet_forward.6} parent=23 // pred_region
        %p132 = scmp.lt.s32.totalorder %s10, 1
        %s133 = scalar_select %p132, %s10, 1
        %s134 = smul.addr %s133, 56
        %s135 = smul.addr %s134, 4
        %s136 = scalar_lea.vmem %s1, %s135
      $region28: #{unet_forward.6} parent=23 // pred_fallthru
        _
    $region24: #{unet_forward.6} parent=5 // pred_fallthru
      _
    %p137 = scmp.le.s32.totalorder 1, %s10
    %p138 = scmp.lt.s32.totalorder %s10, 3
    %p139 = pnand %p137, %p138
    %p140 = pneg %p139
    // Predicated region
    $region29: #{unet_forward.6} parent=5 // pred_check
      _
    $region30: #{unet_forward.6} parent=5 // pred_check_branch
      %142 = sbr.rel (%p139) target = $region32
    $region31: #{unet_forward.6} parent=5 // pred_region
      %s143 = ssub.s32 %s10, 1
      %p144 = pneg %p31
      %p145 = pneg %p28
      %p146 = scmp.lt.s32.totalorder %s15, 1
      %s147 = scalar_select %p146, %s15, 1
      %s148 = smul.addr %s147, 56
      %s149 = smul.addr %s148, 4
      %s150 = scalar_lea.vmem %s1, %s149
      %p151 = pneg %p57
      %p152 = pneg %p54
      %p153 = pneg %p78
      %p154 = pneg %p75
      %p155 = pneg %p104
      %p156 = pneg %p101
      %p157 = scmp.lt.s32.totalorder %s15, 1
      %s158 = scalar_select %p157, %s15, 1
      %s159 = smul.addr %s158, 4
      %s160 = smul.addr %s159, 4
      %s161 = scalar_lea.vmem %s3, %s160
      %p162 = scmp.lt.s32.totalorder %s15, 1
      %s163 = scalar_select %p162, %s15, 1
      %s164 = smul.addr %s163, 56
      %s165 = smul.addr %s164, 4
      %s166 = scalar_lea.vmem %s1, %s165
      %p167 = scmp.lt.s32.totalorder %s15, 1
      %s168 = scalar_select %p167, %s15, 1
      %s169 = smul.addr %s168, 4
      %s170 = smul.addr %s169, 4
      %s171 = scalar_lea.vmem %s3, %s170
      %v173 = vld [vmem:[%s2] sm:$0xf]
      %v174 = vld [vmem:[%s166] sm:$0xff]
      %v175 = vld [vmem:[%s166 + $0x8] sm:$0xff]
      %v176 = vld [vmem:[%s166 + $0x10] sm:$0xff]
      %v177 = vld [vmem:[%s166 + $0x18] sm:$0xff]
      %v178 = vld [vmem:[%s166 + $0x20] sm:$0xff]
      %v179 = vld [vmem:[%s166 + $0x28] sm:$0xff]
      %v180 = vld [vmem:[%s166 + $0x30] sm:$0xff]
      %v181 = vld [vmem:[%s166 + $0x38] sm:$0xff]
      %v182 = vld [vmem:[%s166 + $0x40] sm:$0xff]
      %v183 = vld [vmem:[%s166 + $0x48] sm:$0xff]
      %v184 = vld [vmem:[%s166 + $0x50] sm:$0xff]
      %v185 = vld [vmem:[%s166 + $0x58] sm:$0xff]
      %v186 = vld [vmem:[%s166 + $0x60] sm:$0xff]
      %v187 = vld [vmem:[%s166 + $0x68] sm:$0xff]
      %v188 = vld [vmem:[%s166 + $0x70] sm:$0xff]
      %v189 = vld [vmem:[%s166 + $0x78] sm:$0xff]
      %v190 = vld [vmem:[%s166 + $0x80] sm:$0xff]
      %v191 = vld [vmem:[%s166 + $0x88] sm:$0xff]
      %v192 = vld [vmem:[%s166 + $0x90] sm:$0xff]
      %v193 = vld [vmem:[%s166 + $0x98] sm:$0xff]
      %v194 = vld [vmem:[%s166 + $0xa0] sm:$0xff]
      %v195 = vld [vmem:[%s166 + $0xa8] sm:$0xff]
      %v196 = vld [vmem:[%s166 + $0xb0] sm:$0xff]
      %v197 = vld [vmem:[%s166 + $0xb8] sm:$0xff]
      %v198 = vld [vmem:[%s166 + $0xc0] sm:$0xff]
      %v199 = vld [vmem:[%s166 + $0xc8] sm:$0xff]
      %v200 = vld [vmem:[%s166 + $0xd0] sm:$0x33]
      %v201 = vld [vmem:[%s166 + $0xd8] sm:$0x33]
      %v230 = vunpack.c.l.b16 %v174
      %v231 = vunpack.c.h.b16 %v174
      %v232 = vunpack.c.l.b16 %v175
      %v233 = vunpack.c.h.b16 %v175
      %v234 = vunpack.c.l.b16 %v176
      %v235 = vunpack.c.h.b16 %v176
      %v236 = vunpack.c.l.b16 %v177
      %v237 = vunpack.c.h.b16 %v177
      %v238 = vunpack.c.l.b16 %v178
      %v239 = vunpack.c.h.b16 %v178
      %v240 = vunpack.c.l.b16 %v179
      %v241 = vunpack.c.h.b16 %v179
      %v242 = vunpack.c.l.b16 %v180
      %v243 = vunpack.c.h.b16 %v180
      %v244 = vunpack.c.l.b16 %v181
      %v245 = vunpack.c.h.b16 %v181
      %v246 = vunpack.c.l.b16 %v182
      %v247 = vunpack.c.h.b16 %v182
      %v248 = vunpack.c.l.b16 %v183
      %v249 = vunpack.c.h.b16 %v183
      %v250 = vunpack.c.l.b16 %v184
      %v251 = vunpack.c.h.b16 %v184
      %v252 = vunpack.c.l.b16 %v185
      %v253 = vunpack.c.h.b16 %v185
      %v254 = vunpack.c.l.b16 %v186
      %v255 = vunpack.c.h.b16 %v186
      %v256 = vunpack.c.l.b16 %v187
      %v257 = vunpack.c.h.b16 %v187
      %v258 = vunpack.c.l.b16 %v188
      %v259 = vunpack.c.h.b16 %v188
      %v260 = vunpack.c.l.b16 %v189
      %v261 = vunpack.c.h.b16 %v189
      %v262 = vunpack.c.l.b16 %v190
      %v263 = vunpack.c.h.b16 %v190
      %v264 = vunpack.c.l.b16 %v191
      %v265 = vunpack.c.h.b16 %v191
      %v266 = vunpack.c.l.b16 %v192
      %v267 = vunpack.c.h.b16 %v192
      %v268 = vunpack.c.l.b16 %v193
      %v269 = vunpack.c.h.b16 %v193
      %v270 = vunpack.c.l.b16 %v194
      %v271 = vunpack.c.h.b16 %v194
      %v272 = vunpack.c.l.b16 %v195
      %v273 = vunpack.c.h.b16 %v195
      %v274 = vunpack.c.l.b16 %v196
      %v275 = vunpack.c.h.b16 %v196
      %v276 = vunpack.c.l.b16 %v197
      %v277 = vunpack.c.h.b16 %v197
      %v278 = vunpack.c.l.b16 %v198
      %v279 = vunpack.c.h.b16 %v198
      %v280 = vunpack.c.l.b16 %v199
      %v281 = vunpack.c.h.b16 %v199
      %v282 = vunpack.c.l.b16 %v200
      %v283 = vunpack.c.h.b16 %v200
      %v284 = vunpack.c.l.b16 %v201
      %v285 = vunpack.c.h.b16 %v201
      %v286 = vpack.c.b16 %v234, %v230
      %v287 = vpack.c.b16 %v235, %v231
      %v288 = vpack.c.b16 %v236, %v232
      %v289 = vpack.c.b16 %v237, %v233
      %v290 = vpack.c.b16 %v242, %v238
      %v291 = vpack.c.b16 %v243, %v239
      %v292 = vpack.c.b16 %v244, %v240
      %v293 = vpack.c.b16 %v245, %v241
      %v294 = vpack.c.b16 %v250, %v246
      %v295 = vpack.c.b16 %v251, %v247
      %v296 = vpack.c.b16 %v252, %v248
      %v297 = vpack.c.b16 %v253, %v249
      %v298 = vpack.c.b16 %v258, %v254
      %v299 = vpack.c.b16 %v259, %v255
      %v300 = vpack.c.b16 %v260, %v256
      %v301 = vpack.c.b16 %v261, %v257
      %v302 = vpack.c.b16 %v266, %v262
      %v303 = vpack.c.b16 %v267, %v263
      %v304 = vpack.c.b16 %v268, %v264
      %v305 = vpack.c.b16 %v269, %v265
      %v306 = vpack.c.b16 %v274, %v270
      %v307 = vpack.c.b16 %v275, %v271
      %v308 = vpack.c.b16 %v276, %v272
      %v309 = vpack.c.b16 %v277, %v273
      %v310 = vpack.c.b16 %v282, %v278
      %v311 = vpack.c.b16 %v283, %v279
      %v312 = vpack.c.b16 %v284, %v280
      %v313 = vpack.c.b16 %v285, %v281
      %vm338 = vcmask 883712
      %v340 = vsel %vm338, %v173, 0
      %vm342 = vcmask 1045504
      %v344 = vsel %vm342, %v310, 0
      %v347 = vsel %vm342, %v311, 0
      %v350 = vsel %vm342, %v312, 0
      %v353 = vsel %vm342, %v313, 0
      %355 = vmatprep.subr.bf16.mxu0 %v287
      %356 = vmatpush1.bf16.msra.mxu0 %v286
      %357 = vmatprep.subr.bf16.mxu0 %v291
      %358 = vmatpush1.bf16.msra.mxu0 %v290
      %359 = vmatprep.subr.bf16.mxu0 %v295
      %360 = vmatpush1.bf16.msra.mxu0 %v294
      %361 = vmatprep.subr.bf16.mxu0 %v299
      %362 = vmatpush1.bf16.msra.mxu0 %v298
      %363 = vmatprep.subr.bf16.mxu0 %v303
      %364 = vmatpush1.bf16.msra.mxu0 %v302
      %365 = vmatprep.subr.bf16.mxu0 %v307
      %366 = vmatpush1.bf16.msra.mxu0 %v306
      %367 = vmatprep.subr.bf16.mxu0 %v347
      %368 = vmatpush1.bf16.msra.mxu0 %v344
      %369 = vmatprep.subr.bf16.mxu0 0
      %370 = vmatpush1.bf16.msra.mxu0 0
      %371 = vmatprep.subr.bf16.mxu0 0
      %372 = vmatpush1.bf16.msra.mxu0 0
      %373 = vmatprep.subr.bf16.mxu0 0
      %374 = vmatpush1.bf16.msra.mxu0 0
      %375 = vmatprep.subr.bf16.mxu0 0
      %376 = vmatpush1.bf16.msra.mxu0 0
      %377 = vmatprep.subr.bf16.mxu0 0
      %378 = vmatpush1.bf16.msra.mxu0 0
      %379 = vmatprep.subr.bf16.mxu0 0
      %380 = vmatpush1.bf16.msra.mxu0 0
      %381 = vmatprep.subr.bf16.mxu0 0
      %382 = vmatpush1.bf16.msra.mxu0 0
      %383 = vmatprep.subr.bf16.mxu0 0
      %384 = vmatpush1.bf16.msra.mxu0 0
      %385 = vmatprep.subr.bf16.mxu0 0
      %386 = vmatpush1.bf16.msra.mxu0 0
      %387 = vmatprep.mubr.bf16.mxu0 0
      %388 = vmatmul.mubr.bf16.gmra.mrb[0].mxu0 %v340
      %v389 = vpop.f32.mrb[0].mxu0
      %v390 = vadd.f32 0.0, %v389
      %v391 = vpop.f32.mrb[0].mxu0
      %v392 = vadd.f32 0.0, %v391
      %v393 = vpop.f32.mrb[0].mxu0
      %v394 = vpop.f32.mrb[0].mxu0
      %395 = vdwg.mxu0
      %396 = vmatprep.subr.bf16.mxu0 %v289
      %397 = vmatpush1.bf16.msra.mxu0 %v288
      %398 = vmatprep.subr.bf16.mxu0 %v293
      %399 = vmatpush1.bf16.msra.mxu0 %v292
      %400 = vmatprep.subr.bf16.mxu0 %v297
      %401 = vmatpush1.bf16.msra.mxu0 %v296
      %402 = vmatprep.subr.bf16.mxu0 %v301
      %403 = vmatpush1.bf16.msra.mxu0 %v300
      %404 = vmatprep.subr.bf16.mxu0 %v305
      %405 = vmatpush1.bf16.msra.mxu0 %v304
      %406 = vmatprep.subr.bf16.mxu0 %v309
      %407 = vmatpush1.bf16.msra.mxu0 %v308
      %408 = vmatprep.subr.bf16.mxu0 %v353
      %409 = vmatpush1.bf16.msra.mxu0 %v350
      %410 = vmatprep.subr.bf16.mxu0 0
      %411 = vmatpush1.bf16.msra.mxu0 0
      %412 = vmatprep.subr.bf16.mxu0 0
      %413 = vmatpush1.bf16.msra.mxu0 0
      %414 = vmatprep.subr.bf16.mxu0 0
      %415 = vmatpush1.bf16.msra.mxu0 0
      %416 = vmatprep.subr.bf16.mxu0 0
      %417 = vmatpush1.bf16.msra.mxu0 0
      %418 = vmatprep.subr.bf16.mxu0 0
      %419 = vmatpush1.bf16.msra.mxu0 0
      %420 = vmatprep.subr.bf16.mxu0 0
      %421 = vmatpush1.bf16.msra.mxu0 0
      %422 = vmatprep.subr.bf16.mxu0 0
      %423 = vmatpush1.bf16.msra.mxu0 0
      %424 = vmatprep.subr.bf16.mxu0 0
      %425 = vmatpush1.bf16.msra.mxu0 0
      %426 = vmatprep.subr.bf16.mxu0 0
      %427 = vmatpush1.bf16.msra.mxu0 0
      %428 = vmatprep.mubr.bf16.mxu0 0
      %429 = vmatmul.mubr.bf16.gmra.mrb[0].mxu0 %v340
      %v430 = vpop.f32.mrb[0].mxu0
      %v431 = vadd.f32 0.0, %v430
      %v432 = vpop.f32.mrb[0].mxu0
      %v433 = vadd.f32 0.0, %v432
      %v434 = vpop.f32.mrb[0].mxu0
      %v435 = vpop.f32.mrb[0].mxu0
      %436 = vdwg.mxu0
      %v437 = vadd.f32 %v390, %v392
      %v438 = vadd.f32 %v437, %v431
      %v439 = vadd.f32 %v438, %v433
      %440 = vadd.xlane.f32.xlu0 %v439
      %v441 = vpop.xlane.xlu0 %440
      %v442 = vrcp.pop 512.0
      %v443 = vmul.f32 %v441, %v442
      %v444 = vmul.f32 %v390, %v390
      %v445 = vmul.f32 %v392, %v392
      %v446 = vmul.f32 %v431, %v431
      %v447 = vmul.f32 %v433, %v433
      %v448 = vadd.f32 %v444, %v445
      %v449 = vadd.f32 %v448, %v446
      %v450 = vadd.f32 %v449, %v447
      %451 = vadd.xlane.f32.xlu0 %v450
      %v452 = vpop.xlane.xlu0 %451
      %v453 = vmul.f32 %v452, %v442
      %v454 = vmul.f32 %v443, %v443
      %v455 = vsub.f32 %v453, %v454
      %v456 = vadd.f32 %v455, 1e-05
      %v457 = vrsqrt.pop %v456
      %v458 = vsub.f32 0.0, %v443
      %v459 = vmul.f32 %v458, %v457
      %v460 = vmul.f32 %v390, %v457
      %v461 = vmul.f32 %v392, %v457
      %v462 = vmul.f32 %v431, %v457
      %v463 = vmul.f32 %v433, %v457
      %v464 = vadd.f32 %v460, %v459
      %v465 = vadd.f32 %v461, %v459
      %v466 = vadd.f32 %v462, %v459
      %v467 = vadd.f32 %v463, %v459
      %s468 = sld [smem:[#allocation2]]
      %vm469 = vcmp.ge.f32.partialorder %v464, 0.0
      %vm470 = vcmp.ge.f32.partialorder %v465, 0.0
      %vm471 = vcmp.ge.f32.partialorder %v466, 0.0
      %vm472 = vcmp.ge.f32.partialorder %v467, 0.0
      %v473 = vstv %s468
      %v474 = vmul.f32 %v473, %v464
      %v475 = vmul.f32 %v473, %v465
      %v476 = vmul.f32 %v473, %v466
      %v477 = vmul.f32 %v473, %v467
      %v478 = vsel %vm469, %v464, %v474
      %v479 = vsel %vm470, %v465, %v475
      %v480 = vsel %vm471, %v466, %v476
      %v481 = vsel %vm472, %v467, %v477
      %v482 = vpack.c.bf16 %v478, %v478
      %v483 = vpack.c.bf16 %v479, %v479
      %v484 = vpack.c.bf16 %v480, %v480
      %v485 = vpack.c.bf16 %v481, %v481
      %v490 = vunpack.c.l.b16 %v482
      %v491 = vunpack.c.l.b16 %v483
      %v492 = vunpack.c.l.b16 %v484
      %v493 = vunpack.c.l.b16 %v485
      %v494 = vpack.c.b16 %v491, %v490
      %v495 = vpack.c.b16 %v493, %v492
      %498 = vst [vmem:[%s171] sm:$0xff] %v494
      %499 = vst [vmem:[%s171 + $0x8] sm:$0xff] %v495
      %p500 = scmp.lt.s32.totalorder %s15, 1
      %s501 = scalar_select %p500, %s15, 1
      %s502 = smul.addr %s501, 4
      %s503 = smul.addr %s502, 4
      %s504 = scalar_lea.vmem %s3, %s503
      // Predicated region
      $region33: #{unet_forward.6} parent=31 // pred_check
        %p505 = pneg %p101
      $region34: #{unet_forward.6} parent=31 // pred_check_branch
        %507 = sbr.rel (%p505) target = $region36
      $region35: #{unet_forward.6} parent=31 // pred_region
        _
      $region36: #{unet_forward.6} parent=31 // pred_fallthru
        _
    $region32: #{unet_forward.6} parent=5 // pred_fallthru
      _
    %p508 = scmp.le.s32.totalorder 2, %s10
    // Predicated region
    $region37: #{unet_forward.6} parent=5 // pred_check
      %p509 = pneg %p508
    $region38: #{unet_forward.6} parent=5 // pred_check_branch
      %511 = sbr.rel (%p509) target = $region40
    $region39: #{unet_forward.6} parent=5 // pred_region
      %s512 = ssub.s32 %s10, 2
      // Predicated region
      $region41: #{unet_forward.6} parent=39 // pred_check
        %p513 = pneg %p107
      $region42: #{unet_forward.6} parent=39 // pred_check_branch
        %515 = sbr.rel (%p513) target = $region44
      $region43: #{unet_forward.6} parent=39 // pred_region
        %p516 = scmp.lt.s32.totalorder %s16, 1
        %s517 = scalar_select %p516, %s16, 1
        %s518 = smul.addr %s517, 4
        %s519 = smul.addr %s518, 4
        %s520 = scalar_lea.vmem %s3, %s519
      $region44: #{unet_forward.6} parent=39 // pred_fallthru
        _
    $region40: #{unet_forward.6} parent=5 // pred_fallthru
      _
  $region6: #{unet_forward.6} parent=0 // loop_footer
    %s14 = sadd.s32 1, %s10
  $region7: #{unet_forward.6} parent=0 // loop_footer_branch
    %9 = sbr.rel target = $region3
  $region8: #{unet_forward.6} parent=0 // loop_exit
    _

// kernel: unet_forward.7
$region0: #{unet_forward.7}
  #allocation0 [shape = 'u32[]', space=smem, size = 0x4, offset = 0x4, fixed_abs, tag = 'smem constant byte address 0x4 - core index']
  #allocation1 [shape = 'u32[144,128]{1,0:T(1,128)}', space=vmem, size = 0x12000, scoped, tag = 'internal scratch']
  #allocation2 [shape = 'f32[1]{0:T(128)S(6)}', space=smem, size = 0x200, scoped, tag = 'scoped memory for unet_forward.7']
  %s0 = inlined_call_operand.<no memory space> [shape: f32[1], index: 0, kind: input, shape index: {}]
  %s1 = inlined_call_operand.vmem [shape: bf16[2,216,512], index: 1, kind: input, shape index: {}]
  %s2 = inlined_call_operand.vmem [shape: bf16[16,216], index: 2, kind: input, shape index: {}]
  %s3 = inlined_call_operand.vmem [shape: bf16[2,16,512], index: 3, kind: output, shape index: {}]
  %s4 = sld [smem:[#allocation0]]
  $region45: #{unet_forward.7} parent=0
    _
  %s6 = ssub.s32 1, %s4
  %s7 = scalar_select 0, %s6, %s4
  %8 = sst [smem:[#allocation2]] %s0
  loop: start=0, step=1, limit=4
  $region2: #{unet_forward.7} parent=0 // loop_pre_header
    _
  $region3: #{unet_forward.7} parent=0 // loop_header
    %s10 = sphi 0, %s14
    %p11 = scmp.ge.s32.totalorder %s10, 4
    %s18 = sphi 0, %s18
    %s20 = sphi 0, %s18
    %s21 = sphi 0, %s20
    %s35 = sphi 0, %s21
    %s41 = sphi 0, %s43
    %s44 = sphi 0, %s41
    %s45 = sphi 0, %s44
    %s61 = sphi 0, %s45
    %s65 = sphi 0, %s65
    %s67 = sphi 0, %s65
    %s68 = sphi 0, %s67
    %s82 = sphi 0, %s68
    %s88 = sphi 0, %s90
    %s91 = sphi 0, %s88
    %s92 = sphi 0, %s91
    %s108 = sphi 0, %s92
  $region4: #{unet_forward.7} parent=0 // loop_header_branch
    %13 = sbr.rel (%p11) target = $region8
  $region5: #{unet_forward.7} parent=0 // loop_body
    %s15 = ssub.s32 %s10, 1
    %s16 = ssub.s32 %s10, 2
    %s17 = sadd.s32 %s10, 1
    %s19 = sadd.s32 %s18, 1
    %p22 = scmp.eq.s32.totalorder %s10, 1
    %p23 = scmp.ne.s32.totalorder %s18, %s20
    %p24 = scmp.eq.s32.totalorder %s10, 0
    %p25 = por %p23, %p24
    %p26 = scmp.ne.s32.totalorder %s18, %s20
    %p27 = scmp.eq.s32.totalorder %s15, 1
    %p28 = por %p26, %p27
    %p29 = scmp.ne.s32.totalorder %s20, %s21
    %p30 = scmp.eq.s32.totalorder %s15, 0
    %p31 = por %p29, %p30
    %p32 = scmp.ne.s32.totalorder %s20, %s21
    %p33 = scmp.eq.s32.totalorder %s16, 1
    %p34 = por %p32, %p33
    %p36 = scmp.ne.s32.totalorder %s21, %s35
    %p37 = scmp.eq.s32.totalorder %s16, 0
    %p38 = por %p36, %p37
    %s39 = ssub.s32 %s10, %s17
    %p40 = scmp.eq.s32.totalorder %s39, 0
    %s42 = sadd.s32 %s41, 1
    %s43 = scalar_select %p40, %s41, %s42
    %p46 = pneg %p40
    %p47 = scmp.eq.s32.totalorder %s10, 1
    %p48 = por %p46, %p47
    %p49 = scmp.ne.s32.totalorder %s41, %s44
    %p50 = scmp.eq.s32.totalorder %s10, 0
    %p51 = por %p49, %p50
    %p52 = scmp.ne.s32.totalorder %s41, %s44
    %p53 = scmp.eq.s32.totalorder %s15, 1
    %p54 = por %p52, %p53
    %p55 = scmp.ne.s32.totalorder %s44, %s45
    %p56 = scmp.eq.s32.totalorder %s15, 0
    %p57 = por %p55, %p56
    %p58 = scmp.ne.s32.totalorder %s44, %s45
    %p59 = scmp.eq.s32.totalorder %s16, 1
    %p60 = por %p58, %p59
    %p62 = scmp.ne.s32.totalorder %s45, %s61
    %p63 = scmp.eq.s32.totalorder %s16, 0
    %p64 = por %p62, %p63
    %s66 = sadd.s32 %s65, 1
    %p69 = scmp.eq.s32.totalorder %s10, 1
    %p70 = scmp.ne.s32.totalorder %s65, %s67
    %p71 = scmp.eq.s32.totalorder %s10, 0
    %p72 = por %p70, %p71
    %p73 = scmp.ne.s32.totalorder %s65, %s67
    %p74 = scmp.eq.s32.totalorder %s15, 1
    %p75 = por %p73, %p74
    %p76 = scmp.ne.s32.totalorder %s67, %s68
    %p77 = scmp.eq.s32.totalorder %s15, 0
    %p78 = por %p76, %p77
    %p79 = scmp.ne.s32.totalorder %s67, %s68
    %p80 = scmp.eq.s32.totalorder %s16, 1
    %p81 = por %p79, %p80
    %p83 = scmp.ne.s32.totalorder %s68, %s82
    %p84 = scmp.eq.s32.totalorder %s16, 0
    %p85 = por %p83, %p84
    %s86 = ssub.s32 %s10, %s17
    %p87 = scmp.eq.s32.totalorder %s86, 0
    %s89 = sadd.s32 %s88, 1
    %s90 = scalar_select %p87, %s88, %s89
    %p93 = pneg %p87
    %p94 = scmp.eq.s32.totalorder %s10, 1
    %p95 = por %p93, %p94
    %p96 = scmp.ne.s32.totalorder %s88, %s91
    %p97 = scmp.eq.s32.totalorder %s10, 0
    %p98 = por %p96, %p97
    %p99 = scmp.ne.s32.totalorder %s88, %s91
    %p100 = scmp.eq.s32.totalorder %s15, 1
    %p101 = por %p99, %p100
    %p102 = scmp.ne.s32.totalorder %s91, %s92
    %p103 = scmp.eq.s32.totalorder %s15, 0
    %p104 = por %p102, %p103
    %p105 = scmp.ne.s32.totalorder %s91, %s92
    %p106 = scmp.eq.s32.totalorder %s16, 1
    %p107 = por %p105, %p106
    %p109 = scmp.ne.s32.totalorder %s92, %s108
    %p110 = scmp.eq.s32.totalorder %s16, 0
    %p111 = por %p109, %p110
    %p112 = scmp.le.s32.totalorder 1, %s10
    %p113 = scmp.lt.s32.totalorder %s10, 3
    %p114 = pnand %p112, %p113
    %p115 = pneg %p114
    // Predicated region
    $region9: #{unet_forward.7} parent=5 // pred_check
      _
    $region10: #{unet_forward.7} parent=5 // pred_check_branch
      %117 = sbr.rel (%p114) target = $region12
    $region11: #{unet_forward.7} parent=5 // pred_region
      %s118 = ssub.s32 %s10, 1
      // Predicated region
      $region13: #{unet_forward.7} parent=11 // pred_check
        %p119 = pneg %p31
      $region14: #{unet_forward.7} parent=11 // pred_check_branch
        %121 = sbr.rel (%p119) target = $region16
      $region15: #{unet_forward.7} parent=11 // pred_region
        _
      $region16: #{unet_forward.7} parent=11 // pred_fallthru
        _
      // Predicated region
      $region17: #{unet_forward.7} parent=11 // pred_check
        %p122 = pneg %p78
      $region18: #{unet_forward.7} parent=11 // pred_check_branch
        %124 = sbr.rel (%p122) target = $region20
      $region19: #{unet_forward.7} parent=11 // pred_region
        _
      $region20: #{unet_forward.7} parent=11 // pred_fallthru
        _
    $region12: #{unet_forward.7} parent=5 // pred_fallthru
      _
    %p125 = scmp.lt.s32.totalorder %s10, 2
    // Predicated region
    $region21: #{unet_forward.7} parent=5 // pred_check
      %p126 = pneg %p125
    $region22: #{unet_forward.7} parent=5 // pred_check_branch
      %128 = sbr.rel (%p126) target = $region24
    $region23: #{unet_forward.7} parent=5 // pred_region
      // Predicated region
      $region25: #{unet_forward.7} parent=23 // pred_check
        %p129 = pneg %p51
      $region26: #{unet_forward.7} parent=23 // pred_check_branch
        %131 = sbr.rel (%p129) target = $region28
      $region27: #{unet_forward.7} parent=23 // pred_region
        %p132 = scmp.lt.s32.totalorder %s10, 1
        %s133 = scalar_select %p132, %s10, 1
        %s134 = smul.addr %s133, 108
        %s135 = smul.addr %s134, 4
        %s136 = scalar_lea.vmem %s1, %s135
      $region28: #{unet_forward.7} parent=23 // pred_fallthru
        _
    $region24: #{unet_forward.7} parent=5 // pred_fallthru
      _
    %p137 = scmp.le.s32.totalorder 1, %s10
    %p138 = scmp.lt.s32.totalorder %s10, 3
    %p139 = pnand %p137, %p138
    %p140 = pneg %p139
    // Predicated region
    $region29: #{unet_forward.7} parent=5 // pred_check
      _
    $region30: #{unet_forward.7} parent=5 // pred_check_branch
      %142 = sbr.rel (%p139) target = $region32
    $region31: #{unet_forward.7} parent=5 // pred_region
      %s143 = ssub.s32 %s10, 1
      %p144 = pneg %p31
      %p145 = pneg %p28
      %p146 = scmp.lt.s32.totalorder %s15, 1
      %s147 = scalar_select %p146, %s15, 1
      %s148 = smul.addr %s147, 108
      %s149 = smul.addr %s148, 4
      %s150 = scalar_lea.vmem %s1, %s149
      %p151 = pneg %p57
      %p152 = pneg %p54
      %p153 = pneg %p78
      %p154 = pneg %p75
      %p155 = pneg %p104
      %p156 = pneg %p101
      %p157 = scmp.lt.s32.totalorder %s15, 1
      %s158 = scalar_select %p157, %s15, 1
      %s159 = smul.addr %s158, 8
      %s160 = smul.addr %s159, 4
      %s161 = scalar_lea.vmem %s3, %s160
      %p162 = scmp.lt.s32.totalorder %s15, 1
      %s163 = scalar_select %p162, %s15, 1
      %s164 = smul.addr %s163, 108
      %s165 = smul.addr %s164, 4
      %s166 = scalar_lea.vmem %s1, %s165
      %p167 = scmp.lt.s32.totalorder %s15, 1
      %s168 = scalar_select %p167, %s15, 1
      %s169 = smul.addr %s168, 8
      %s170 = smul.addr %s169, 4
      %s171 = scalar_lea.vmem %s3, %s170
      %v173 = vld [vmem:[%s2] sm:$0xff]
      %v174 = vld [vmem:[%s2 + $0x8] sm:$0xff]
      %v175 = vld [vmem:[%s166] sm:$0xff]
      %v176 = vld [vmem:[%s166 + $0x8] sm:$0xff]
      %v177 = vld [vmem:[%s166 + $0x10] sm:$0xff]
      %v178 = vld [vmem:[%s166 + $0x18] sm:$0xff]
      %v179 = vld [vmem:[%s166 + $0x20] sm:$0xff]
      %v180 = vld [vmem:[%s166 + $0x28] sm:$0xff]
      %v181 = vld [vmem:[%s166 + $0x30] sm:$0xff]
      %v182 = vld [vmem:[%s166 + $0x38] sm:$0xff]
      %v183 = vld [vmem:[%s166 + $0x40] sm:$0xff]
      %v184 = vld [vmem:[%s166 + $0x48] sm:$0xff]
      %v185 = vld [vmem:[%s166 + $0x50] sm:$0xff]
      %v186 = vld [vmem:[%s166 + $0x58] sm:$0xff]
      %v187 = vld [vmem:[%s166 + $0x60] sm:$0xff]
      %v188 = vld [vmem:[%s166 + $0x68] sm:$0xff]
      %v189 = vld [vmem:[%s166 + $0x70] sm:$0xff]
      %v190 = vld [vmem:[%s166 + $0x78] sm:$0xff]
      %v191 = vld [vmem:[%s166 + $0x80] sm:$0xff]
      %v192 = vld [vmem:[%s166 + $0x88] sm:$0xff]
      %v193 = vld [vmem:[%s166 + $0x90] sm:$0xff]
      %v194 = vld [vmem:[%s166 + $0x98] sm:$0xff]
      %v195 = vld [vmem:[%s166 + $0xa0] sm:$0xff]
      %v196 = vld [vmem:[%s166 + $0xa8] sm:$0xff]
      %v197 = vld [vmem:[%s166 + $0xb0] sm:$0xff]
      %v198 = vld [vmem:[%s166 + $0xb8] sm:$0xff]
      %v199 = vld [vmem:[%s166 + $0xc0] sm:$0xff]
      %v200 = vld [vmem:[%s166 + $0xc8] sm:$0xff]
      %v201 = vld [vmem:[%s166 + $0xd0] sm:$0xff]
      %v202 = vld [vmem:[%s166 + $0xd8] sm:$0xff]
      %v203 = vld [vmem:[%s166 + $0xe0] sm:$0xff]
      %v204 = vld [vmem:[%s166 + $0xe8] sm:$0xff]
      %v205 = vld [vmem:[%s166 + $0xf0] sm:$0xff]
      %v206 = vld [vmem:[%s166 + $0xf8] sm:$0xff]
      %v207 = vld [vmem:[%s166 + $0x100] sm:$0xff]
      %v208 = vld [vmem:[%s166 + $0x108] sm:$0xff]
      %v209 = vld [vmem:[%s166 + $0x110] sm:$0xff]
      %v210 = vld [vmem:[%s166 + $0x118] sm:$0xff]
      %v211 = vld [vmem:[%s166 + $0x120] sm:$0xff]
      %v212 = vld [vmem:[%s166 + $0x128] sm:$0xff]
      %v213 = vld [vmem:[%s166 + $0x130] sm:$0xff]
      %v214 = vld [vmem:[%s166 + $0x138] sm:$0xff]
      %v215 = vld [vmem:[%s166 + $0x140] sm:$0xff]
      %v216 = vld [vmem:[%s166 + $0x148] sm:$0xff]
      %v217 = vld [vmem:[%s166 + $0x150] sm:$0xff]
      %v218 = vld [vmem:[%s166 + $0x158] sm:$0xff]
      %v219 = vld [vmem:[%s166 + $0x160] sm:$0xff]
      %v220 = vld [vmem:[%s166 + $0x168] sm:$0xff]
      %v221 = vld [vmem:[%s166 + $0x170] sm:$0xff]
      %v222 = vld [vmem:[%s166 + $0x178] sm:$0xff]
      %v223 = vld [vmem:[%s166 + $0x180] sm:$0xff]
      %v224 = vld [vmem:[%s166 + $0x188] sm:$0xff]
      %v225 = vld [vmem:[%s166 + $0x190] sm:$0xff]
      %v226 = vld [vmem:[%s166 + $0x198] sm:$0xff]
      %v227 = vld [vmem:[%s166 + $0x1a0] sm:$0xff]
      %v228 = vld [vmem:[%s166 + $0x1a8] sm:$0xff]
      %v231 = vunpack.c.l.b16 %v173
      %v232 = vunpack.c.h.b16 %v173
      %v233 = vunpack.c.l.b16 %v174
      %v234 = vunpack.c.h.b16 %v174
      %v235 = vpack.c.b16 %v233, %v231
      %v236 = vpack.c.b16 %v234, %v232
      %v292 = vunpack.c.l.b16 %v175
      %v293 = vunpack.c.h.b16 %v175
      %v294 = vunpack.c.l.b16 %v176
      %v295 = vunpack.c.h.b16 %v176
      %v296 = vunpack.c.l.b16 %v177
      %v297 = vunpack.c.h.b16 %v177
      %v298 = vunpack.c.l.b16 %v178
      %v299 = vunpack.c.h.b16 %v178
      %v300 = vunpack.c.l.b16 %v179
      %v301 = vunpack.c.h.b16 %v179
      %v302 = vunpack.c.l.b16 %v180
      %v303 = vunpack.c.h.b16 %v180
      %v304 = vunpack.c.l.b16 %v181
      %v305 = vunpack.c.h.b16 %v181
      %v306 = vunpack.c.l.b16 %v182
      %v307 = vunpack.c.h.b16 %v182
      %v308 = vunpack.c.l.b16 %v183
      %v309 = vunpack.c.h.b16 %v183
      %v310 = vunpack.c.l.b16 %v184
      %v311 = vunpack.c.h.b16 %v184
      %v312 = vunpack.c.l.b16 %v185
      %v313 = vunpack.c.h.b16 %v185
      %v314 = vunpack.c.l.b16 %v186
      %v315 = vunpack.c.h.b16 %v186
      %v316 = vunpack.c.l.b16 %v187
      %v317 = vunpack.c.h.b16 %v187
      %v318 = vunpack.c.l.b16 %v188
      %v319 = vunpack.c.h.b16 %v188
      %v320 = vunpack.c.l.b16 %v189
      %v321 = vunpack.c.h.b16 %v189
      %v322 = vunpack.c.l.b16 %v190
      %v323 = vunpack.c.h.b16 %v190
      %v324 = vunpack.c.l.b16 %v191
      %v325 = vunpack.c.h.b16 %v191
      %v326 = vunpack.c.l.b16 %v192
      %v327 = vunpack.c.h.b16 %v192
      %v328 = vunpack.c.l.b16 %v193
      %v329 = vunpack.c.h.b16 %v193
      %v330 = vunpack.c.l.b16 %v194
      %v331 = vunpack.c.h.b16 %v194
      %v332 = vunpack.c.l.b16 %v195
      %v333 = vunpack.c.h.b16 %v195
      %v334 = vunpack.c.l.b16 %v196
      %v335 = vunpack.c.h.b16 %v196
      %v336 = vunpack.c.l.b16 %v197
      %v337 = vunpack.c.h.b16 %v197
      %v338 = vunpack.c.l.b16 %v198
      %v339 = vunpack.c.h.b16 %v198
      %v340 = vunpack.c.l.b16 %v199
      %v341 = vunpack.c.h.b16 %v199
      %v342 = vunpack.c.l.b16 %v200
      %v343 = vunpack.c.h.b16 %v200
      %v344 = vunpack.c.l.b16 %v201
      %v345 = vunpack.c.h.b16 %v201
      %v346 = vunpack.c.l.b16 %v202
      %v347 = vunpack.c.h.b16 %v202
      %v348 = vunpack.c.l.b16 %v203
      %v349 = vunpack.c.h.b16 %v203
      %v350 = vunpack.c.l.b16 %v204
      %v351 = vunpack.c.h.b16 %v204
      %v352 = vunpack.c.l.b16 %v205
      %v353 = vunpack.c.h.b16 %v205
      %v354 = vunpack.c.l.b16 %v206
      %v355 = vunpack.c.h.b16 %v206
      %v356 = vunpack.c.l.b16 %v207
      %v357 = vunpack.c.h.b16 %v207
      %v358 = vunpack.c.l.b16 %v208
      %v359 = vunpack.c.h.b16 %v208
      %v360 = vunpack.c.l.b16 %v209
      %v361 = vunpack.c.h.b16 %v209
      %v362 = vunpack.c.l.b16 %v210
      %v363 = vunpack.c.h.b16 %v210
      %v364 = vunpack.c.l.b16 %v211
      %v365 = vunpack.c.h.b16 %v211
      %v366 = vunpack.c.l.b16 %v212
      %v367 = vunpack.c.h.b16 %v212
      %v368 = vunpack.c.l.b16 %v213
      %v369 = vunpack.c.h.b16 %v213
      %v370 = vunpack.c.l.b16 %v214
      %v371 = vunpack.c.h.b16 %v214
      %v372 = vunpack.c.l.b16 %v215
      %v373 = vunpack.c.h.b16 %v215
      %v374 = vunpack.c.l.b16 %v216
      %v375 = vunpack.c.h.b16 %v216
      %v376 = vunpack.c.l.b16 %v217
      %v377 = vunpack.c.h.b16 %v217
      %v378 = vunpack.c.l.b16 %v218
      %v379 = vunpack.c.h.b16 %v218
      %v380 = vunpack.c.l.b16 %v219
      %v381 = vunpack.c.h.b16 %v219
      %v382 = vunpack.c.l.b16 %v220
      %v383 = vunpack.c.h.b16 %v220
      %v384 = vunpack.c.l.b16 %v221
      %v385 = vunpack.c.h.b16 %v221
      %v386 = vunpack.c.l.b16 %v222
      %v387 = vunpack.c.h.b16 %v222
      %v388 = vunpack.c.l.b16 %v223
      %v389 = vunpack.c.h.b16 %v223
      %v390 = vunpack.c.l.b16 %v224
      %v391 = vunpack.c.h.b16 %v224
      %v392 = vunpack.c.l.b16 %v225
      %v393 = vunpack.c.h.b16 %v225
      %v394 = vunpack.c.l.b16 %v226
      %v395 = vunpack.c.h.b16 %v226
      %v396 = vunpack.c.l.b16 %v227
      %v397 = vunpack.c.h.b16 %v227
      %v398 = vunpack.c.l.b16 %v228
      %v399 = vunpack.c.h.b16 %v228
      %v400 = vpack.c.b16 %v296, %v292
      %v401 = vpack.c.b16 %v297, %v293
      %v402 = vpack.c.b16 %v298, %v294
      %v403 = vpack.c.b16 %v299, %v295
      %v404 = vpack.c.b16 %v304, %v300
      %v405 = vpack.c.b16 %v305, %v301
      %v406 = vpack.c.b16 %v306, %v302
      %v407 = vpack.c.b16 %v307, %v303
      %v408 = vpack.c.b16 %v312, %v308
      %v409 = vpack.c.b16 %v313, %v309
      %v410 = vpack.c.b16 %v314, %v310
      %v411 = vpack.c.b16 %v315, %v311
      %v412 = vpack.c.b16 %v320, %v316
      %v413 = vpack.c.b16 %v321, %v317
      %v414 = vpack.c.b16 %v322, %v318
      %v415 = vpack.c.b16 %v323, %v319
      %v416 = vpack.c.b16 %v328, %v324
      %v417 = vpack.c.b16 %v329, %v325
      %v418 = vpack.c.b16 %v330, %v326
      %v419 = vpack.c.b16 %v331, %v327
      %v420 = vpack.c.b16 %v336, %v332
      %v421 = vpack.c.b16 %v337, %v333
      %v422 = vpack.c.b16 %v338, %v334
      %v423 = vpack.c.b16 %v339, %v335
      %v424 = vpack.c.b16 %v344, %v340
      %v425 = vpack.c.b16 %v345, %v341
      %v426 = vpack.c.b16 %v346, %v342
      %v427 = vpack.c.b16 %v347, %v343
      %v428 = vpack.c.b16 %v352, %v348
      %v429 = vpack.c.b16 %v353, %v349
      %v430 = vpack.c.b16 %v354, %v350
      %v431 = vpack.c.b16 %v355, %v351
      %v432 = vpack.c.b16 %v360, %v356
      %v433 = vpack.c.b16 %v361, %v357
      %v434 = vpack.c.b16 %v362, %v358
      %v435 = vpack.c.b16 %v363, %v359
      %v436 = vpack.c.b16 %v368, %v364
      %v437 = vpack.c.b16 %v369, %v365
      %v438 = vpack.c.b16 %v370, %v366
      %v439 = vpack.c.b16 %v371, %v367
      %v440 = vpack.c.b16 %v376, %v372
      %v441 = vpack.c.b16 %v377, %v373
      %v442 = vpack.c.b16 %v378, %v374
      %v443 = vpack.c.b16 %v379, %v375
      %v444 = vpack.c.b16 %v384, %v380
      %v445 = vpack.c.b16 %v385, %v381
      %v446 = vpack.c.b16 %v386, %v382
      %v447 = vpack.c.b16 %v387, %v383
      %v448 = vpack.c.b16 %v392, %v388
      %v449 = vpack.c.b16 %v393, %v389
      %v450 = vpack.c.b16 %v394, %v390
      %v451 = vpack.c.b16 %v395, %v391
      %v452 = vpack.c.b16 %v396, %v396
      %v453 = vpack.c.b16 %v397, %v397
      %v454 = vpack.c.b16 %v398, %v398
      %v455 = vpack.c.b16 %v399, %v399
      %vm508 = vcmask 719872
      %v510 = vsel %vm508, %v236, 0
      %vm512 = vcmask 1043456
      %v514 = vsel %vm512, %v452, 0
      %v517 = vsel %vm512, %v453, 0
      %v520 = vsel %vm512, %v454, 0
      %v523 = vsel %vm512, %v455, 0
      %525 = vmatprep.subr.bf16.mxu0 %v401
      %526 = vmatpush1.bf16.msra.mxu0 %v400
      %527 = vmatprep.subr.bf16.mxu0 %v405
      %528 = vmatpush1.bf16.msra.mxu0 %v404
      %529 = vmatprep.subr.bf16.mxu0 %v409
      %530 = vmatpush1.bf16.msra.mxu0 %v408
      %531 = vmatprep.subr.bf16.mxu0 %v413
      %532 = vmatpush1.bf16.msra.mxu0 %v412
      %533 = vmatprep.subr.bf16.mxu0 %v417
      %534 = vmatpush1.bf16.msra.mxu0 %v416
      %535 = vmatprep.subr.bf16.mxu0 %v421
      %536 = vmatpush1.bf16.msra.mxu0 %v420
      %537 = vmatprep.subr.bf16.mxu0 %v425
      %538 = vmatpush1.bf16.msra.mxu0 %v424
      %539 = vmatprep.subr.bf16.mxu0 %v429
      %540 = vmatpush1.bf16.msra.mxu0 %v428
      %541 = vmatprep.subr.bf16.mxu0 %v433
      %542 = vmatpush1.bf16.msra.mxu0 %v432
      %543 = vmatprep.subr.bf16.mxu0 %v437
      %544 = vmatpush1.bf16.msra.mxu0 %v436
      %545 = vmatprep.subr.bf16.mxu0 %v441
      %546 = vmatpush1.bf16.msra.mxu0 %v440
      %547 = vmatprep.subr.bf16.mxu0 %v445
      %548 = vmatpush1.bf16.msra.mxu0 %v444
      %549 = vmatprep.subr.bf16.mxu0 %v449
      %550 = vmatpush1.bf16.msra.mxu0 %v448
      %551 = vmatprep.subr.bf16.mxu0 %v517
      %552 = vmatpush1.bf16.msra.mxu0 %v514
      %553 = vmatprep.subr.bf16.mxu0 0
      %554 = vmatpush1.bf16.msra.mxu0 0
      %555 = vmatprep.subr.bf16.mxu0 0
      %556 = vmatpush1.bf16.msra.mxu0 0
      %557 = vmatprep.mubr.bf16.mxu0 %v510
      %558 = vmatmul.mubr.bf16.gmra.mrb[0].mxu0 %v235
      %v559 = vpop.f32.mrb[0].mxu0
      %v560 = vadd.f32 0.0, %v559
      %v561 = vpop.f32.mrb[0].mxu0
      %v562 = vadd.f32 0.0, %v561
      %v563 = vpop.f32.mrb[0].mxu0
      %v564 = vadd.f32 0.0, %v563
      %v565 = vpop.f32.mrb[0].mxu0
      %v566 = vadd.f32 0.0, %v565
      %567 = vdwg.mxu0
      %568 = vmatprep.subr.bf16.mxu0 %v403
      %569 = vmatpush1.bf16.msra.mxu0 %v402
      %570 = vmatprep.subr.bf16.mxu0 %v407
      %571 = vmatpush1.bf16.msra.mxu0 %v406
      %572 = vmatprep.subr.bf16.mxu0 %v411
      %573 = vmatpush1.bf16.msra.mxu0 %v410
      %574 = vmatprep.subr.bf16.mxu0 %v415
      %575 = vmatpush1.bf16.msra.mxu0 %v414
      %576 = vmatprep.subr.bf16.mxu0 %v419
      %577 = vmatpush1.bf16.msra.mxu0 %v418
      %578 = vmatprep.subr.bf16.mxu0 %v423
      %579 = vmatpush1.bf16.msra.mxu0 %v422
      %580 = vmatprep.subr.bf16.mxu0 %v427
      %581 = vmatpush1.bf16.msra.mxu0 %v426
      %582 = vmatprep.subr.bf16.mxu0 %v431
      %583 = vmatpush1.bf16.msra.mxu0 %v430
      %584 = vmatprep.subr.bf16.mxu0 %v435
      %585 = vmatpush1.bf16.msra.mxu0 %v434
      %586 = vmatprep.subr.bf16.mxu0 %v439
      %587 = vmatpush1.bf16.msra.mxu0 %v438
      %588 = vmatprep.subr.bf16.mxu0 %v443
      %589 = vmatpush1.bf16.msra.mxu0 %v442
      %590 = vmatprep.subr.bf16.mxu0 %v447
      %591 = vmatpush1.bf16.msra.mxu0 %v446
      %592 = vmatprep.subr.bf16.mxu0 %v451
      %593 = vmatpush1.bf16.msra.mxu0 %v450
      %594 = vmatprep.subr.bf16.mxu0 %v523
      %595 = vmatpush1.bf16.msra.mxu0 %v520
      %596 = vmatprep.subr.bf16.mxu0 0
      %597 = vmatpush1.bf16.msra.mxu0 0
      %598 = vmatprep.subr.bf16.mxu0 0
      %599 = vmatpush1.bf16.msra.mxu0 0
      %600 = vmatprep.mubr.bf16.mxu0 %v510
      %601 = vmatmul.mubr.bf16.gmra.mrb[0].mxu0 %v235
      %v602 = vpop.f32.mrb[0].mxu0
      %v603 = vadd.f32 0.0, %v602
      %v604 = vpop.f32.mrb[0].mxu0
      %v605 = vadd.f32 0.0, %v604
      %v606 = vpop.f32.mrb[0].mxu0
      %v607 = vadd.f32 0.0, %v606
      %v608 = vpop.f32.mrb[0].mxu0
      %v609 = vadd.f32 0.0, %v608
      %610 = vdwg.mxu0
      %v611 = vadd.f32 %v560, %v562
      %v612 = vadd.f32 %v611, %v603
      %v613 = vadd.f32 %v612, %v605
      %614 = vadd.xlane.f32.xlu0 %v613
      %v615 = vpop.xlane.xlu0 %614
      %v616 = vadd.f32 %v564, %v566
      %v617 = vadd.f32 %v616, %v607
      %v618 = vadd.f32 %v617, %v609
      %619 = vadd.xlane.f32.xlu0 %v618
      %v620 = vpop.xlane.xlu0 %619
      %v621 = vrcp.pop 512.0
      %v622 = vmul.f32 %v615, %v621
      %v623 = vmul.f32 %v620, %v621
      %v624 = vmul.f32 %v560, %v560
      %v625 = vmul.f32 %v562, %v562
      %v626 = vmul.f32 %v603, %v603
      %v627 = vmul.f32 %v605, %v605
      %v628 = vmul.f32 %v564, %v564
      %v629 = vmul.f32 %v566, %v566
      %v630 = vmul.f32 %v607, %v607
      %v631 = vmul.f32 %v609, %v609
      %v632 = vadd.f32 %v624, %v625
      %v633 = vadd.f32 %v632, %v626
      %v634 = vadd.f32 %v633, %v627
      %635 = vadd.xlane.f32.xlu0 %v634
      %v636 = vpop.xlane.xlu0 %635
      %v637 = vadd.f32 %v628, %v629
      %v638 = vadd.f32 %v637, %v630
      %v639 = vadd.f32 %v638, %v631
      %640 = vadd.xlane.f32.xlu0 %v639
      %v641 = vpop.xlane.xlu0 %640
      %v642 = vmul.f32 %v636, %v621
      %v643 = vmul.f32 %v641, %v621
      %v644 = vmul.f32 %v622, %v622
      %v645 = vmul.f32 %v623, %v623
      %v646 = vsub.f32 %v642, %v644
      %v647 = vsub.f32 %v643, %v645
      %v648 = vadd.f32 %v646, 1e-05
      %v649 = vadd.f32 %v647, 1e-05
      %v650 = vrsqrt.pop %v648
      %v651 = vrsqrt.pop %v649
      %v652 = vsub.f32 0.0, %v622
      %v653 = vsub.f32 0.0, %v623
      %v654 = vmul.f32 %v652, %v650
      %v655 = vmul.f32 %v653, %v651
      %v656 = vmul.f32 %v560, %v650
      %v657 = vmul.f32 %v562, %v650
      %v658 = vmul.f32 %v603, %v650
      %v659 = vmul.f32 %v605, %v650
      %v660 = vmul.f32 %v564, %v651
      %v661 = vmul.f32 %v566, %v651
      %v662 = vmul.f32 %v607, %v651
      %v663 = vmul.f32 %v609, %v651
      %v664 = vadd.f32 %v656, %v654
      %v665 = vadd.f32 %v657, %v654
      %v666 = vadd.f32 %v658, %v654
      %v667 = vadd.f32 %v659, %v654
      %v668 = vadd.f32 %v660, %v655
      %v669 = vadd.f32 %v661, %v655
      %v670 = vadd.f32 %v662, %v655
      %v671 = vadd.f32 %v663, %v655
      %s672 = sld [smem:[#allocation2]]
      %vm673 = vcmp.ge.f32.partialorder %v664, 0.0
      %vm674 = vcmp.ge.f32.partialorder %v665, 0.0
      %vm675 = vcmp.ge.f32.partialorder %v666, 0.0
      %vm676 = vcmp.ge.f32.partialorder %v667, 0.0
      %vm677 = vcmp.ge.f32.partialorder %v668, 0.0
      %vm678 = vcmp.ge.f32.partialorder %v669, 0.0
      %vm679 = vcmp.ge.f32.partialorder %v670, 0.0
      %vm680 = vcmp.ge.f32.partialorder %v671, 0.0
      %v681 = vstv %s672
      %v682 = vmul.f32 %v681, %v664
      %v683 = vmul.f32 %v681, %v665
      %v684 = vmul.f32 %v681, %v666
      %v685 = vmul.f32 %v681, %v667
      %v686 = vmul.f32 %v681, %v668
      %v687 = vmul.f32 %v681, %v669
      %v688 = vmul.f32 %v681, %v670
      %v689 = vmul.f32 %v681, %v671
      %v690 = vsel %vm673, %v664, %v682
      %v691 = vsel %vm674, %v665, %v683
      %v692 = vsel %vm675, %v666, %v684
      %v693 = vsel %vm676, %v667, %v685
      %v694 = vsel %vm677, %v668, %v686
      %v695 = vsel %vm678, %v669, %v687
      %v696 = vsel %vm679, %v670, %v688
      %v697 = vsel %vm680, %v671, %v689
      %v698 = vpack.c.bf16 %v694, %v690
      %v699 = vpack.c.bf16 %v695, %v691
      %v700 = vpack.c.bf16 %v696, %v692
      %v701 = vpack.c.bf16 %v697, %v693
      %v706 = vunpack.c.l.b16 %v698
      %v707 = vunpack.c.l.b16 %v699
      %v708 = vunpack.c.l.b16 %v700
      %v709 = vunpack.c.l.b16 %v701
      %v710 = vunpack.c.h.b16 %v698
      %v711 = vunpack.c.h.b16 %v699
      %v712 = vunpack.c.h.b16 %v700
      %v713 = vunpack.c.h.b16 %v701
      %v714 = vpack.c.b16 %v707, %v706
      %v715 = vpack.c.b16 %v709, %v708
      %v716 = vpack.c.b16 %v711, %v710
      %v717 = vpack.c.b16 %v713, %v712
      %722 = vst [vmem:[%s171] sm:$0xff] %v714
      %723 = vst [vmem:[%s171 + $0x8] sm:$0xff] %v715
      %724 = vst [vmem:[%s171 + $0x10] sm:$0xff] %v716
      %725 = vst [vmem:[%s171 + $0x18] sm:$0xff] %v717
      %p726 = scmp.lt.s32.totalorder %s15, 1
      %s727 = scalar_select %p726, %s15, 1
      %s728 = smul.addr %s727, 8
      %s729 = smul.addr %s728, 4
      %s730 = scalar_lea.vmem %s3, %s729
      // Predicated region
      $region33: #{unet_forward.7} parent=31 // pred_check
        %p731 = pneg %p101
      $region34: #{unet_forward.7} parent=31 // pred_check_branch
        %733 = sbr.rel (%p731) target = $region36
      $region35: #{unet_forward.7} parent=31 // pred_region
        _
      $region36: #{unet_forward.7} parent=31 // pred_fallthru
        _
    $region32: #{unet_forward.7} parent=5 // pred_fallthru
      _
    %p734 = scmp.le.s32.totalorder 2, %s10
    // Predicated region
    $region37: #{unet_forward.7} parent=5 // pred_check
      %p735 = pneg %p734
    $region38: #{unet_forward.7} parent=5 // pred_check_branch
      %737 = sbr.rel (%p735) target = $region40
    $region39: #{unet_forward.7} parent=5 // pred_region
      %s738 = ssub.s32 %s10, 2
      // Predicated region
      $region41: #{unet_forward.7} parent=39 // pred_check
        %p739 = pneg %p107
      $region42: #{unet_forward.7} parent=39 // pred_check_branch
        %741 = sbr.rel (%p739) target = $region44
      $region43: #{unet_forward.7} parent=39 // pred_region
        %p742 = scmp.lt.s32.totalorder %s16, 1
        %s743 = scalar_select %p742, %s16, 1
        %s744 = smul.addr %s743, 8
        %s745 = smul.addr %s744, 4
        %s746 = scalar_lea.vmem %s3, %s745
      $region44: #{unet_forward.7} parent=39 // pred_fallthru
        _
    $region40: #{unet_forward.7} parent=5 // pred_fallthru
      _
  $region6: #{unet_forward.7} parent=0 // loop_footer
    %s14 = sadd.s32 1, %s10
  $region7: #{unet_forward.7} parent=0 // loop_footer_branch
    %9 = sbr.rel target = $region3
  $region8: #{unet_forward.7} parent=0 // loop_exit
    _

// kernel: unet_forward.8
$region0: #{unet_forward.8}
  #allocation0 [shape = 'u32[]', space=smem, size = 0x4, offset = 0x4, fixed_abs, tag = 'smem constant byte address 0x4 - core index']
  #allocation1 [shape = 'u32[144,128]{1,0:T(1,128)}', space=vmem, size = 0x12000, scoped, tag = 'internal scratch']
  #allocation2 [shape = 'f32[1]{0:T(128)S(6)}', space=smem, size = 0x200, scoped, tag = 'scoped memory for unet_forward.8']
  %s0 = inlined_call_operand.<no memory space> [shape: f32[1], index: 0, kind: input, shape index: {}]
  %s1 = inlined_call_operand.vmem [shape: bf16[2,192,512], index: 1, kind: input, shape index: {}]
  %s2 = inlined_call_operand.vmem [shape: bf16[32,192], index: 2, kind: input, shape index: {}]
  %s3 = inlined_call_operand.vmem [shape: bf16[2,32,512], index: 3, kind: output, shape index: {}]
  %s4 = sld [smem:[#allocation0]]
  $region45: #{unet_forward.8} parent=0
    _
  %s6 = ssub.s32 1, %s4
  %s7 = scalar_select 0, %s6, %s4
  %8 = sst [smem:[#allocation2]] %s0
  loop: start=0, step=1, limit=4
  $region2: #{unet_forward.8} parent=0 // loop_pre_header
    _
  $region3: #{unet_forward.8} parent=0 // loop_header
    %s10 = sphi 0, %s14
    %p11 = scmp.ge.s32.totalorder %s10, 4
    %s18 = sphi 0, %s18
    %s20 = sphi 0, %s18
    %s21 = sphi 0, %s20
    %s35 = sphi 0, %s21
    %s41 = sphi 0, %s43
    %s44 = sphi 0, %s41
    %s45 = sphi 0, %s44
    %s61 = sphi 0, %s45
    %s65 = sphi 0, %s65
    %s67 = sphi 0, %s65
    %s68 = sphi 0, %s67
    %s82 = sphi 0, %s68
    %s88 = sphi 0, %s90
    %s91 = sphi 0, %s88
    %s92 = sphi 0, %s91
    %s108 = sphi 0, %s92
  $region4: #{unet_forward.8} parent=0 // loop_header_branch
    %13 = sbr.rel (%p11) target = $region8
  $region5: #{unet_forward.8} parent=0 // loop_body
    %s15 = ssub.s32 %s10, 1
    %s16 = ssub.s32 %s10, 2
    %s17 = sadd.s32 %s10, 1
    %s19 = sadd.s32 %s18, 1
    %p22 = scmp.eq.s32.totalorder %s10, 1
    %p23 = scmp.ne.s32.totalorder %s18, %s20
    %p24 = scmp.eq.s32.totalorder %s10, 0
    %p25 = por %p23, %p24
    %p26 = scmp.ne.s32.totalorder %s18, %s20
    %p27 = scmp.eq.s32.totalorder %s15, 1
    %p28 = por %p26, %p27
    %p29 = scmp.ne.s32.totalorder %s20, %s21
    %p30 = scmp.eq.s32.totalorder %s15, 0
    %p31 = por %p29, %p30
    %p32 = scmp.ne.s32.totalorder %s20, %s21
    %p33 = scmp.eq.s32.totalorder %s16, 1
    %p34 = por %p32, %p33
    %p36 = scmp.ne.s32.totalorder %s21, %s35
    %p37 = scmp.eq.s32.totalorder %s16, 0
    %p38 = por %p36, %p37
    %s39 = ssub.s32 %s10, %s17
    %p40 = scmp.eq.s32.totalorder %s39, 0
    %s42 = sadd.s32 %s41, 1
    %s43 = scalar_select %p40, %s41, %s42
    %p46 = pneg %p40
    %p47 = scmp.eq.s32.totalorder %s10, 1
    %p48 = por %p46, %p47
    %p49 = scmp.ne.s32.totalorder %s41, %s44
    %p50 = scmp.eq.s32.totalorder %s10, 0
    %p51 = por %p49, %p50
    %p52 = scmp.ne.s32.totalorder %s41, %s44
    %p53 = scmp.eq.s32.totalorder %s15, 1
    %p54 = por %p52, %p53
    %p55 = scmp.ne.s32.totalorder %s44, %s45
    %p56 = scmp.eq.s32.totalorder %s15, 0
    %p57 = por %p55, %p56
    %p58 = scmp.ne.s32.totalorder %s44, %s45
    %p59 = scmp.eq.s32.totalorder %s16, 1
    %p60 = por %p58, %p59
    %p62 = scmp.ne.s32.totalorder %s45, %s61
    %p63 = scmp.eq.s32.totalorder %s16, 0
    %p64 = por %p62, %p63
    %s66 = sadd.s32 %s65, 1
    %p69 = scmp.eq.s32.totalorder %s10, 1
    %p70 = scmp.ne.s32.totalorder %s65, %s67
    %p71 = scmp.eq.s32.totalorder %s10, 0
    %p72 = por %p70, %p71
    %p73 = scmp.ne.s32.totalorder %s65, %s67
    %p74 = scmp.eq.s32.totalorder %s15, 1
    %p75 = por %p73, %p74
    %p76 = scmp.ne.s32.totalorder %s67, %s68
    %p77 = scmp.eq.s32.totalorder %s15, 0
    %p78 = por %p76, %p77
    %p79 = scmp.ne.s32.totalorder %s67, %s68
    %p80 = scmp.eq.s32.totalorder %s16, 1
    %p81 = por %p79, %p80
    %p83 = scmp.ne.s32.totalorder %s68, %s82
    %p84 = scmp.eq.s32.totalorder %s16, 0
    %p85 = por %p83, %p84
    %s86 = ssub.s32 %s10, %s17
    %p87 = scmp.eq.s32.totalorder %s86, 0
    %s89 = sadd.s32 %s88, 1
    %s90 = scalar_select %p87, %s88, %s89
    %p93 = pneg %p87
    %p94 = scmp.eq.s32.totalorder %s10, 1
    %p95 = por %p93, %p94
    %p96 = scmp.ne.s32.totalorder %s88, %s91
    %p97 = scmp.eq.s32.totalorder %s10, 0
    %p98 = por %p96, %p97
    %p99 = scmp.ne.s32.totalorder %s88, %s91
    %p100 = scmp.eq.s32.totalorder %s15, 1
    %p101 = por %p99, %p100
    %p102 = scmp.ne.s32.totalorder %s91, %s92
    %p103 = scmp.eq.s32.totalorder %s15, 0
    %p104 = por %p102, %p103
    %p105 = scmp.ne.s32.totalorder %s91, %s92
    %p106 = scmp.eq.s32.totalorder %s16, 1
    %p107 = por %p105, %p106
    %p109 = scmp.ne.s32.totalorder %s92, %s108
    %p110 = scmp.eq.s32.totalorder %s16, 0
    %p111 = por %p109, %p110
    %p112 = scmp.le.s32.totalorder 1, %s10
    %p113 = scmp.lt.s32.totalorder %s10, 3
    %p114 = pnand %p112, %p113
    %p115 = pneg %p114
    // Predicated region
    $region9: #{unet_forward.8} parent=5 // pred_check
      _
    $region10: #{unet_forward.8} parent=5 // pred_check_branch
      %117 = sbr.rel (%p114) target = $region12
    $region11: #{unet_forward.8} parent=5 // pred_region
      %s118 = ssub.s32 %s10, 1
      // Predicated region
      $region13: #{unet_forward.8} parent=11 // pred_check
        %p119 = pneg %p31
      $region14: #{unet_forward.8} parent=11 // pred_check_branch
        %121 = sbr.rel (%p119) target = $region16
      $region15: #{unet_forward.8} parent=11 // pred_region
        _
      $region16: #{unet_forward.8} parent=11 // pred_fallthru
        _
      // Predicated region
      $region17: #{unet_forward.8} parent=11 // pred_check
        %p122 = pneg %p78
      $region18: #{unet_forward.8} parent=11 // pred_check_branch
        %124 = sbr.rel (%p122) target = $region20
      $region19: #{unet_forward.8} parent=11 // pred_region
        _
      $region20: #{unet_forward.8} parent=11 // pred_fallthru
        _
    $region12: #{unet_forward.8} parent=5 // pred_fallthru
      _
    %p125 = scmp.lt.s32.totalorder %s10, 2
    // Predicated region
    $region21: #{unet_forward.8} parent=5 // pred_check
      %p126 = pneg %p125
    $region22: #{unet_forward.8} parent=5 // pred_check_branch
      %128 = sbr.rel (%p126) target = $region24
    $region23: #{unet_forward.8} parent=5 // pred_region
      // Predicated region
      $region25: #{unet_forward.8} parent=23 // pred_check
        %p129 = pneg %p51
      $region26: #{unet_forward.8} parent=23 // pred_check_branch
        %131 = sbr.rel (%p129) target = $region28
      $region27: #{unet_forward.8} parent=23 // pred_region
        %p132 = scmp.lt.s32.totalorder %s10, 1
        %s133 = scalar_select %p132, %s10, 1
        %s134 = smul.addr %s133, 96
        %s135 = smul.addr %s134, 4
        %s136 = scalar_lea.vmem %s1, %s135
      $region28: #{unet_forward.8} parent=23 // pred_fallthru
        _
    $region24: #{unet_forward.8} parent=5 // pred_fallthru
      _
    %p137 = scmp.le.s32.totalorder 1, %s10
    %p138 = scmp.lt.s32.totalorder %s10, 3
    %p139 = pnand %p137, %p138
    %p140 = pneg %p139
    // Predicated region
    $region29: #{unet_forward.8} parent=5 // pred_check
      _
    $region30: #{unet_forward.8} parent=5 // pred_check_branch
      %142 = sbr.rel (%p139) target = $region32
    $region31: #{unet_forward.8} parent=5 // pred_region
      %s143 = ssub.s32 %s10, 1
      %p144 = pneg %p31
      %p145 = pneg %p28
      %p146 = scmp.lt.s32.totalorder %s15, 1
      %s147 = scalar_select %p146, %s15, 1
      %s148 = smul.addr %s147, 96
      %s149 = smul.addr %s148, 4
      %s150 = scalar_lea.vmem %s1, %s149
      %p151 = pneg %p57
      %p152 = pneg %p54
      %p153 = pneg %p78
      %p154 = pneg %p75
      %p155 = pneg %p104
      %p156 = pneg %p101
      %p157 = scmp.lt.s32.totalorder %s15, 1
      %s158 = scalar_select %p157, %s15, 1
      %s159 = smul.addr %s158, 16
      %s160 = smul.addr %s159, 4
      %s161 = scalar_lea.vmem %s3, %s160
      %p162 = scmp.lt.s32.totalorder %s15, 1
      %s163 = scalar_select %p162, %s15, 1
      %s164 = smul.addr %s163, 96
      %s165 = smul.addr %s164, 4
      %s166 = scalar_lea.vmem %s1, %s165
      %p167 = scmp.lt.s32.totalorder %s15, 1
      %s168 = scalar_select %p167, %s15, 1
      %s169 = smul.addr %s168, 16
      %s170 = smul.addr %s169, 4
      %s171 = scalar_lea.vmem %s3, %s170
      %v173 = vld [vmem:[%s2] sm:$0xff]
      %v174 = vld [vmem:[%s2 + $0x8] sm:$0xff]
      %v175 = vld [vmem:[%s2 + $0x10] sm:$0xff]
      %v176 = vld [vmem:[%s2 + $0x18] sm:$0xff]
      %v177 = vld [vmem:[%s166] sm:$0xff]
      %v178 = vld [vmem:[%s166 + $0x8] sm:$0xff]
      %v179 = vld [vmem:[%s166 + $0x10] sm:$0xff]
      %v180 = vld [vmem:[%s166 + $0x18] sm:$0xff]
      %v181 = vld [vmem:[%s166 + $0x20] sm:$0xff]
      %v182 = vld [vmem:[%s166 + $0x28] sm:$0xff]
      %v183 = vld [vmem:[%s166 + $0x30] sm:$0xff]
      %v184 = vld [vmem:[%s166 + $0x38] sm:$0xff]
      %v185 = vld [vmem:[%s166 + $0x40] sm:$0xff]
      %v186 = vld [vmem:[%s166 + $0x48] sm:$0xff]
      %v187 = vld [vmem:[%s166 + $0x50] sm:$0xff]
      %v188 = vld [vmem:[%s166 + $0x58] sm:$0xff]
      %v189 = vld [vmem:[%s166 + $0x60] sm:$0xff]
      %v190 = vld [vmem:[%s166 + $0x68] sm:$0xff]
      %v191 = vld [vmem:[%s166 + $0x70] sm:$0xff]
      %v192 = vld [vmem:[%s166 + $0x78] sm:$0xff]
      %v193 = vld [vmem:[%s166 + $0x80] sm:$0xff]
      %v194 = vld [vmem:[%s166 + $0x88] sm:$0xff]
      %v195 = vld [vmem:[%s166 + $0x90] sm:$0xff]
      %v196 = vld [vmem:[%s166 + $0x98] sm:$0xff]
      %v197 = vld [vmem:[%s166 + $0xa0] sm:$0xff]
      %v198 = vld [vmem:[%s166 + $0xa8] sm:$0xff]
      %v199 = vld [vmem:[%s166 + $0xb0] sm:$0xff]
      %v200 = vld [vmem:[%s166 + $0xb8] sm:$0xff]
      %v201 = vld [vmem:[%s166 + $0xc0] sm:$0xff]
      %v202 = vld [vmem:[%s166 + $0xc8] sm:$0xff]
      %v203 = vld [vmem:[%s166 + $0xd0] sm:$0xff]
      %v204 = vld [vmem:[%s166 + $0xd8] sm:$0xff]
      %v205 = vld [vmem:[%s166 + $0xe0] sm:$0xff]
      %v206 = vld [vmem:[%s166 + $0xe8] sm:$0xff]
      %v207 = vld [vmem:[%s166 + $0xf0] sm:$0xff]
      %v208 = vld [vmem:[%s166 + $0xf8] sm:$0xff]
      %v209 = vld [vmem:[%s166 + $0x100] sm:$0xff]
      %v210 = vld [vmem:[%s166 + $0x108] sm:$0xff]
      %v211 = vld [vmem:[%s166 + $0x110] sm:$0xff]
      %v212 = vld [vmem:[%s166 + $0x118] sm:$0xff]
      %v213 = vld [vmem:[%s166 + $0x120] sm:$0xff]
      %v214 = vld [vmem:[%s166 + $0x128] sm:$0xff]
      %v215 = vld [vmem:[%s166 + $0x130] sm:$0xff]
      %v216 = vld [vmem:[%s166 + $0x138] sm:$0xff]
      %v217 = vld [vmem:[%s166 + $0x140] sm:$0xff]
      %v218 = vld [vmem:[%s166 + $0x148] sm:$0xff]
      %v219 = vld [vmem:[%s166 + $0x150] sm:$0xff]
      %v220 = vld [vmem:[%s166 + $0x158] sm:$0xff]
      %v221 = vld [vmem:[%s166 + $0x160] sm:$0xff]
      %v222 = vld [vmem:[%s166 + $0x168] sm:$0xff]
      %v223 = vld [vmem:[%s166 + $0x170] sm:$0xff]
      %v224 = vld [vmem:[%s166 + $0x178] sm:$0xff]
      %v229 = vunpack.c.l.b16 %v173
      %v230 = vunpack.c.h.b16 %v173
      %v231 = vunpack.c.l.b16 %v174
      %v232 = vunpack.c.h.b16 %v174
      %v233 = vunpack.c.l.b16 %v175
      %v234 = vunpack.c.h.b16 %v175
      %v235 = vunpack.c.l.b16 %v176
      %v236 = vunpack.c.h.b16 %v176
      %v237 = vpack.c.b16 %v231, %v229
      %v238 = vpack.c.b16 %v232, %v230
      %v239 = vpack.c.b16 %v235, %v233
      %v240 = vpack.c.b16 %v236, %v234
      %v291 = vunpack.c.l.b16 %v177
      %v292 = vunpack.c.h.b16 %v177
      %v293 = vunpack.c.l.b16 %v178
      %v294 = vunpack.c.h.b16 %v178
      %v295 = vunpack.c.l.b16 %v179
      %v296 = vunpack.c.h.b16 %v179
      %v297 = vunpack.c.l.b16 %v180
      %v298 = vunpack.c.h.b16 %v180
      %v299 = vunpack.c.l.b16 %v181
      %v300 = vunpack.c.h.b16 %v181
      %v301 = vunpack.c.l.b16 %v182
      %v302 = vunpack.c.h.b16 %v182
      %v303 = vunpack.c.l.b16 %v183
      %v304 = vunpack.c.h.b16 %v183
      %v305 = vunpack.c.l.b16 %v184
      %v306 = vunpack.c.h.b16 %v184
      %v307 = vunpack.c.l.b16 %v185
      %v308 = vunpack.c.h.b16 %v185
      %v309 = vunpack.c.l.b16 %v186
      %v310 = vunpack.c.h.b16 %v186
      %v311 = vunpack.c.l.b16 %v187
      %v312 = vunpack.c.h.b16 %v187
      %v313 = vunpack.c.l.b16 %v188
      %v314 = vunpack.c.h.b16 %v188
      %v315 = vunpack.c.l.b16 %v189
      %v316 = vunpack.c.h.b16 %v189
      %v317 = vunpack.c.l.b16 %v190
      %v318 = vunpack.c.h.b16 %v190
      %v319 = vunpack.c.l.b16 %v191
      %v320 = vunpack.c.h.b16 %v191
      %v321 = vunpack.c.l.b16 %v192
      %v322 = vunpack.c.h.b16 %v192
      %v323 = vunpack.c.l.b16 %v193
      %v324 = vunpack.c.h.b16 %v193
      %v325 = vunpack.c.l.b16 %v194
      %v326 = vunpack.c.h.b16 %v194
      %v327 = vunpack.c.l.b16 %v195
      %v328 = vunpack.c.h.b16 %v195
      %v329 = vunpack.c.l.b16 %v196
      %v330 = vunpack.c.h.b16 %v196
      %v331 = vunpack.c.l.b16 %v197
      %v332 = vunpack.c.h.b16 %v197
      %v333 = vunpack.c.l.b16 %v198
      %v334 = vunpack.c.h.b16 %v198
      %v335 = vunpack.c.l.b16 %v199
      %v336 = vunpack.c.h.b16 %v199
      %v337 = vunpack.c.l.b16 %v200
      %v338 = vunpack.c.h.b16 %v200
      %v339 = vunpack.c.l.b16 %v201
      %v340 = vunpack.c.h.b16 %v201
      %v341 = vunpack.c.l.b16 %v202
      %v342 = vunpack.c.h.b16 %v202
      %v343 = vunpack.c.l.b16 %v203
      %v344 = vunpack.c.h.b16 %v203
      %v345 = vunpack.c.l.b16 %v204
      %v346 = vunpack.c.h.b16 %v204
      %v347 = vunpack.c.l.b16 %v205
      %v348 = vunpack.c.h.b16 %v205
      %v349 = vunpack.c.l.b16 %v206
      %v350 = vunpack.c.h.b16 %v206
      %v351 = vunpack.c.l.b16 %v207
      %v352 = vunpack.c.h.b16 %v207
      %v353 = vunpack.c.l.b16 %v208
      %v354 = vunpack.c.h.b16 %v208
      %v355 = vunpack.c.l.b16 %v209
      %v356 = vunpack.c.h.b16 %v209
      %v357 = vunpack.c.l.b16 %v210
      %v358 = vunpack.c.h.b16 %v210
      %v359 = vunpack.c.l.b16 %v211
      %v360 = vunpack.c.h.b16 %v211
      %v361 = vunpack.c.l.b16 %v212
      %v362 = vunpack.c.h.b16 %v212
      %v363 = vunpack.c.l.b16 %v213
      %v364 = vunpack.c.h.b16 %v213
      %v365 = vunpack.c.l.b16 %v214
      %v366 = vunpack.c.h.b16 %v214
      %v367 = vunpack.c.l.b16 %v215
      %v368 = vunpack.c.h.b16 %v215
      %v369 = vunpack.c.l.b16 %v216
      %v370 = vunpack.c.h.b16 %v216
      %v371 = vunpack.c.l.b16 %v217
      %v372 = vunpack.c.h.b16 %v217
      %v373 = vunpack.c.l.b16 %v218
      %v374 = vunpack.c.h.b16 %v218
      %v375 = vunpack.c.l.b16 %v219
      %v376 = vunpack.c.h.b16 %v219
      %v377 = vunpack.c.l.b16 %v220
      %v378 = vunpack.c.h.b16 %v220
      %v379 = vunpack.c.l.b16 %v221
      %v380 = vunpack.c.h.b16 %v221
      %v381 = vunpack.c.l.b16 %v222
      %v382 = vunpack.c.h.b16 %v222
      %v383 = vunpack.c.l.b16 %v223
      %v384 = vunpack.c.h.b16 %v223
      %v385 = vunpack.c.l.b16 %v224
      %v386 = vunpack.c.h.b16 %v224
      %v387 = vpack.c.b16 %v295, %v291
      %v388 = vpack.c.b16 %v296, %v292
      %v389 = vpack.c.b16 %v297, %v293
      %v390 = vpack.c.b16 %v298, %v294
      %v391 = vpack.c.b16 %v303, %v299
      %v392 = vpack.c.b16 %v304, %v300
      %v393 = vpack.c.b16 %v305, %v301
      %v394 = vpack.c.b16 %v306, %v302
      %v395 = vpack.c.b16 %v311, %v307
      %v396 = vpack.c.b16 %v312, %v308
      %v397 = vpack.c.b16 %v313, %v309
      %v398 = vpack.c.b16 %v314, %v310
      %v399 = vpack.c.b16 %v319, %v315
      %v400 = vpack.c.b16 %v320, %v316
      %v401 = vpack.c.b16 %v321, %v317
      %v402 = vpack.c.b16 %v322, %v318
      %v403 = vpack.c.b16 %v327, %v323
      %v404 = vpack.c.b16 %v328, %v324
      %v405 = vpack.c.b16 %v329, %v325
      %v406 = vpack.c.b16 %v330, %v326
      %v407 = vpack.c.b16 %v335, %v331
      %v408 = vpack.c.b16 %v336, %v332
      %v409 = vpack.c.b16 %v337, %v333
      %v410 = vpack.c.b16 %v338, %v334
      %v411 = vpack.c.b16 %v343, %v339
      %v412 = vpack.c.b16 %v344, %v340
      %v413 = vpack.c.b16 %v345, %v341
      %v414 = vpack.c.b16 %v346, %v342
      %v415 = vpack.c.b16 %v351, %v347
      %v416 = vpack.c.b16 %v352, %v348
      %v417 = vpack.c.b16 %v353, %v349
      %v418 = vpack.c.b16 %v354, %v350
      %v419 = vpack.c.b16 %v359, %v355
      %v420 = vpack.c.b16 %v360, %v356
      %v421 = vpack.c.b16 %v361, %v357
      %v422 = vpack.c.b16 %v362, %v358
      %v423 = vpack.c.b16 %v367, %v363
      %v424 = vpack.c.b16 %v368, %v364
      %v425 = vpack.c.b16 %v369, %v365
      %v426 = vpack.c.b16 %v370, %v366
      %v427 = vpack.c.b16 %v375, %v371
      %v428 = vpack.c.b16 %v376, %v372
      %v429 = vpack.c.b16 %v377, %v373
      %v430 = vpack.c.b16 %v378, %v374
      %v431 = vpack.c.b16 %v383, %v379
      %v432 = vpack.c.b16 %v384, %v380
      %v433 = vpack.c.b16 %v385, %v381
      %v434 = vpack.c.b16 %v386, %v382
      %vm483 = vcmask 523264
      %v485 = vsel %vm483, %v238, 0
      %v488 = vsel %vm483, %v240, 0
      %490 = vmatprep.subr.bf16.mxu0 %v388
      %491 = vmatpush1.bf16.msra.mxu0 %v387
      %492 = vmatprep.subr.bf16.mxu0 %v392
      %493 = vmatpush1.bf16.msra.mxu0 %v391
      %494 = vmatprep.subr.bf16.mxu0 %v396
      %495 = vmatpush1.bf16.msra.mxu0 %v395
      %496 = vmatprep.subr.bf16.mxu0 %v400
      %497 = vmatpush1.bf16.msra.mxu0 %v399
      %498 = vmatprep.subr.bf16.mxu0 %v404
      %499 = vmatpush1.bf16.msra.mxu0 %v403
      %500 = vmatprep.subr.bf16.mxu0 %v408
      %501 = vmatpush1.bf16.msra.mxu0 %v407
      %502 = vmatprep.subr.bf16.mxu0 %v412
      %503 = vmatpush1.bf16.msra.mxu0 %v411
      %504 = vmatprep.subr.bf16.mxu0 %v416
      %505 = vmatpush1.bf16.msra.mxu0 %v415
      %506 = vmatprep.subr.bf16.mxu0 %v420
      %507 = vmatpush1.bf16.msra.mxu0 %v419
      %508 = vmatprep.subr.bf16.mxu0 %v424
      %509 = vmatpush1.bf16.msra.mxu0 %v423
      %510 = vmatprep.subr.bf16.mxu0 %v428
      %511 = vmatpush1.bf16.msra.mxu0 %v427
      %512 = vmatprep.subr.bf16.mxu0 %v432
      %513 = vmatpush1.bf16.msra.mxu0 %v431
      %514 = vmatprep.subr.bf16.mxu0 0
      %515 = vmatpush1.bf16.msra.mxu0 0
      %516 = vmatprep.subr.bf16.mxu0 0
      %517 = vmatpush1.bf16.msra.mxu0 0
      %518 = vmatprep.subr.bf16.mxu0 0
      %519 = vmatpush1.bf16.msra.mxu0 0
      %520 = vmatprep.subr.bf16.mxu0 0
      %521 = vmatpush1.bf16.msra.mxu0 0
      %522 = vmatprep.mubr.bf16.mxu0 %v485
      %523 = vmatmul.mubr.bf16.gmra.mrb[0].mxu0 %v237
      %v524 = vpop.f32.mrb[0].mxu0
      %v525 = vadd.f32 0.0, %v524
      %v526 = vpop.f32.mrb[0].mxu0
      %v527 = vadd.f32 0.0, %v526
      %v528 = vpop.f32.mrb[0].mxu0
      %v529 = vadd.f32 0.0, %v528
      %v530 = vpop.f32.mrb[0].mxu0
      %v531 = vadd.f32 0.0, %v530
      %532 = vmatprep.mubr.bf16.mxu0 %v488
      %533 = vmatmul.mubr.bf16.gmra.mrb[0].mxu0 %v239
      %v534 = vpop.f32.mrb[0].mxu0
      %v535 = vadd.f32 0.0, %v534
      %v536 = vpop.f32.mrb[0].mxu0
      %v537 = vadd.f32 0.0, %v536
      %v538 = vpop.f32.mrb[0].mxu0
      %v539 = vadd.f32 0.0, %v538
      %v540 = vpop.f32.mrb[0].mxu0
      %v541 = vadd.f32 0.0, %v540
      %542 = vdwg.mxu0
      %543 = vmatprep.subr.bf16.mxu0 %v390
      %544 = vmatpush1.bf16.msra.mxu0 %v389
      %545 = vmatprep.subr.bf16.mxu0 %v394
      %546 = vmatpush1.bf16.msra.mxu0 %v393
      %547 = vmatprep.subr.bf16.mxu0 %v398
      %548 = vmatpush1.bf16.msra.mxu0 %v397
      %549 = vmatprep.subr.bf16.mxu0 %v402
      %550 = vmatpush1.bf16.msra.mxu0 %v401
      %551 = vmatprep.subr.bf16.mxu0 %v406
      %552 = vmatpush1.bf16.msra.mxu0 %v405
      %553 = vmatprep.subr.bf16.mxu0 %v410
      %554 = vmatpush1.bf16.msra.mxu0 %v409
      %555 = vmatprep.subr.bf16.mxu0 %v414
      %556 = vmatpush1.bf16.msra.mxu0 %v413
      %557 = vmatprep.subr.bf16.mxu0 %v418
      %558 = vmatpush1.bf16.msra.mxu0 %v417
      %559 = vmatprep.subr.bf16.mxu0 %v422
      %560 = vmatpush1.bf16.msra.mxu0 %v421
      %561 = vmatprep.subr.bf16.mxu0 %v426
      %562 = vmatpush1.bf16.msra.mxu0 %v425
      %563 = vmatprep.subr.bf16.mxu0 %v430
      %564 = vmatpush1.bf16.msra.mxu0 %v429
      %565 = vmatprep.subr.bf16.mxu0 %v434
      %566 = vmatpush1.bf16.msra.mxu0 %v433
      %567 = vmatprep.subr.bf16.mxu0 0
      %568 = vmatpush1.bf16.msra.mxu0 0
      %569 = vmatprep.subr.bf16.mxu0 0
      %570 = vmatpush1.bf16.msra.mxu0 0
      %571 = vmatprep.subr.bf16.mxu0 0
      %572 = vmatpush1.bf16.msra.mxu0 0
      %573 = vmatprep.subr.bf16.mxu0 0
      %574 = vmatpush1.bf16.msra.mxu0 0
      %575 = vmatprep.mubr.bf16.mxu0 %v485
      %576 = vmatmul.mubr.bf16.gmra.mrb[0].mxu0 %v237
      %v577 = vpop.f32.mrb[0].mxu0
      %v578 = vadd.f32 0.0, %v577
      %v579 = vpop.f32.mrb[0].mxu0
      %v580 = vadd.f32 0.0, %v579
      %v581 = vpop.f32.mrb[0].mxu0
      %v582 = vadd.f32 0.0, %v581
      %v583 = vpop.f32.mrb[0].mxu0
      %v584 = vadd.f32 0.0, %v583
      %585 = vmatprep.mubr.bf16.mxu0 %v488
      %586 = vmatmul.mubr.bf16.gmra.mrb[0].mxu0 %v239
      %v587 = vpop.f32.mrb[0].mxu0
      %v588 = vadd.f32 0.0, %v587
      %v589 = vpop.f32.mrb[0].mxu0
      %v590 = vadd.f32 0.0, %v589
      %v591 = vpop.f32.mrb[0].mxu0
      %v592 = vadd.f32 0.0, %v591
      %v593 = vpop.f32.mrb[0].mxu0
      %v594 = vadd.f32 0.0, %v593
      %595 = vdwg.mxu0
      %v596 = vlaneseq
      %v597 = vshrl.u32 %v596, 7
      %v598 = vadd.s32 %v597, 8
      %v599 = vadd.s32 %v597, 16
      %v600 = vadd.s32 %v597, 24
      %vm601 = vcmp.lt.s32.totalorder %v597, 0
      %v602 = vsub.s32 0, %v597
      %v603 = vsel %vm601, %v602, %v597
      %v604 = vshrl.u32 %v603, 2
      %v605 = vand.u32 %v603, 3
      %v606 = vsub.s32 0, %v605
      %v607 = vsel %vm601, %v606, %v605
      %vm608 = vcmp.lt.s32.totalorder %v598, 0
      %v609 = vsub.s32 0, %v598
      %v610 = vsel %vm608, %v609, %v598
      %v611 = vshrl.u32 %v610, 2
      %v612 = vand.u32 %v610, 3
      %v613 = vsub.s32 0, %v612
      %v614 = vsel %vm608, %v613, %v612
      %vm615 = vcmp.lt.s32.totalorder %v599, 0
      %v616 = vsub.s32 0, %v599
      %v617 = vsel %vm615, %v616, %v599
      %v618 = vshrl.u32 %v617, 2
      %v619 = vand.u32 %v617, 3
      %v620 = vsub.s32 0, %v619
      %v621 = vsel %vm615, %v620, %v619
      %vm622 = vcmp.lt.s32.totalorder %v600, 0
      %v623 = vsub.s32 0, %v600
      %v624 = vsel %vm622, %v623, %v600
      %v625 = vshrl.u32 %v624, 2
      %v626 = vand.u32 %v624, 3
      %v627 = vsub.s32 0, %v626
      %v628 = vsel %vm622, %v627, %v626
      %vm629 = vcmp.ne.s32.totalorder %v607, 0
      %vm630 = vcmp.ne.s32.totalorder %v614, 0
      %vm631 = vcmp.ne.s32.totalorder %v621, 0
      %vm632 = vcmp.ne.s32.totalorder %v628, 0
      %vm633 = vcmp.lt.s32.totalorder %v607, 0
      %vm634 = vcmp.lt.s32.totalorder %v614, 0
      %vm635 = vcmp.lt.s32.totalorder %v621, 0
      %vm636 = vcmp.lt.s32.totalorder %v628, 0
      %vm637 = vmand %vm633, %vm629
      %vm638 = vmand %vm634, %vm630
      %vm639 = vmand %vm635, %vm631
      %vm640 = vmand %vm636, %vm632
      %v641 = vadd.s32 %v607, 4
      %v642 = vadd.s32 %v614, 4
      %v643 = vadd.s32 %v621, 4
      %v644 = vadd.s32 %v628, 4
      %v645 = vsel %vm637, %v641, %v607
      %v646 = vsel %vm638, %v642, %v614
      %v647 = vsel %vm639, %v643, %v621
      %v648 = vsel %vm640, %v644, %v628
      %v649 = vlaneseq
      %v650 = vand.u32 %v649, 127
      %vm651 = vcmp.lt.s32.totalorder %v650, 0
      %v652 = vsub.s32 0, %v650
      %v653 = vsel %vm651, %v652, %v650
      %v654 = vshrl.u32 %v653, 2
      %v655 = vand.u32 %v653, 3
      %v656 = vsub.s32 0, %v655
      %v657 = vsel %vm651, %v656, %v655
      %vm658 = vcmp.ne.s32.totalorder %v657, 0
      %vm659 = vcmp.lt.s32.totalorder %v657, 0
      %vm660 = vmand %vm659, %vm658
      %v661 = vadd.s32 %v657, 4
      %v662 = vsel %vm660, %v661, %v657
      %vm663 = vcmp.eq.s32.totalorder %v645, %v662
      %vm664 = vcmp.eq.s32.totalorder %v646, %v662
      %vm665 = vcmp.eq.s32.totalorder %v647, %v662
      %vm666 = vcmp.eq.s32.totalorder %v648, %v662
      %v667 = vsel %vm663, 0.00024414063, 0.0
      %v668 = vsel %vm664, 0.00024414063, 0.0
      %v669 = vsel %vm665, 0.00024414063, 0.0
      %v670 = vsel %vm666, 0.00024414063, 0.0
      %vm671 = vcmask 261120
      %v673 = vsel %vm671, %v667, 0
      %v676 = vsel %vm671, %v668, 0
      %v679 = vsel %vm671, %v669, 0
      %v682 = vsel %vm671, %v670, 0
      %684 = vmatprep.subr.mxu0 %v527
      %685 = vmatpush1.msra.mxu0 %v525
      %686 = vmatprep.subr.mxu0 %v531
      %687 = vmatpush1.msra.mxu0 %v529
      %688 = vmatprep.subr.mxu0 %v537
      %689 = vmatpush1.msra.mxu0 %v535
      %690 = vmatprep.subr.mxu0 %v541
      %691 = vmatpush1.msra.mxu0 %v539
      %692 = vmatprep.subr.mxu0 0.0
      %693 = vmatpush1.msra.mxu0 0.0
      %694 = vmatprep.subr.mxu0 0.0
      %695 = vmatpush1.msra.mxu0 0.0
      %696 = vmatprep.subr.mxu0 0.0
      %697 = vmatpush1.msra.mxu0 0.0
      %698 = vmatprep.subr.mxu0 0.0
      %699 = vmatpush1.msra.mxu0 0.0
      %700 = vmatprep.subr.mxu0 0.0
      %701 = vmatpush1.msra.mxu0 0.0
      %702 = vmatprep.subr.mxu0 0.0
      %703 = vmatpush1.msra.mxu0 0.0
      %704 = vmatprep.subr.mxu0 0.0
      %705 = vmatpush1.msra.mxu0 0.0
      %706 = vmatprep.subr.mxu0 0.0
      %707 = vmatpush1.msra.mxu0 0.0
      %708 = vmatprep.subr.mxu0 0.0
      %709 = vmatpush1.msra.mxu0 0.0
      %710 = vmatprep.subr.mxu0 0.0
      %711 = vmatpush1.msra.mxu0 0.0
      %712 = vmatprep.subr.mxu0 0.0
      %713 = vmatpush1.msra.mxu0 0.0
      %714 = vmatprep.subr.mxu0 0.0
      %715 = vmatpush1.msra.mxu0 0.0
      %716 = vmatprep.subr.mxu0 0.0
      %717 = vmatpush1.msra.mxu0 0.0
      %718 = vmatprep.subr.mxu0 0.0
      %719 = vmatpush1.msra.mxu0 0.0
      %720 = vmatprep.subr.mxu0 0.0
      %721 = vmatpush1.msra.mxu0 0.0
      %722 = vmatprep.subr.mxu0 0.0
      %723 = vmatpush1.msra.mxu0 0.0
      %724 = vmatprep.subr.mxu0 0.0
      %725 = vmatpush1.msra.mxu0 0.0
      %726 = vmatprep.subr.mxu0 0.0
      %727 = vmatpush1.msra.mxu0 0.0
      %728 = vmatprep.subr.mxu0 0.0
      %729 = vmatpush1.msra.mxu0 0.0
      %730 = vmatprep.subr.mxu0 0.0
      %731 = vmatpush1.msra.mxu0 0.0
      %732 = vmatprep.subr.mxu0 0.0
      %733 = vmatpush1.msra.mxu0 0.0
      %734 = vmatprep.subr.mxu0 0.0
      %735 = vmatpush1.msra.mxu0 0.0
      %736 = vmatprep.subr.mxu0 0.0
      %737 = vmatpush1.msra.mxu0 0.0
      %738 = vmatprep.subr.mxu0 0.0
      %739 = vmatpush1.msra.mxu0 0.0
      %740 = vmatprep.subr.mxu0 0.0
      %741 = vmatpush1.msra.mxu0 0.0
      %742 = vmatprep.subr.mxu0 0.0
      %743 = vmatpush1.msra.mxu0 0.0
      %744 = vmatprep.subr.mxu0 0.0
      %745 = vmatpush1.msra.mxu0 0.0
      %746 = vmatprep.subr.mxu0 0.0
      %747 = vmatpush1.msra.mxu0 0.0
      %748 = vmatprep.mubr.f32.mxu0 0.0
      %749 = vmatmul.mubr.f32.gmra.mrb[0].mxu0 %v673
      %v750 = vpop.f32.mrb[0].mxu0
      %v751 = vadd.f32 0.0, %v750
      %v752 = vpop.f32.mrb[0].mxu0
      %v753 = vadd.f32 0.0, %v752
      %754 = vmatprep.mubr.f32.mxu0 0.0
      %755 = vmatmul.mubr.f32.gmra.mrb[0].mxu0 %v676
      %v756 = vpop.f32.mrb[0].mxu0
      %v757 = vadd.f32 0.0, %v756
      %v758 = vpop.f32.mrb[0].mxu0
      %v759 = vadd.f32 0.0, %v758
      %760 = vmatprep.mubr.f32.mxu0 0.0
      %761 = vmatmul.mubr.f32.gmra.mrb[0].mxu0 %v679
      %v762 = vpop.f32.mrb[0].mxu0
      %v763 = vadd.f32 0.0, %v762
      %v764 = vpop.f32.mrb[0].mxu0
      %v765 = vadd.f32 0.0, %v764
      %766 = vmatprep.mubr.f32.mxu0 0.0
      %767 = vmatmul.mubr.f32.gmra.mrb[0].mxu0 %v682
      %v768 = vpop.f32.mrb[0].mxu0
      %v769 = vadd.f32 0.0, %v768
      %v770 = vpop.f32.mrb[0].mxu0
      %v771 = vadd.f32 0.0, %v770
      %772 = vdwg.mxu0
      %773 = vmatprep.subr.mxu0 %v580
      %774 = vmatpush1.msra.mxu0 %v578
      %775 = vmatprep.subr.mxu0 %v584
      %776 = vmatpush1.msra.mxu0 %v582
      %777 = vmatprep.subr.mxu0 %v590
      %778 = vmatpush1.msra.mxu0 %v588
      %779 = vmatprep.subr.mxu0 %v594
      %780 = vmatpush1.msra.mxu0 %v592
      %781 = vmatprep.subr.mxu0 0.0
      %782 = vmatpush1.msra.mxu0 0.0
      %783 = vmatprep.subr.mxu0 0.0
      %784 = vmatpush1.msra.mxu0 0.0
      %785 = vmatprep.subr.mxu0 0.0
      %786 = vmatpush1.msra.mxu0 0.0
      %787 = vmatprep.subr.mxu0 0.0
      %788 = vmatpush1.msra.mxu0 0.0
      %789 = vmatprep.subr.mxu0 0.0
      %790 = vmatpush1.msra.mxu0 0.0
      %791 = vmatprep.subr.mxu0 0.0
      %792 = vmatpush1.msra.mxu0 0.0
      %793 = vmatprep.subr.mxu0 0.0
      %794 = vmatpush1.msra.mxu0 0.0
      %795 = vmatprep.subr.mxu0 0.0
      %796 = vmatpush1.msra.mxu0 0.0
      %797 = vmatprep.subr.mxu0 0.0
      %798 = vmatpush1.msra.mxu0 0.0
      %799 = vmatprep.subr.mxu0 0.0
      %800 = vmatpush1.msra.mxu0 0.0
      %801 = vmatprep.subr.mxu0 0.0
      %802 = vmatpush1.msra.mxu0 0.0
      %803 = vmatprep.subr.mxu0 0.0
      %804 = vmatpush1.msra.mxu0 0.0
      %805 = vmatprep.subr.mxu0 0.0
      %806 = vmatpush1.msra.mxu0 0.0
      %807 = vmatprep.subr.mxu0 0.0
      %808 = vmatpush1.msra.mxu0 0.0
      %809 = vmatprep.subr.mxu0 0.0
      %810 = vmatpush1.msra.mxu0 0.0
      %811 = vmatprep.subr.mxu0 0.0
      %812 = vmatpush1.msra.mxu0 0.0
      %813 = vmatprep.subr.mxu0 0.0
      %814 = vmatpush1.msra.mxu0 0.0
      %815 = vmatprep.subr.mxu0 0.0
      %816 = vmatpush1.msra.mxu0 0.0
      %817 = vmatprep.subr.mxu0 0.0
      %818 = vmatpush1.msra.mxu0 0.0
      %819 = vmatprep.subr.mxu0 0.0
      %820 = vmatpush1.msra.mxu0 0.0
      %821 = vmatprep.subr.mxu0 0.0
      %822 = vmatpush1.msra.mxu0 0.0
      %823 = vmatprep.subr.mxu0 0.0
      %824 = vmatpush1.msra.mxu0 0.0
      %825 = vmatprep.subr.mxu0 0.0
      %826 = vmatpush1.msra.mxu0 0.0
      %827 = vmatprep.subr.mxu0 0.0
      %828 = vmatpush1.msra.mxu0 0.0
      %829 = vmatprep.subr.mxu0 0.0
      %830 = vmatpush1.msra.mxu0 0.0
      %831 = vmatprep.subr.mxu0 0.0
      %832 = vmatpush1.msra.mxu0 0.0
      %833 = vmatprep.subr.mxu0 0.0
      %834 = vmatpush1.msra.mxu0 0.0
      %835 = vmatprep.subr.mxu0 0.0
      %836 = vmatpush1.msra.mxu0 0.0
      %837 = vmatprep.mubr.f32.mxu0 0.0
      %838 = vmatmul.mubr.f32.gmra.mrb[0].mxu0 %v673
      %v839 = vpop.f32.mrb[0].mxu0
      %v840 = vadd.f32 0.0, %v839
      %v841 = vpop.f32.mrb[0].mxu0
      %v842 = vadd.f32 0.0, %v841
      %843 = vmatprep.mubr.f32.mxu0 0.0
      %844 = vmatmul.mubr.f32.gmra.mrb[0].mxu0 %v676
      %v845 = vpop.f32.mrb[0].mxu0
      %v846 = vadd.f32 0.0, %v845
      %v847 = vpop.f32.mrb[0].mxu0
      %v848 = vadd.f32 0.0, %v847
      %849 = vmatprep.mubr.f32.mxu0 0.0
      %850 = vmatmul.mubr.f32.gmra.mrb[0].mxu0 %v679
      %v851 = vpop.f32.mrb[0].mxu0
      %v852 = vadd.f32 0.0, %v851
      %v853 = vpop.f32.mrb[0].mxu0
      %v854 = vadd.f32 0.0, %v853
      %855 = vmatprep.mubr.f32.mxu0 0.0
      %856 = vmatmul.mubr.f32.gmra.mrb[0].mxu0 %v682
      %v857 = vpop.f32.mrb[0].mxu0
      %v858 = vadd.f32 0.0, %v857
      %v859 = vpop.f32.mrb[0].mxu0
      %v860 = vadd.f32 0.0, %v859
      %861 = vdwg.mxu0
      %v862 = vadd.f32 %v751, %v753
      %v863 = vadd.f32 %v862, %v840
      %v864 = vadd.f32 %v863, %v842
      %865 = vadd.xlane.f32.xlu0 %v864
      %v866 = vpop.xlane.xlu0 %865
      %v867 = vadd.f32 %v757, %v759
      %v868 = vadd.f32 %v867, %v846
      %v869 = vadd.f32 %v868, %v848
      %870 = vadd.xlane.f32.xlu0 %v869
      %v871 = vpop.xlane.xlu0 %870
      %v872 = vadd.f32 %v763, %v765
      %v873 = vadd.f32 %v872, %v852
      %v874 = vadd.f32 %v873, %v854
      %875 = vadd.xlane.f32.xlu0 %v874
      %v876 = vpop.xlane.xlu0 %875
      %v877 = vadd.f32 %v769, %v771
      %v878 = vadd.f32 %v877, %v858
      %v879 = vadd.f32 %v878, %v860
      %880 = vadd.xlane.f32.xlu0 %v879
      %v881 = vpop.xlane.xlu0 %880
      %v882 = vmul.f32 %v525, %v525
      %v883 = vmul.f32 %v527, %v527
      %v884 = vmul.f32 %v578, %v578
      %v885 = vmul.f32 %v580, %v580
      %v886 = vmul.f32 %v529, %v529
      %v887 = vmul.f32 %v531, %v531
      %v888 = vmul.f32 %v582, %v582
      %v889 = vmul.f32 %v584, %v584
      %v890 = vmul.f32 %v535, %v535
      %v891 = vmul.f32 %v537, %v537
      %v892 = vmul.f32 %v588, %v588
      %v893 = vmul.f32 %v590, %v590
      %v894 = vmul.f32 %v539, %v539
      %v895 = vmul.f32 %v541, %v541
      %v896 = vmul.f32 %v592, %v592
      %v897 = vmul.f32 %v594, %v594
      %898 = vmatprep.subr.mxu0 %v883
      %899 = vmatpush1.msra.mxu0 %v882
      %900 = vmatprep.subr.mxu0 %v887
      %901 = vmatpush1.msra.mxu0 %v886
      %902 = vmatprep.subr.mxu0 %v891
      %903 = vmatpush1.msra.mxu0 %v890
      %904 = vmatprep.subr.mxu0 %v895
      %905 = vmatpush1.msra.mxu0 %v894
      %906 = vmatprep.subr.mxu0 0.0
      %907 = vmatpush1.msra.mxu0 0.0
      %908 = vmatprep.subr.mxu0 0.0
      %909 = vmatpush1.msra.mxu0 0.0
      %910 = vmatprep.subr.mxu0 0.0
      %911 = vmatpush1.msra.mxu0 0.0
      %912 = vmatprep.subr.mxu0 0.0
      %913 = vmatpush1.msra.mxu0 0.0
      %914 = vmatprep.subr.mxu0 0.0
      %915 = vmatpush1.msra.mxu0 0.0
      %916 = vmatprep.subr.mxu0 0.0
      %917 = vmatpush1.msra.mxu0 0.0
      %918 = vmatprep.subr.mxu0 0.0
      %919 = vmatpush1.msra.mxu0 0.0
      %920 = vmatprep.subr.mxu0 0.0
      %921 = vmatpush1.msra.mxu0 0.0
      %922 = vmatprep.subr.mxu0 0.0
      %923 = vmatpush1.msra.mxu0 0.0
      %924 = vmatprep.subr.mxu0 0.0
      %925 = vmatpush1.msra.mxu0 0.0
      %926 = vmatprep.subr.mxu0 0.0
      %927 = vmatpush1.msra.mxu0 0.0
      %928 = vmatprep.subr.mxu0 0.0
      %929 = vmatpush1.msra.mxu0 0.0
      %930 = vmatprep.subr.mxu0 0.0
      %931 = vmatpush1.msra.mxu0 0.0
      %932 = vmatprep.subr.mxu0 0.0
      %933 = vmatpush1.msra.mxu0 0.0
      %934 = vmatprep.subr.mxu0 0.0
      %935 = vmatpush1.msra.mxu0 0.0
      %936 = vmatprep.subr.mxu0 0.0
      %937 = vmatpush1.msra.mxu0 0.0
      %938 = vmatprep.subr.mxu0 0.0
      %939 = vmatpush1.msra.mxu0 0.0
      %940 = vmatprep.subr.mxu0 0.0
      %941 = vmatpush1.msra.mxu0 0.0
      %942 = vmatprep.subr.mxu0 0.0
      %943 = vmatpush1.msra.mxu0 0.0
      %944 = vmatprep.subr.mxu0 0.0
      %945 = vmatpush1.msra.mxu0 0.0
      %946 = vmatprep.subr.mxu0 0.0
      %947 = vmatpush1.msra.mxu0 0.0
      %948 = vmatprep.subr.mxu0 0.0
      %949 = vmatpush1.msra.mxu0 0.0
      %950 = vmatprep.subr.mxu0 0.0
      %951 = vmatpush1.msra.mxu0 0.0
      %952 = vmatprep.subr.mxu0 0.0
      %953 = vmatpush1.msra.mxu0 0.0
      %954 = vmatprep.subr.mxu0 0.0
      %955 = vmatpush1.msra.mxu0 0.0
      %956 = vmatprep.subr.mxu0 0.0
      %957 = vmatpush1.msra.mxu0 0.0
      %958 = vmatprep.subr.mxu0 0.0
      %959 = vmatpush1.msra.mxu0 0.0
      %960 = vmatprep.subr.mxu0 0.0
      %961 = vmatpush1.msra.mxu0 0.0
      %962 = vmatprep.mubr.f32.mxu0 0.0
      %963 = vmatmul.mubr.f32.gmra.mrb[0].mxu0 %v673
      %v964 = vpop.f32.mrb[0].mxu0
      %v965 = vadd.f32 0.0, %v964
      %v966 = vpop.f32.mrb[0].mxu0
      %v967 = vadd.f32 0.0, %v966
      %968 = vmatprep.mubr.f32.mxu0 0.0
      %969 = vmatmul.mubr.f32.gmra.mrb[0].mxu0 %v676
      %v970 = vpop.f32.mrb[0].mxu0
      %v971 = vadd.f32 0.0, %v970
      %v972 = vpop.f32.mrb[0].mxu0
      %v973 = vadd.f32 0.0, %v972
      %974 = vmatprep.mubr.f32.mxu0 0.0
      %975 = vmatmul.mubr.f32.gmra.mrb[0].mxu0 %v679
      %v976 = vpop.f32.mrb[0].mxu0
      %v977 = vadd.f32 0.0, %v976
      %v978 = vpop.f32.mrb[0].mxu0
      %v979 = vadd.f32 0.0, %v978
      %980 = vmatprep.mubr.f32.mxu0 0.0
      %981 = vmatmul.mubr.f32.gmra.mrb[0].mxu0 %v682
      %v982 = vpop.f32.mrb[0].mxu0
      %v983 = vadd.f32 0.0, %v982
      %v984 = vpop.f32.mrb[0].mxu0
      %v985 = vadd.f32 0.0, %v984
      %986 = vdwg.mxu0
      %987 = vmatprep.subr.mxu0 %v885
      %988 = vmatpush1.msra.mxu0 %v884
      %989 = vmatprep.subr.mxu0 %v889
      %990 = vmatpush1.msra.mxu0 %v888
      %991 = vmatprep.subr.mxu0 %v893
      %992 = vmatpush1.msra.mxu0 %v892
      %993 = vmatprep.subr.mxu0 %v897
      %994 = vmatpush1.msra.mxu0 %v896
      %995 = vmatprep.subr.mxu0 0.0
      %996 = vmatpush1.msra.mxu0 0.0
      %997 = vmatprep.subr.mxu0 0.0
      %998 = vmatpush1.msra.mxu0 0.0
      %999 = vmatprep.subr.mxu0 0.0
      %1000 = vmatpush1.msra.mxu0 0.0
      %1001 = vmatprep.subr.mxu0 0.0
      %1002 = vmatpush1.msra.mxu0 0.0
      %1003 = vmatprep.subr.mxu0 0.0
      %1004 = vmatpush1.msra.mxu0 0.0
      %1005 = vmatprep.subr.mxu0 0.0
      %1006 = vmatpush1.msra.mxu0 0.0
      %1007 = vmatprep.subr.mxu0 0.0
      %1008 = vmatpush1.msra.mxu0 0.0
      %1009 = vmatprep.subr.mxu0 0.0
      %1010 = vmatpush1.msra.mxu0 0.0
      %1011 = vmatprep.subr.mxu0 0.0
      %1012 = vmatpush1.msra.mxu0 0.0
      %1013 = vmatprep.subr.mxu0 0.0
      %1014 = vmatpush1.msra.mxu0 0.0
      %1015 = vmatprep.subr.mxu0 0.0
      %1016 = vmatpush1.msra.mxu0 0.0
      %1017 = vmatprep.subr.mxu0 0.0
      %1018 = vmatpush1.msra.mxu0 0.0
      %1019 = vmatprep.subr.mxu0 0.0
      %1020 = vmatpush1.msra.mxu0 0.0
      %1021 = vmatprep.subr.mxu0 0.0
      %1022 = vmatpush1.msra.mxu0 0.0
      %1023 = vmatprep.subr.mxu0 0.0
      %1024 = vmatpush1.msra.mxu0 0.0
      %1025 = vmatprep.subr.mxu0 0.0
      %1026 = vmatpush1.msra.mxu0 0.0
      %1027 = vmatprep.subr.mxu0 0.0
      %1028 = vmatpush1.msra.mxu0 0.0
      %1029 = vmatprep.subr.mxu0 0.0
      %1030 = vmatpush1.msra.mxu0 0.0
      %1031 = vmatprep.subr.mxu0 0.0
      %1032 = vmatpush1.msra.mxu0 0.0
      %1033 = vmatprep.subr.mxu0 0.0
      %1034 = vmatpush1.msra.mxu0 0.0
      %1035 = vmatprep.subr.mxu0 0.0
      %1036 = vmatpush1.msra.mxu0 0.0
      %1037 = vmatprep.subr.mxu0 0.0
      %1038 = vmatpush1.msra.mxu0 0.0
      %1039 = vmatprep.subr.mxu0 0.0
      %1040 = vmatpush1.msra.mxu0 0.0
      %1041 = vmatprep.subr.mxu0 0.0
      %1042 = vmatpush1.msra.mxu0 0.0
      %1043 = vmatprep.subr.mxu0 0.0
      %1044 = vmatpush1.msra.mxu0 0.0
      %1045 = vmatprep.subr.mxu0 0.0
      %1046 = vmatpush1.msra.mxu0 0.0
      %1047 = vmatprep.subr.mxu0 0.0
      %1048 = vmatpush1.msra.mxu0 0.0
      %1049 = vmatprep.subr.mxu0 0.0
      %1050 = vmatpush1.msra.mxu0 0.0
      %1051 = vmatprep.mubr.f32.mxu0 0.0
      %1052 = vmatmul.mubr.f32.gmra.mrb[0].mxu0 %v673
      %v1053 = vpop.f32.mrb[0].mxu0
      %v1054 = vadd.f32 0.0, %v1053
      %v1055 = vpop.f32.mrb[0].mxu0
      %v1056 = vadd.f32 0.0, %v1055
      %1057 = vmatprep.mubr.f32.mxu0 0.0
      %1058 = vmatmul.mubr.f32.gmra.mrb[0].mxu0 %v676
      %v1059 = vpop.f32.mrb[0].mxu0
      %v1060 = vadd.f32 0.0, %v1059
      %v1061 = vpop.f32.mrb[0].mxu0
      %v1062 = vadd.f32 0.0, %v1061
      %1063 = vmatprep.mubr.f32.mxu0 0.0
      %1064 = vmatmul.mubr.f32.gmra.mrb[0].mxu0 %v679
      %v1065 = vpop.f32.mrb[0].mxu0
      %v1066 = vadd.f32 0.0, %v1065
      %v1067 = vpop.f32.mrb[0].mxu0
      %v1068 = vadd.f32 0.0, %v1067
      %1069 = vmatprep.mubr.f32.mxu0 0.0
      %1070 = vmatmul.mubr.f32.gmra.mrb[0].mxu0 %v682
      %v1071 = vpop.f32.mrb[0].mxu0
      %v1072 = vadd.f32 0.0, %v1071
      %v1073 = vpop.f32.mrb[0].mxu0
      %v1074 = vadd.f32 0.0, %v1073
      %1075 = vdwg.mxu0
      %v1076 = vadd.f32 %v965, %v967
      %v1077 = vadd.f32 %v1076, %v1054
      %v1078 = vadd.f32 %v1077, %v1056
      %1079 = vadd.xlane.f32.xlu0 %v1078
      %v1080 = vpop.xlane.xlu0 %1079
      %v1081 = vadd.f32 %v971, %v973
      %v1082 = vadd.f32 %v1081, %v1060
      %v1083 = vadd.f32 %v1082, %v1062
      %1084 = vadd.xlane.f32.xlu0 %v1083
      %v1085 = vpop.xlane.xlu0 %1084
      %v1086 = vadd.f32 %v977, %v979
      %v1087 = vadd.f32 %v1086, %v1066
      %v1088 = vadd.f32 %v1087, %v1068
      %1089 = vadd.xlane.f32.xlu0 %v1088
      %v1090 = vpop.xlane.xlu0 %1089
      %v1091 = vadd.f32 %v983, %v985
      %v1092 = vadd.f32 %v1091, %v1072
      %v1093 = vadd.f32 %v1092, %v1074
      %1094 = vadd.xlane.f32.xlu0 %v1093
      %v1095 = vpop.xlane.xlu0 %1094
      %v1096 = vmul.f32 %v866, %v866
      %v1097 = vmul.f32 %v871, %v871
      %v1098 = vmul.f32 %v876, %v876
      %v1099 = vmul.f32 %v881, %v881
      %v1100 = vsub.f32 %v1080, %v1096
      %v1101 = vsub.f32 %v1085, %v1097
      %v1102 = vsub.f32 %v1090, %v1098
      %v1103 = vsub.f32 %v1095, %v1099
      %v1104 = vadd.f32 %v1100, 1e-05
      %v1105 = vadd.f32 %v1101, 1e-05
      %v1106 = vadd.f32 %v1102, 1e-05
      %v1107 = vadd.f32 %v1103, 1e-05
      %v1108 = vrsqrt.pop %v1104
      %v1109 = vrsqrt.pop %v1105
      %v1110 = vrsqrt.pop %v1106
      %v1111 = vrsqrt.pop %v1107
      %v1112 = vsub.f32 0.0, %v866
      %v1113 = vsub.f32 0.0, %v871
      %v1114 = vsub.f32 0.0, %v876
      %v1115 = vsub.f32 0.0, %v881
      %v1116 = vmul.f32 %v1112, %v1108
      %v1117 = vmul.f32 %v1113, %v1109
      %v1118 = vmul.f32 %v1114, %v1110
      %v1119 = vmul.f32 %v1115, %v1111
      %v1120 = vmul.f32 %v525, %v1108
      %v1121 = vmul.f32 %v527, %v1108
      %v1122 = vmul.f32 %v578, %v1108
      %v1123 = vmul.f32 %v580, %v1108
      %v1124 = vmul.f32 %v529, %v1109
      %v1125 = vmul.f32 %v531, %v1109
      %v1126 = vmul.f32 %v582, %v1109
      %v1127 = vmul.f32 %v584, %v1109
      %v1128 = vmul.f32 %v535, %v1110
      %v1129 = vmul.f32 %v537, %v1110
      %v1130 = vmul.f32 %v588, %v1110
      %v1131 = vmul.f32 %v590, %v1110
      %v1132 = vmul.f32 %v539, %v1111
      %v1133 = vmul.f32 %v541, %v1111
      %v1134 = vmul.f32 %v592, %v1111
      %v1135 = vmul.f32 %v594, %v1111
      %v1136 = vadd.f32 %v1120, %v1116
      %v1137 = vadd.f32 %v1121, %v1116
      %v1138 = vadd.f32 %v1122, %v1116
      %v1139 = vadd.f32 %v1123, %v1116
      %v1140 = vadd.f32 %v1124, %v1117
      %v1141 = vadd.f32 %v1125, %v1117
      %v1142 = vadd.f32 %v1126, %v1117
      %v1143 = vadd.f32 %v1127, %v1117
      %v1144 = vadd.f32 %v1128, %v1118
      %v1145 = vadd.f32 %v1129, %v1118
      %v1146 = vadd.f32 %v1130, %v1118
      %v1147 = vadd.f32 %v1131, %v1118
      %v1148 = vadd.f32 %v1132, %v1119
      %v1149 = vadd.f32 %v1133, %v1119
      %v1150 = vadd.f32 %v1134, %v1119
      %v1151 = vadd.f32 %v1135, %v1119
      %s1152 = sld [smem:[#allocation2]]
      %vm1153 = vcmp.ge.f32.partialorder %v1136, 0.0
      %vm1154 = vcmp.ge.f32.partialorder %v1137, 0.0
      %vm1155 = vcmp.ge.f32.partialorder %v1138, 0.0
      %vm1156 = vcmp.ge.f32.partialorder %v1139, 0.0
      %vm1157 = vcmp.ge.f32.partialorder %v1140, 0.0
      %vm1158 = vcmp.ge.f32.partialorder %v1141, 0.0
      %vm1159 = vcmp.ge.f32.partialorder %v1142, 0.0
      %vm1160 = vcmp.ge.f32.partialorder %v1143, 0.0
      %vm1161 = vcmp.ge.f32.partialorder %v1144, 0.0
      %vm1162 = vcmp.ge.f32.partialorder %v1145, 0.0
      %vm1163 = vcmp.ge.f32.partialorder %v1146, 0.0
      %vm1164 = vcmp.ge.f32.partialorder %v1147, 0.0
      %vm1165 = vcmp.ge.f32.partialorder %v1148, 0.0
      %vm1166 = vcmp.ge.f32.partialorder %v1149, 0.0
      %vm1167 = vcmp.ge.f32.partialorder %v1150, 0.0
      %vm1168 = vcmp.ge.f32.partialorder %v1151, 0.0
      %v1169 = vstv %s1152
      %v1170 = vmul.f32 %v1169, %v1136
      %v1171 = vmul.f32 %v1169, %v1137
      %v1172 = vmul.f32 %v1169, %v1138
      %v1173 = vmul.f32 %v1169, %v1139
      %v1174 = vmul.f32 %v1169, %v1140
      %v1175 = vmul.f32 %v1169, %v1141
      %v1176 = vmul.f32 %v1169, %v1142
      %v1177 = vmul.f32 %v1169, %v1143
      %v1178 = vmul.f32 %v1169, %v1144
      %v1179 = vmul.f32 %v1169, %v1145
      %v1180 = vmul.f32 %v1169, %v1146
      %v1181 = vmul.f32 %v1169, %v1147
      %v1182 = vmul.f32 %v1169, %v1148
      %v1183 = vmul.f32 %v1169, %v1149
      %v1184 = vmul.f32 %v1169, %v1150
      %v1185 = vmul.f32 %v1169, %v1151
      %v1186 = vsel %vm1153, %v1136, %v1170
      %v1187 = vsel %vm1154, %v1137, %v1171
      %v1188 = vsel %vm1155, %v1138, %v1172
      %v1189 = vsel %vm1156, %v1139, %v1173
      %v1190 = vsel %vm1157, %v1140, %v1174
      %v1191 = vsel %vm1158, %v1141, %v1175
      %v1192 = vsel %vm1159, %v1142, %v1176
      %v1193 = vsel %vm1160, %v1143, %v1177
      %v1194 = vsel %vm1161, %v1144, %v1178
      %v1195 = vsel %vm1162, %v1145, %v1179
      %v1196 = vsel %vm1163, %v1146, %v1180
      %v1197 = vsel %vm1164, %v1147, %v1181
      %v1198 = vsel %vm1165, %v1148, %v1182
      %v1199 = vsel %vm1166, %v1149, %v1183
      %v1200 = vsel %vm1167, %v1150, %v1184
      %v1201 = vsel %vm1168, %v1151, %v1185
      %v1202 = vpack.c.bf16 %v1190, %v1186
      %v1203 = vpack.c.bf16 %v1191, %v1187
      %v1204 = vpack.c.bf16 %v1192, %v1188
      %v1205 = vpack.c.bf16 %v1193, %v1189
      %v1206 = vpack.c.bf16 %v1198, %v1194
      %v1207 = vpack.c.bf16 %v1199, %v1195
      %v1208 = vpack.c.bf16 %v1200, %v1196
      %v1209 = vpack.c.bf16 %v1201, %v1197
      %v1218 = vunpack.c.l.b16 %v1202
      %v1219 = vunpack.c.l.b16 %v1203
      %v1220 = vunpack.c.l.b16 %v1204
      %v1221 = vunpack.c.l.b16 %v1205
      %v1222 = vunpack.c.h.b16 %v1202
      %v1223 = vunpack.c.h.b16 %v1203
      %v1224 = vunpack.c.h.b16 %v1204
      %v1225 = vunpack.c.h.b16 %v1205
      %v1226 = vunpack.c.l.b16 %v1206
      %v1227 = vunpack.c.l.b16 %v1207
      %v1228 = vunpack.c.l.b16 %v1208
      %v1229 = vunpack.c.l.b16 %v1209
      %v1230 = vunpack.c.h.b16 %v1206
      %v1231 = vunpack.c.h.b16 %v1207
      %v1232 = vunpack.c.h.b16 %v1208
      %v1233 = vunpack.c.h.b16 %v1209
      %v1234 = vpack.c.b16 %v1219, %v1218
      %v1235 = vpack.c.b16 %v1221, %v1220
      %v1236 = vpack.c.b16 %v1223, %v1222
      %v1237 = vpack.c.b16 %v1225, %v1224
      %v1238 = vpack.c.b16 %v1227, %v1226
      %v1239 = vpack.c.b16 %v1229, %v1228
      %v1240 = vpack.c.b16 %v1231, %v1230
      %v1241 = vpack.c.b16 %v1233, %v1232
      %1250 = vst [vmem:[%s171] sm:$0xff] %v1234
      %1251 = vst [vmem:[%s171 + $0x8] sm:$0xff] %v1235
      %1252 = vst [vmem:[%s171 + $0x10] sm:$0xff] %v1236
      %1253 = vst [vmem:[%s171 + $0x18] sm:$0xff] %v1237
      %1254 = vst [vmem:[%s171 + $0x20] sm:$0xff] %v1238
      %1255 = vst [vmem:[%s171 + $0x28] sm:$0xff] %v1239
      %1256 = vst [vmem:[%s171 + $0x30] sm:$0xff] %v1240
      %1257 = vst [vmem:[%s171 + $0x38] sm:$0xff] %v1241
      %p1258 = scmp.lt.s32.totalorder %s15, 1
      %s1259 = scalar_select %p1258, %s15, 1
      %s1260 = smul.addr %s1259, 16
      %s1261 = smul.addr %s1260, 4
      %s1262 = scalar_lea.vmem %s3, %s1261
      // Predicated region
      $region33: #{unet_forward.8} parent=31 // pred_check
        %p1263 = pneg %p101
      $region34: #{unet_forward.8} parent=31 // pred_check_branch
        %1265 = sbr.rel (%p1263) target = $region36
      $region35: #{unet_forward.8} parent=31 // pred_region
        _
      $region36: #{unet_forward.8} parent=31 // pred_fallthru
        _
    $region32: #{unet_forward.8} parent=5 // pred_fallthru
      _
    %p1266 = scmp.le.s32.totalorder 2, %s10
    // Predicated region
    $region37: #{unet_forward.8} parent=5 // pred_check
      %p1267 = pneg %p1266
    $region38: #{unet_forward.8} parent=5 // pred_check_branch
      %1269 = sbr.rel (%p1267) target = $region40
    $region39: #{unet_forward.8} parent=5 // pred_region
      %s1270 = ssub.s32 %s10, 2
      // Predicated region
      $region41: #{unet_forward.8} parent=39 // pred_check
        %p1271 = pneg %p107
      $region42: #{unet_forward.8} parent=39 // pred_check_branch
        %1273 = sbr.rel (%p1271) target = $region44
      $region43: #{unet_forward.8} parent=39 // pred_region
        %p1274 = scmp.lt.s32.totalorder %s16, 1
        %s1275 = scalar_select %p1274, %s16, 1
        %s1276 = smul.addr %s1275, 16
        %s1277 = smul.addr %s1276, 4
        %s1278 = scalar_lea.vmem %s3, %s1277
      $region44: #{unet_forward.8} parent=39 // pred_fallthru
        _
    $region40: #{unet_forward.8} parent=5 // pred_fallthru
      _
  $region6: #{unet_forward.8} parent=0 // loop_footer
    %s14 = sadd.s32 1, %s10
  $region7: #{unet_forward.8} parent=0 // loop_footer_branch
    %9 = sbr.rel target = $region3
  $region8: #{unet_forward.8} parent=0 // loop_exit
    _

// kernel: unet_forward.9
$region0: #{unet_forward.9}
  #allocation0 [shape = 'u32[]', space=smem, size = 0x4, offset = 0x4, fixed_abs, tag = 'smem constant byte address 0x4 - core index']
  #allocation1 [shape = 'u32[144,128]{1,0:T(1,128)}', space=vmem, size = 0x12000, scoped, tag = 'internal scratch']
  %s0 = inlined_call_operand.vmem [shape: bf16[2,64,4096], index: 0, kind: input, shape index: {}]
  %s1 = inlined_call_operand.vmem [shape: bf16[16,64], index: 1, kind: input, shape index: {}]
  %s2 = inlined_call_operand.vmem [shape: f32[16,1], index: 2, kind: input, shape index: {}]
  %s3 = inlined_call_operand.vmem [shape: f32[2,16,4096], index: 3, kind: output, shape index: {}]
  %s4 = sld [smem:[#allocation0]]
  $region45: #{unet_forward.9} parent=0
    _
  %s6 = ssub.s32 1, %s4
  %s7 = scalar_select 0, %s6, %s4
  loop: start=0, step=1, limit=4
  $region2: #{unet_forward.9} parent=0 // loop_pre_header
    _
  $region3: #{unet_forward.9} parent=0 // loop_header
    %s9 = sphi 0, %s13
    %p10 = scmp.ge.s32.totalorder %s9, 4
    %s16 = sphi 0, %s28
    %s17 = sphi 0, %s24
    %s18 = sphi 0, %s16
    %s19 = sphi 0, %s17
    %s20 = sphi 0, %s18
    %s21 = sphi 0, %s19
    %s33 = sphi 0, %s35
    %s36 = sphi 0, %s33
    %s37 = sphi 0, %s36
    %s53 = sphi 0, %s37
    %s57 = sphi 0, %s57
    %s59 = sphi 0, %s57
    %s60 = sphi 0, %s59
    %s74 = sphi 0, %s60
    %s78 = sphi 0, %s78
    %s80 = sphi 0, %s78
    %s81 = sphi 0, %s80
    %s95 = sphi 0, %s81
    %s103 = sphi 0, %s105
    %s106 = sphi 0, %s103
    %s107 = sphi 0, %s106
    %s123 = sphi 0, %s107
  $region4: #{unet_forward.9} parent=0 // loop_header_branch
    %12 = sbr.rel (%p10) target = $region8
  $region5: #{unet_forward.9} parent=0 // loop_body
    %s14 = ssub.s32 %s9, 1
    %s15 = ssub.s32 %s9, 2
    %s22 = sadd.s32 1, %s17
    %p23 = scmp.ge.s32.totalorder %s22, 1
    %s24 = scalar_select %p23, 0, %s22
    %s25 = sadd.s32 1, %s16
    %s26 = scalar_select %p23, %s25, %s16
    %p27 = scmp.ge.s32.totalorder %s26, 2
    %s28 = scalar_select %p27, 0, %s26
    %s29 = ssub.s32 %s16, %s28
    %s30 = ssub.s32 %s17, %s24
    %s31 = sor.u32 %s29, %s30
    %p32 = scmp.eq.s32.totalorder %s31, 0
    %s34 = sadd.s32 %s33, 1
    %s35 = scalar_select %p32, %s33, %s34
    %p38 = pneg %p32
    %p39 = scmp.eq.s32.totalorder %s9, 1
    %p40 = por %p38, %p39
    %p41 = scmp.ne.s32.totalorder %s33, %s36
    %p42 = scmp.eq.s32.totalorder %s9, 0
    %p43 = por %p41, %p42
    %p44 = scmp.ne.s32.totalorder %s33, %s36
    %p45 = scmp.eq.s32.totalorder %s14, 1
    %p46 = por %p44, %p45
    %p47 = scmp.ne.s32.totalorder %s36, %s37
    %p48 = scmp.eq.s32.totalorder %s14, 0
    %p49 = por %p47, %p48
    %p50 = scmp.ne.s32.totalorder %s36, %s37
    %p51 = scmp.eq.s32.totalorder %s15, 1
    %p52 = por %p50, %p51
    %p54 = scmp.ne.s32.totalorder %s37, %s53
    %p55 = scmp.eq.s32.totalorder %s15, 0
    %p56 = por %p54, %p55
    %s58 = sadd.s32 %s57, 1
    %p61 = scmp.eq.s32.totalorder %s9, 1
    %p62 = scmp.ne.s32.totalorder %s57, %s59
    %p63 = scmp.eq.s32.totalorder %s9, 0
    %p64 = por %p62, %p63
    %p65 = scmp.ne.s32.totalorder %s57, %s59
    %p66 = scmp.eq.s32.totalorder %s14, 1
    %p67 = por %p65, %p66
    %p68 = scmp.ne.s32.totalorder %s59, %s60
    %p69 = scmp.eq.s32.totalorder %s14, 0
    %p70 = por %p68, %p69
    %p71 = scmp.ne.s32.totalorder %s59, %s60
    %p72 = scmp.eq.s32.totalorder %s15, 1
    %p73 = por %p71, %p72
    %p75 = scmp.ne.s32.totalorder %s60, %s74
    %p76 = scmp.eq.s32.totalorder %s15, 0
    %p77 = por %p75, %p76
    %s79 = sadd.s32 %s78, 1
    %p82 = scmp.eq.s32.totalorder %s9, 1
    %p83 = scmp.ne.s32.totalorder %s78, %s80
    %p84 = scmp.eq.s32.totalorder %s9, 0
    %p85 = por %p83, %p84
    %p86 = scmp.ne.s32.totalorder %s78, %s80
    %p87 = scmp.eq.s32.totalorder %s14, 1
    %p88 = por %p86, %p87
    %p89 = scmp.ne.s32.totalorder %s80, %s81
    %p90 = scmp.eq.s32.totalorder %s14, 0
    %p91 = por %p89, %p90
    %p92 = scmp.ne.s32.totalorder %s80, %s81
    %p93 = scmp.eq.s32.totalorder %s15, 1
    %p94 = por %p92, %p93
    %p96 = scmp.ne.s32.totalorder %s81, %s95
    %p97 = scmp.eq.s32.totalorder %s15, 0
    %p98 = por %p96, %p97
    %s99 = ssub.s32 %s16, %s28
    %s100 = ssub.s32 %s17, %s24
    %s101 = sor.u32 %s99, %s100
    %p102 = scmp.eq.s32.totalorder %s101, 0
    %s104 = sadd.s32 %s103, 1
    %s105 = scalar_select %p102, %s103, %s104
    %p108 = pneg %p102
    %p109 = scmp.eq.s32.totalorder %s9, 1
    %p110 = por %p108, %p109
    %p111 = scmp.ne.s32.totalorder %s103, %s106
    %p112 = scmp.eq.s32.totalorder %s9, 0
    %p113 = por %p111, %p112
    %p114 = scmp.ne.s32.totalorder %s103, %s106
    %p115 = scmp.eq.s32.totalorder %s14, 1
    %p116 = por %p114, %p115
    %p117 = scmp.ne.s32.totalorder %s106, %s107
    %p118 = scmp.eq.s32.totalorder %s14, 0
    %p119 = por %p117, %p118
    %p120 = scmp.ne.s32.totalorder %s106, %s107
    %p121 = scmp.eq.s32.totalorder %s15, 1
    %p122 = por %p120, %p121
    %p124 = scmp.ne.s32.totalorder %s107, %s123
    %p125 = scmp.eq.s32.totalorder %s15, 0
    %p126 = por %p124, %p125
    %p127 = scmp.le.s32.totalorder 1, %s9
    %p128 = scmp.lt.s32.totalorder %s9, 3
    %p129 = pnand %p127, %p128
    %p130 = pneg %p129
    // Predicated region
    $region9: #{unet_forward.9} parent=5 // pred_check
      _
    $region10: #{unet_forward.9} parent=5 // pred_check_branch
      %132 = sbr.rel (%p129) target = $region12
    $region11: #{unet_forward.9} parent=5 // pred_region
      %s133 = ssub.s32 %s9, 1
      // Predicated region
      $region13: #{unet_forward.9} parent=11 // pred_check
        %p134 = pneg %p70
      $region14: #{unet_forward.9} parent=11 // pred_check_branch
        %136 = sbr.rel (%p134) target = $region16
      $region15: #{unet_forward.9} parent=11 // pred_region
        _
      $region16: #{unet_forward.9} parent=11 // pred_fallthru
        _
      // Predicated region
      $region17: #{unet_forward.9} parent=11 // pred_check
        %p137 = pneg %p91
      $region18: #{unet_forward.9} parent=11 // pred_check_branch
        %139 = sbr.rel (%p137) target = $region20
      $region19: #{unet_forward.9} parent=11 // pred_region
        _
      $region20: #{unet_forward.9} parent=11 // pred_fallthru
        _
    $region12: #{unet_forward.9} parent=5 // pred_fallthru
      _
    %p140 = scmp.lt.s32.totalorder %s9, 2
    // Predicated region
    $region21: #{unet_forward.9} parent=5 // pred_check
      %p141 = pneg %p140
    $region22: #{unet_forward.9} parent=5 // pred_check_branch
      %143 = sbr.rel (%p141) target = $region24
    $region23: #{unet_forward.9} parent=5 // pred_region
      // Predicated region
      $region25: #{unet_forward.9} parent=23 // pred_check
        %p144 = pneg %p43
      $region26: #{unet_forward.9} parent=23 // pred_check_branch
        %146 = sbr.rel (%p144) target = $region28
      $region27: #{unet_forward.9} parent=23 // pred_region
        %s147 = smul.u32 32, %s17
        %p148 = scmp.lt.s32.totalorder %s16, 1
        %s149 = scalar_select %p148, %s16, 1
        %p150 = scmp.lt.s32.totalorder %s147, 31
        %s151 = scalar_select %p150, %s147, 31
        %s152 = smul.addr %s149, 256
        %s153 = sadd.s32 %s151, %s152
        %s154 = smul.addr %s153, 4
        %s155 = scalar_lea.vmem %s0, %s154
        %s156 = smul.u32 32, %s17
      $region28: #{unet_forward.9} parent=23 // pred_fallthru
        _
    $region24: #{unet_forward.9} parent=5 // pred_fallthru
      _
    %p157 = scmp.le.s32.totalorder 1, %s9
    %p158 = scmp.lt.s32.totalorder %s9, 3
    %p159 = pnand %p157, %p158
    %p160 = pneg %p159
    // Predicated region
    $region29: #{unet_forward.9} parent=5 // pred_check
      _
    $region30: #{unet_forward.9} parent=5 // pred_check_branch
      %162 = sbr.rel (%p159) target = $region32
    $region31: #{unet_forward.9} parent=5 // pred_region
      %s163 = ssub.s32 %s9, 1
      %s164 = smul.u32 32, %s19
      %p165 = scmp.lt.s32.totalorder %s18, 1
      %s166 = scalar_select %p165, %s18, 1
      %p167 = scmp.lt.s32.totalorder %s164, 31
      %s168 = scalar_select %p167, %s164, 31
      %s169 = smul.addr %s166, 256
      %s170 = sadd.s32 %s168, %s169
      %s171 = smul.addr %s170, 4
      %s172 = scalar_lea.vmem %s0, %s171
      %p173 = pneg %p49
      %p174 = pneg %p46
      %p175 = pneg %p70
      %p176 = pneg %p67
      %p177 = pneg %p91
      %p178 = pneg %p88
      %p179 = pneg %p119
      %p180 = pneg %p116
      %s181 = smul.u32 32, %s19
      %p182 = scmp.lt.s32.totalorder %s18, 1
      %s183 = scalar_select %p182, %s18, 1
      %p184 = scmp.lt.s32.totalorder %s181, 31
      %s185 = scalar_select %p184, %s181, 31
      %s186 = smul.addr %s183, 64
      %s187 = sadd.s32 %s185, %s186
      %s188 = smul.addr %s187, 8
      %s189 = scalar_lea.vmem %s3, %s188
      %s190 = smul.u32 32, %s19
      %p191 = scmp.lt.s32.totalorder %s18, 1
      %s192 = scalar_select %p191, %s18, 1
      %p193 = scmp.lt.s32.totalorder %s190, 31
      %s194 = scalar_select %p193, %s190, 31
      %s195 = smul.addr %s192, 256
      %s196 = sadd.s32 %s194, %s195
      %s197 = smul.addr %s196, 4
      %s198 = scalar_lea.vmem %s0, %s197
      %s199 = smul.u32 32, %s19
      %s200 = smul.u32 32, %s19
      %p201 = scmp.lt.s32.totalorder %s18, 1
      %s202 = scalar_select %p201, %s18, 1
      %p203 = scmp.lt.s32.totalorder %s200, 31
      %s204 = scalar_select %p203, %s200, 31
      %s205 = smul.addr %s202, 64
      %s206 = sadd.s32 %s204, %s205
      %s207 = smul.addr %s206, 8
      %s208 = scalar_lea.vmem %s3, %s207
      %s209 = smul.u32 32, %s19
      %v211 = vld [vmem:[%s1] sm:$0xf]
      %v212 = vld [vmem:[%s1 + $0x4] sm:$0xf]
      %v213 = vld [vmem:[%s198] sm:$0xff]
      %v214 = vld [vmem:[%s198 + $0x8] sm:$0xff]
      %v215 = vld [vmem:[%s198 + $0x10] sm:$0xff]
      %v216 = vld [vmem:[%s198 + $0x18] sm:$0xff]
      %v217 = vld [vmem:[%s198 + $0x20] sm:$0xff]
      %v218 = vld [vmem:[%s198 + $0x28] sm:$0xff]
      %v219 = vld [vmem:[%s198 + $0x30] sm:$0xff]
      %v220 = vld [vmem:[%s198 + $0x38] sm:$0xff]
      %v221 = vld [vmem:[%s198 + $0x40] sm:$0xff]
      %v222 = vld [vmem:[%s198 + $0x48] sm:$0xff]
      %v223 = vld [vmem:[%s198 + $0x50] sm:$0xff]
      %v224 = vld [vmem:[%s198 + $0x58] sm:$0xff]
      %v225 = vld [vmem:[%s198 + $0x60] sm:$0xff]
      %v226 = vld [vmem:[%s198 + $0x68] sm:$0xff]
      %v227 = vld [vmem:[%s198 + $0x70] sm:$0xff]
      %v228 = vld [vmem:[%s198 + $0x78] sm:$0xff]
      %v229 = vld [vmem:[%s198 + $0x80] sm:$0xff]
      %v230 = vld [vmem:[%s198 + $0x88] sm:$0xff]
      %v231 = vld [vmem:[%s198 + $0x90] sm:$0xff]
      %v232 = vld [vmem:[%s198 + $0x98] sm:$0xff]
      %v233 = vld [vmem:[%s198 + $0xa0] sm:$0xff]
      %v234 = vld [vmem:[%s198 + $0xa8] sm:$0xff]
      %v235 = vld [vmem:[%s198 + $0xb0] sm:$0xff]
      %v236 = vld [vmem:[%s198 + $0xb8] sm:$0xff]
      %v237 = vld [vmem:[%s198 + $0xc0] sm:$0xff]
      %v238 = vld [vmem:[%s198 + $0xc8] sm:$0xff]
      %v239 = vld [vmem:[%s198 + $0xd0] sm:$0xff]
      %v240 = vld [vmem:[%s198 + $0xd8] sm:$0xff]
      %v241 = vld [vmem:[%s198 + $0xe0] sm:$0xff]
      %v242 = vld [vmem:[%s198 + $0xe8] sm:$0xff]
      %v243 = vld [vmem:[%s198 + $0xf0] sm:$0xff]
      %v244 = vld [vmem:[%s198 + $0xf8] sm:$0xff]
      %v245 = vld [vmem:[%s198 + $0x100] sm:$0xff]
      %v246 = vld [vmem:[%s198 + $0x108] sm:$0xff]
      %v247 = vld [vmem:[%s198 + $0x110] sm:$0xff]
      %v248 = vld [vmem:[%s198 + $0x118] sm:$0xff]
      %v249 = vld [vmem:[%s198 + $0x120] sm:$0xff]
      %v250 = vld [vmem:[%s198 + $0x128] sm:$0xff]
      %v251 = vld [vmem:[%s198 + $0x130] sm:$0xff]
      %v252 = vld [vmem:[%s198 + $0x138] sm:$0xff]
      %v253 = vld [vmem:[%s198 + $0x140] sm:$0xff]
      %v254 = vld [vmem:[%s198 + $0x148] sm:$0xff]
      %v255 = vld [vmem:[%s198 + $0x150] sm:$0xff]
      %v256 = vld [vmem:[%s198 + $0x158] sm:$0xff]
      %v257 = vld [vmem:[%s198 + $0x160] sm:$0xff]
      %v258 = vld [vmem:[%s198 + $0x168] sm:$0xff]
      %v259 = vld [vmem:[%s198 + $0x170] sm:$0xff]
      %v260 = vld [vmem:[%s198 + $0x178] sm:$0xff]
      %v261 = vld [vmem:[%s198 + $0x180] sm:$0xff]
      %v262 = vld [vmem:[%s198 + $0x188] sm:$0xff]
      %v263 = vld [vmem:[%s198 + $0x190] sm:$0xff]
      %v264 = vld [vmem:[%s198 + $0x198] sm:$0xff]
      %v265 = vld [vmem:[%s198 + $0x1a0] sm:$0xff]
      %v266 = vld [vmem:[%s198 + $0x1a8] sm:$0xff]
      %v267 = vld [vmem:[%s198 + $0x1b0] sm:$0xff]
      %v268 = vld [vmem:[%s198 + $0x1b8] sm:$0xff]
      %v269 = vld [vmem:[%s198 + $0x1c0] sm:$0xff]
      %v270 = vld [vmem:[%s198 + $0x1c8] sm:$0xff]
      %v271 = vld [vmem:[%s198 + $0x1d0] sm:$0xff]
      %v272 = vld [vmem:[%s198 + $0x1d8] sm:$0xff]
      %v273 = vld [vmem:[%s198 + $0x1e0] sm:$0xff]
      %v274 = vld [vmem:[%s198 + $0x1e8] sm:$0xff]
      %v275 = vld [vmem:[%s198 + $0x1f0] sm:$0xff]
      %v276 = vld [vmem:[%s198 + $0x1f8] sm:$0xff]
      %v277 = vld [vmem:[%s198 + $0x200] sm:$0xff]
      %v278 = vld [vmem:[%s198 + $0x208] sm:$0xff]
      %v279 = vld [vmem:[%s198 + $0x210] sm:$0xff]
      %v280 = vld [vmem:[%s198 + $0x218] sm:$0xff]
      %v281 = vld [vmem:[%s198 + $0x220] sm:$0xff]
      %v282 = vld [vmem:[%s198 + $0x228] sm:$0xff]
      %v283 = vld [vmem:[%s198 + $0x230] sm:$0xff]
      %v284 = vld [vmem:[%s198 + $0x238] sm:$0xff]
      %v285 = vld [vmem:[%s198 + $0x240] sm:$0xff]
      %v286 = vld [vmem:[%s198 + $0x248] sm:$0xff]
      %v287 = vld [vmem:[%s198 + $0x250] sm:$0xff]
      %v288 = vld [vmem:[%s198 + $0x258] sm:$0xff]
      %v289 = vld [vmem:[%s198 + $0x260] sm:$0xff]
      %v290 = vld [vmem:[%s198 + $0x268] sm:$0xff]
      %v291 = vld [vmem:[%s198 + $0x270] sm:$0xff]
      %v292 = vld [vmem:[%s198 + $0x278] sm:$0xff]
      %v293 = vld [vmem:[%s198 + $0x280] sm:$0xff]
      %v294 = vld [vmem:[%s198 + $0x288] sm:$0xff]
      %v295 = vld [vmem:[%s198 + $0x290] sm:$0xff]
      %v296 = vld [vmem:[%s198 + $0x298] sm:$0xff]
      %v297 = vld [vmem:[%s198 + $0x2a0] sm:$0xff]
      %v298 = vld [vmem:[%s198 + $0x2a8] sm:$0xff]
      %v299 = vld [vmem:[%s198 + $0x2b0] sm:$0xff]
      %v300 = vld [vmem:[%s198 + $0x2b8] sm:$0xff]
      %v301 = vld [vmem:[%s198 + $0x2c0] sm:$0xff]
      %v302 = vld [vmem:[%s198 + $0x2c8] sm:$0xff]
      %v303 = vld [vmem:[%s198 + $0x2d0] sm:$0xff]
      %v304 = vld [vmem:[%s198 + $0x2d8] sm:$0xff]
      %v305 = vld [vmem:[%s198 + $0x2e0] sm:$0xff]
      %v306 = vld [vmem:[%s198 + $0x2e8] sm:$0xff]
      %v307 = vld [vmem:[%s198 + $0x2f0] sm:$0xff]
      %v308 = vld [vmem:[%s198 + $0x2f8] sm:$0xff]
      %v309 = vld [vmem:[%s198 + $0x300] sm:$0xff]
      %v310 = vld [vmem:[%s198 + $0x308] sm:$0xff]
      %v311 = vld [vmem:[%s198 + $0x310] sm:$0xff]
      %v312 = vld [vmem:[%s198 + $0x318] sm:$0xff]
      %v313 = vld [vmem:[%s198 + $0x320] sm:$0xff]
      %v314 = vld [vmem:[%s198 + $0x328] sm:$0xff]
      %v315 = vld [vmem:[%s198 + $0x330] sm:$0xff]
      %v316 = vld [vmem:[%s198 + $0x338] sm:$0xff]
      %v317 = vld [vmem:[%s198 + $0x340] sm:$0xff]
      %v318 = vld [vmem:[%s198 + $0x348] sm:$0xff]
      %v319 = vld [vmem:[%s198 + $0x350] sm:$0xff]
      %v320 = vld [vmem:[%s198 + $0x358] sm:$0xff]
      %v321 = vld [vmem:[%s198 + $0x360] sm:$0xff]
      %v322 = vld [vmem:[%s198 + $0x368] sm:$0xff]
      %v323 = vld [vmem:[%s198 + $0x370] sm:$0xff]
      %v324 = vld [vmem:[%s198 + $0x378] sm:$0xff]
      %v325 = vld [vmem:[%s198 + $0x380] sm:$0xff]
      %v326 = vld [vmem:[%s198 + $0x388] sm:$0xff]
      %v327 = vld [vmem:[%s198 + $0x390] sm:$0xff]
      %v328 = vld [vmem:[%s198 + $0x398] sm:$0xff]
      %v329 = vld [vmem:[%s198 + $0x3a0] sm:$0xff]
      %v330 = vld [vmem:[%s198 + $0x3a8] sm:$0xff]
      %v331 = vld [vmem:[%s198 + $0x3b0] sm:$0xff]
      %v332 = vld [vmem:[%s198 + $0x3b8] sm:$0xff]
      %v333 = vld [vmem:[%s198 + $0x3c0] sm:$0xff]
      %v334 = vld [vmem:[%s198 + $0x3c8] sm:$0xff]
      %v335 = vld [vmem:[%s198 + $0x3d0] sm:$0xff]
      %v336 = vld [vmem:[%s198 + $0x3d8] sm:$0xff]
      %v337 = vld [vmem:[%s198 + $0x3e0] sm:$0xff]
      %v338 = vld [vmem:[%s198 + $0x3e8] sm:$0xff]
      %v339 = vld [vmem:[%s198 + $0x3f0] sm:$0xff]
      %v340 = vld [vmem:[%s198 + $0x3f8] sm:$0xff]
      %v341 = vld [vmem:[%s2] sm:$0xff]
      %v342 = vld [vmem:[%s2 + $0x8] sm:$0xff]
      %344 = vset.pattern.permute.xlu0 0
      %345 = vperm.xlu0 %344, %v341
      %v346 = vpop.permute.xlu0 %345
      %349 = vset.pattern.permute.xlu0 0
      %350 = vperm.xlu0 %349, %v342
      %v351 = vpop.permute.xlu0 %350
      %v355 = vunpack.c.l.b16 %v211
      %v356 = vunpack.c.l.b16 %v212
      %v357 = vpack.c.b16 %v356, %v355
      %v486 = vunpack.c.l.b16 %v213
      %v487 = vunpack.c.h.b16 %v213
      %v488 = vunpack.c.l.b16 %v214
      %v489 = vunpack.c.h.b16 %v214
      %v490 = vunpack.c.l.b16 %v215
      %v491 = vunpack.c.h.b16 %v215
      %v492 = vunpack.c.l.b16 %v216
      %v493 = vunpack.c.h.b16 %v216
      %v494 = vunpack.c.l.b16 %v217
      %v495 = vunpack.c.h.b16 %v217
      %v496 = vunpack.c.l.b16 %v218
      %v497 = vunpack.c.h.b16 %v218
      %v498 = vunpack.c.l.b16 %v219
      %v499 = vunpack.c.h.b16 %v219
      %v500 = vunpack.c.l.b16 %v220
      %v501 = vunpack.c.h.b16 %v220
      %v502 = vunpack.c.l.b16 %v221
      %v503 = vunpack.c.h.b16 %v221
      %v504 = vunpack.c.l.b16 %v222
      %v505 = vunpack.c.h.b16 %v222
      %v506 = vunpack.c.l.b16 %v223
      %v507 = vunpack.c.h.b16 %v223
      %v508 = vunpack.c.l.b16 %v224
      %v509 = vunpack.c.h.b16 %v224
      %v510 = vunpack.c.l.b16 %v225
      %v511 = vunpack.c.h.b16 %v225
      %v512 = vunpack.c.l.b16 %v226
      %v513 = vunpack.c.h.b16 %v226
      %v514 = vunpack.c.l.b16 %v227
      %v515 = vunpack.c.h.b16 %v227
      %v516 = vunpack.c.l.b16 %v228
      %v517 = vunpack.c.h.b16 %v228
      %v518 = vunpack.c.l.b16 %v229
      %v519 = vunpack.c.h.b16 %v229
      %v520 = vunpack.c.l.b16 %v230
      %v521 = vunpack.c.h.b16 %v230
      %v522 = vunpack.c.l.b16 %v231
      %v523 = vunpack.c.h.b16 %v231
      %v524 = vunpack.c.l.b16 %v232
      %v525 = vunpack.c.h.b16 %v232
      %v526 = vunpack.c.l.b16 %v233
      %v527 = vunpack.c.h.b16 %v233
      %v528 = vunpack.c.l.b16 %v234
      %v529 = vunpack.c.h.b16 %v234
      %v530 = vunpack.c.l.b16 %v235
      %v531 = vunpack.c.h.b16 %v235
      %v532 = vunpack.c.l.b16 %v236
      %v533 = vunpack.c.h.b16 %v236
      %v534 = vunpack.c.l.b16 %v237
      %v535 = vunpack.c.h.b16 %v237
      %v536 = vunpack.c.l.b16 %v238
      %v537 = vunpack.c.h.b16 %v238
      %v538 = vunpack.c.l.b16 %v239
      %v539 = vunpack.c.h.b16 %v239
      %v540 = vunpack.c.l.b16 %v240
      %v541 = vunpack.c.h.b16 %v240
      %v542 = vunpack.c.l.b16 %v241
      %v543 = vunpack.c.h.b16 %v241
      %v544 = vunpack.c.l.b16 %v242
      %v545 = vunpack.c.h.b16 %v242
      %v546 = vunpack.c.l.b16 %v243
      %v547 = vunpack.c.h.b16 %v243
      %v548 = vunpack.c.l.b16 %v244
      %v549 = vunpack.c.h.b16 %v244
      %v550 = vunpack.c.l.b16 %v245
      %v551 = vunpack.c.h.b16 %v245
      %v552 = vunpack.c.l.b16 %v246
      %v553 = vunpack.c.h.b16 %v246
      %v554 = vunpack.c.l.b16 %v247
      %v555 = vunpack.c.h.b16 %v247
      %v556 = vunpack.c.l.b16 %v248
      %v557 = vunpack.c.h.b16 %v248
      %v558 = vunpack.c.l.b16 %v249
      %v559 = vunpack.c.h.b16 %v249
      %v560 = vunpack.c.l.b16 %v250
      %v561 = vunpack.c.h.b16 %v250
      %v562 = vunpack.c.l.b16 %v251
      %v563 = vunpack.c.h.b16 %v251
      %v564 = vunpack.c.l.b16 %v252
      %v565 = vunpack.c.h.b16 %v252
      %v566 = vunpack.c.l.b16 %v253
      %v567 = vunpack.c.h.b16 %v253
      %v568 = vunpack.c.l.b16 %v254
      %v569 = vunpack.c.h.b16 %v254
      %v570 = vunpack.c.l.b16 %v255
      %v571 = vunpack.c.h.b16 %v255
      %v572 = vunpack.c.l.b16 %v256
      %v573 = vunpack.c.h.b16 %v256
      %v574 = vunpack.c.l.b16 %v257
      %v575 = vunpack.c.h.b16 %v257
      %v576 = vunpack.c.l.b16 %v258
      %v577 = vunpack.c.h.b16 %v258
      %v578 = vunpack.c.l.b16 %v259
      %v579 = vunpack.c.h.b16 %v259
      %v580 = vunpack.c.l.b16 %v260
      %v581 = vunpack.c.h.b16 %v260
      %v582 = vunpack.c.l.b16 %v261
      %v583 = vunpack.c.h.b16 %v261
      %v584 = vunpack.c.l.b16 %v262
      %v585 = vunpack.c.h.b16 %v262
      %v586 = vunpack.c.l.b16 %v263
      %v587 = vunpack.c.h.b16 %v263
      %v588 = vunpack.c.l.b16 %v264
      %v589 = vunpack.c.h.b16 %v264
      %v590 = vunpack.c.l.b16 %v265
      %v591 = vunpack.c.h.b16 %v265
      %v592 = vunpack.c.l.b16 %v266
      %v593 = vunpack.c.h.b16 %v266
      %v594 = vunpack.c.l.b16 %v267
      %v595 = vunpack.c.h.b16 %v267
      %v596 = vunpack.c.l.b16 %v268
      %v597 = vunpack.c.h.b16 %v268
      %v598 = vunpack.c.l.b16 %v269
      %v599 = vunpack.c.h.b16 %v269
      %v600 = vunpack.c.l.b16 %v270
      %v601 = vunpack.c.h.b16 %v270
      %v602 = vunpack.c.l.b16 %v271
      %v603 = vunpack.c.h.b16 %v271
      %v604 = vunpack.c.l.b16 %v272
      %v605 = vunpack.c.h.b16 %v272
      %v606 = vunpack.c.l.b16 %v273
      %v607 = vunpack.c.h.b16 %v273
      %v608 = vunpack.c.l.b16 %v274
      %v609 = vunpack.c.h.b16 %v274
      %v610 = vunpack.c.l.b16 %v275
      %v611 = vunpack.c.h.b16 %v275
      %v612 = vunpack.c.l.b16 %v276
      %v613 = vunpack.c.h.b16 %v276
      %v614 = vunpack.c.l.b16 %v277
      %v615 = vunpack.c.h.b16 %v277
      %v616 = vunpack.c.l.b16 %v278
      %v617 = vunpack.c.h.b16 %v278
      %v618 = vunpack.c.l.b16 %v279
      %v619 = vunpack.c.h.b16 %v279
      %v620 = vunpack.c.l.b16 %v280
      %v621 = vunpack.c.h.b16 %v280
      %v622 = vunpack.c.l.b16 %v281
      %v623 = vunpack.c.h.b16 %v281
      %v624 = vunpack.c.l.b16 %v282
      %v625 = vunpack.c.h.b16 %v282
      %v626 = vunpack.c.l.b16 %v283
      %v627 = vunpack.c.h.b16 %v283
      %v628 = vunpack.c.l.b16 %v284
      %v629 = vunpack.c.h.b16 %v284
      %v630 = vunpack.c.l.b16 %v285
      %v631 = vunpack.c.h.b16 %v285
      %v632 = vunpack.c.l.b16 %v286
      %v633 = vunpack.c.h.b16 %v286
      %v634 = vunpack.c.l.b16 %v287
      %v635 = vunpack.c.h.b16 %v287
      %v636 = vunpack.c.l.b16 %v288
      %v637 = vunpack.c.h.b16 %v288
      %v638 = vunpack.c.l.b16 %v289
      %v639 = vunpack.c.h.b16 %v289
      %v640 = vunpack.c.l.b16 %v290
      %v641 = vunpack.c.h.b16 %v290
      %v642 = vunpack.c.l.b16 %v291
      %v643 = vunpack.c.h.b16 %v291
      %v644 = vunpack.c.l.b16 %v292
      %v645 = vunpack.c.h.b16 %v292
      %v646 = vunpack.c.l.b16 %v293
      %v647 = vunpack.c.h.b16 %v293
      %v648 = vunpack.c.l.b16 %v294
      %v649 = vunpack.c.h.b16 %v294
      %v650 = vunpack.c.l.b16 %v295
      %v651 = vunpack.c.h.b16 %v295
      %v652 = vunpack.c.l.b16 %v296
      %v653 = vunpack.c.h.b16 %v296
      %v654 = vunpack.c.l.b16 %v297
      %v655 = vunpack.c.h.b16 %v297
      %v656 = vunpack.c.l.b16 %v298
      %v657 = vunpack.c.h.b16 %v298
      %v658 = vunpack.c.l.b16 %v299
      %v659 = vunpack.c.h.b16 %v299
      %v660 = vunpack.c.l.b16 %v300
      %v661 = vunpack.c.h.b16 %v300
      %v662 = vunpack.c.l.b16 %v301
      %v663 = vunpack.c.h.b16 %v301
      %v664 = vunpack.c.l.b16 %v302
      %v665 = vunpack.c.h.b16 %v302
      %v666 = vunpack.c.l.b16 %v303
      %v667 = vunpack.c.h.b16 %v303
      %v668 = vunpack.c.l.b16 %v304
      %v669 = vunpack.c.h.b16 %v304
      %v670 = vunpack.c.l.b16 %v305
      %v671 = vunpack.c.h.b16 %v305
      %v672 = vunpack.c.l.b16 %v306
      %v673 = vunpack.c.h.b16 %v306
      %v674 = vunpack.c.l.b16 %v307
      %v675 = vunpack.c.h.b16 %v307
      %v676 = vunpack.c.l.b16 %v308
      %v677 = vunpack.c.h.b16 %v308
      %v678 = vunpack.c.l.b16 %v309
      %v679 = vunpack.c.h.b16 %v309
      %v680 = vunpack.c.l.b16 %v310
      %v681 = vunpack.c.h.b16 %v310
      %v682 = vunpack.c.l.b16 %v311
      %v683 = vunpack.c.h.b16 %v311
      %v684 = vunpack.c.l.b16 %v312
      %v685 = vunpack.c.h.b16 %v312
      %v686 = vunpack.c.l.b16 %v313
      %v687 = vunpack.c.h.b16 %v313
      %v688 = vunpack.c.l.b16 %v314
      %v689 = vunpack.c.h.b16 %v314
      %v690 = vunpack.c.l.b16 %v315
      %v691 = vunpack.c.h.b16 %v315
      %v692 = vunpack.c.l.b16 %v316
      %v693 = vunpack.c.h.b16 %v316
      %v694 = vunpack.c.l.b16 %v317
      %v695 = vunpack.c.h.b16 %v317
      %v696 = vunpack.c.l.b16 %v318
      %v697 = vunpack.c.h.b16 %v318
      %v698 = vunpack.c.l.b16 %v319
      %v699 = vunpack.c.h.b16 %v319
      %v700 = vunpack.c.l.b16 %v320
      %v701 = vunpack.c.h.b16 %v320
      %v702 = vunpack.c.l.b16 %v321
      %v703 = vunpack.c.h.b16 %v321
      %v704 = vunpack.c.l.b16 %v322
      %v705 = vunpack.c.h.b16 %v322
      %v706 = vunpack.c.l.b16 %v323
      %v707 = vunpack.c.h.b16 %v323
      %v708 = vunpack.c.l.b16 %v324
      %v709 = vunpack.c.h.b16 %v324
      %v710 = vunpack.c.l.b16 %v325
      %v711 = vunpack.c.h.b16 %v325
      %v712 = vunpack.c.l.b16 %v326
      %v713 = vunpack.c.h.b16 %v326
      %v714 = vunpack.c.l.b16 %v327
      %v715 = vunpack.c.h.b16 %v327
      %v716 = vunpack.c.l.b16 %v328
      %v717 = vunpack.c.h.b16 %v328
      %v718 = vunpack.c.l.b16 %v329
      %v719 = vunpack.c.h.b16 %v329
      %v720 = vunpack.c.l.b16 %v330
      %v721 = vunpack.c.h.b16 %v330
      %v722 = vunpack.c.l.b16 %v331
      %v723 = vunpack.c.h.b16 %v331
      %v724 = vunpack.c.l.b16 %v332
      %v725 = vunpack.c.h.b16 %v332
      %v726 = vunpack.c.l.b16 %v333
      %v727 = vunpack.c.h.b16 %v333
      %v728 = vunpack.c.l.b16 %v334
      %v729 = vunpack.c.h.b16 %v334
      %v730 = vunpack.c.l.b16 %v335
      %v731 = vunpack.c.h.b16 %v335
      %v732 = vunpack.c.l.b16 %v336
      %v733 = vunpack.c.h.b16 %v336
      %v734 = vunpack.c.l.b16 %v337
      %v735 = vunpack.c.h.b16 %v337
      %v736 = vunpack.c.l.b16 %v338
      %v737 = vunpack.c.h.b16 %v338
      %v738 = vunpack.c.l.b16 %v339
      %v739 = vunpack.c.h.b16 %v339
      %v740 = vunpack.c.l.b16 %v340
      %v741 = vunpack.c.h.b16 %v340
      %v742 = vpack.c.b16 %v518, %v486
      %v743 = vpack.c.b16 %v519, %v487
      %v744 = vpack.c.b16 %v520, %v488
      %v745 = vpack.c.b16 %v521, %v489
      %v746 = vpack.c.b16 %v522, %v490
      %v747 = vpack.c.b16 %v523, %v491
      %v748 = vpack.c.b16 %v524, %v492
      %v749 = vpack.c.b16 %v525, %v493
      %v750 = vpack.c.b16 %v526, %v494
      %v751 = vpack.c.b16 %v527, %v495
      %v752 = vpack.c.b16 %v528, %v496
      %v753 = vpack.c.b16 %v529, %v497
      %v754 = vpack.c.b16 %v530, %v498
      %v755 = vpack.c.b16 %v531, %v499
      %v756 = vpack.c.b16 %v532, %v500
      %v757 = vpack.c.b16 %v533, %v501
      %v758 = vpack.c.b16 %v534, %v502
      %v759 = vpack.c.b16 %v535, %v503
      %v760 = vpack.c.b16 %v536, %v504
      %v761 = vpack.c.b16 %v537, %v505
      %v762 = vpack.c.b16 %v538, %v506
      %v763 = vpack.c.b16 %v539, %v507
      %v764 = vpack.c.b16 %v540, %v508
      %v765 = vpack.c.b16 %v541, %v509
      %v766 = vpack.c.b16 %v542, %v510
      %v767 = vpack.c.b16 %v543, %v511
      %v768 = vpack.c.b16 %v544, %v512
      %v769 = vpack.c.b16 %v545, %v513
      %v770 = vpack.c.b16 %v546, %v514
      %v771 = vpack.c.b16 %v547, %v515
      %v772 = vpack.c.b16 %v548, %v516
      %v773 = vpack.c.b16 %v549, %v517
      %v774 = vpack.c.b16 %v582, %v550
      %v775 = vpack.c.b16 %v583, %v551
      %v776 = vpack.c.b16 %v584, %v552
      %v777 = vpack.c.b16 %v585, %v553
      %v778 = vpack.c.b16 %v586, %v554
      %v779 = vpack.c.b16 %v587, %v555
      %v780 = vpack.c.b16 %v588, %v556
      %v781 = vpack.c.b16 %v589, %v557
      %v782 = vpack.c.b16 %v590, %v558
      %v783 = vpack.c.b16 %v591, %v559
      %v784 = vpack.c.b16 %v592, %v560
      %v785 = vpack.c.b16 %v593, %v561
      %v786 = vpack.c.b16 %v594, %v562
      %v787 = vpack.c.b16 %v595, %v563
      %v788 = vpack.c.b16 %v596, %v564
      %v789 = vpack.c.b16 %v597, %v565
      %v790 = vpack.c.b16 %v598, %v566
      %v791 = vpack.c.b16 %v599, %v567
      %v792 = vpack.c.b16 %v600, %v568
      %v793 = vpack.c.b16 %v601, %v569
      %v794 = vpack.c.b16 %v602, %v570
      %v795 = vpack.c.b16 %v603, %v571
      %v796 = vpack.c.b16 %v604, %v572
      %v797 = vpack.c.b16 %v605, %v573
      %v798 = vpack.c.b16 %v606, %v574
      %v799 = vpack.c.b16 %v607, %v575
      %v800 = vpack.c.b16 %v608, %v576
      %v801 = vpack.c.b16 %v609, %v577
      %v802 = vpack.c.b16 %v610, %v578
      %v803 = vpack.c.b16 %v611, %v579
      %v804 = vpack.c.b16 %v612, %v580
      %v805 = vpack.c.b16 %v613, %v581
      %v806 = vpack.c.b16 %v646, %v614
      %v807 = vpack.c.b16 %v647, %v615
      %v808 = vpack.c.b16 %v648, %v616
      %v809 = vpack.c.b16 %v649, %v617
      %v810 = vpack.c.b16 %v650, %v618
      %v811 = vpack.c.b16 %v651, %v619
      %v812 = vpack.c.b16 %v652, %v620
      %v813 = vpack.c.b16 %v653, %v621
      %v814 = vpack.c.b16 %v654, %v622
      %v815 = vpack.c.b16 %v655, %v623
      %v816 = vpack.c.b16 %v656, %v624
      %v817 = vpack.c.b16 %v657, %v625
      %v818 = vpack.c.b16 %v658, %v626
      %v819 = vpack.c.b16 %v659, %v627
      %v820 = vpack.c.b16 %v660, %v628
      %v821 = vpack.c.b16 %v661, %v629
      %v822 = vpack.c.b16 %v662, %v630
      %v823 = vpack.c.b16 %v663, %v631
      %v824 = vpack.c.b16 %v664, %v632
      %v825 = vpack.c.b16 %v665, %v633
      %v826 = vpack.c.b16 %v666, %v634
      %v827 = vpack.c.b16 %v667, %v635
      %v828 = vpack.c.b16 %v668, %v636
      %v829 = vpack.c.b16 %v669, %v637
      %v830 = vpack.c.b16 %v670, %v638
      %v831 = vpack.c.b16 %v671, %v639
      %v832 = vpack.c.b16 %v672, %v640
      %v833 = vpack.c.b16 %v673, %v641
      %v834 = vpack.c.b16 %v674, %v642
      %v835 = vpack.c.b16 %v675, %v643
      %v836 = vpack.c.b16 %v676, %v644
      %v837 = vpack.c.b16 %v677, %v645
      %v838 = vpack.c.b16 %v710, %v678
      %v839 = vpack.c.b16 %v711, %v679
      %v840 = vpack.c.b16 %v712, %v680
      %v841 = vpack.c.b16 %v713, %v681
      %v842 = vpack.c.b16 %v714, %v682
      %v843 = vpack.c.b16 %v715, %v683
      %v844 = vpack.c.b16 %v716, %v684
      %v845 = vpack.c.b16 %v717, %v685
      %v846 = vpack.c.b16 %v718, %v686
      %v847 = vpack.c.b16 %v719, %v687
      %v848 = vpack.c.b16 %v720, %v688
      %v849 = vpack.c.b16 %v721, %v689
      %v850 = vpack.c.b16 %v722, %v690
      %v851 = vpack.c.b16 %v723, %v691
      %v852 = vpack.c.b16 %v724, %v692
      %v853 = vpack.c.b16 %v725, %v693
      %v854 = vpack.c.b16 %v726, %v694
      %v855 = vpack.c.b16 %v727, %v695
      %v856 = vpack.c.b16 %v728, %v696
      %v857 = vpack.c.b16 %v729, %v697
      %v858 = vpack.c.b16 %v730, %v698
      %v859 = vpack.c.b16 %v731, %v699
      %v860 = vpack.c.b16 %v732, %v700
      %v861 = vpack.c.b16 %v733, %v701
      %v862 = vpack.c.b16 %v734, %v702
      %v863 = vpack.c.b16 %v735, %v703
      %v864 = vpack.c.b16 %v736, %v704
      %v865 = vpack.c.b16 %v737, %v705
      %v866 = vpack.c.b16 %v738, %v706
      %v867 = vpack.c.b16 %v739, %v707
      %v868 = vpack.c.b16 %v740, %v708
      %v869 = vpack.c.b16 %v741, %v709
      %vm998 = vcmask 523264
      %v1000 = vsel %vm998, %v357, 0
      %1002 = vmatprep.subr.bf16.mxu0 %v743
      %1003 = vmatpush1.bf16.msra.mxu0 %v742
      %1004 = vmatprep.subr.bf16.mxu0 %v775
      %1005 = vmatpush1.bf16.msra.mxu0 %v774
      %1006 = vmatprep.subr.bf16.mxu0 %v807
      %1007 = vmatpush1.bf16.msra.mxu0 %v806
      %1008 = vmatprep.subr.bf16.mxu0 %v839
      %1009 = vmatpush1.bf16.msra.mxu0 %v838
      %1010 = vmatprep.subr.bf16.mxu0 0
      %1011 = vmatpush1.bf16.msra.mxu0 0
      %1012 = vmatprep.subr.bf16.mxu0 0
      %1013 = vmatpush1.bf16.msra.mxu0 0
      %1014 = vmatprep.subr.bf16.mxu0 0
      %1015 = vmatpush1.bf16.msra.mxu0 0
      %1016 = vmatprep.subr.bf16.mxu0 0
      %1017 = vmatpush1.bf16.msra.mxu0 0
      %1018 = vmatprep.subr.bf16.mxu0 0
      %1019 = vmatpush1.bf16.msra.mxu0 0
      %1020 = vmatprep.subr.bf16.mxu0 0
      %1021 = vmatpush1.bf16.msra.mxu0 0
      %1022 = vmatprep.subr.bf16.mxu0 0
      %1023 = vmatpush1.bf16.msra.mxu0 0
      %1024 = vmatprep.subr.bf16.mxu0 0
      %1025 = vmatpush1.bf16.msra.mxu0 0
      %1026 = vmatprep.subr.bf16.mxu0 0
      %1027 = vmatpush1.bf16.msra.mxu0 0
      %1028 = vmatprep.subr.bf16.mxu0 0
      %1029 = vmatpush1.bf16.msra.mxu0 0
      %1030 = vmatprep.subr.bf16.mxu0 0
      %1031 = vmatpush1.bf16.msra.mxu0 0
      %1032 = vmatprep.subr.bf16.mxu0 0
      %1033 = vmatpush1.bf16.msra.mxu0 0
      %1034 = vmatprep.mubr.bf16.mxu0 0
      %1035 = vmatmul.mubr.bf16.gmra.mrb[0].mxu0 %v1000
      %v1036 = vpop.f32.mrb[0].mxu0
      %v1037 = vadd.f32 %v346, %v1036
      %v1038 = vpop.f32.mrb[0].mxu0
      %v1039 = vadd.f32 %v346, %v1038
      %v1040 = vpop.f32.mrb[0].mxu0
      %v1041 = vadd.f32 %v351, %v1040
      %v1042 = vpop.f32.mrb[0].mxu0
      %v1043 = vadd.f32 %v351, %v1042
      %1044 = vdwg.mxu0
      %1045 = vmatprep.subr.bf16.mxu0 %v745
      %1046 = vmatpush1.bf16.msra.mxu0 %v744
      %1047 = vmatprep.subr.bf16.mxu0 %v777
      %1048 = vmatpush1.bf16.msra.mxu0 %v776
      %1049 = vmatprep.subr.bf16.mxu0 %v809
      %1050 = vmatpush1.bf16.msra.mxu0 %v808
      %1051 = vmatprep.subr.bf16.mxu0 %v841
      %1052 = vmatpush1.bf16.msra.mxu0 %v840
      %1053 = vmatprep.subr.bf16.mxu0 0
      %1054 = vmatpush1.bf16.msra.mxu0 0
      %1055 = vmatprep.subr.bf16.mxu0 0
      %1056 = vmatpush1.bf16.msra.mxu0 0
      %1057 = vmatprep.subr.bf16.mxu0 0
      %1058 = vmatpush1.bf16.msra.mxu0 0
      %1059 = vmatprep.subr.bf16.mxu0 0
      %1060 = vmatpush1.bf16.msra.mxu0 0
      %1061 = vmatprep.subr.bf16.mxu0 0
      %1062 = vmatpush1.bf16.msra.mxu0 0
      %1063 = vmatprep.subr.bf16.mxu0 0
      %1064 = vmatpush1.bf16.msra.mxu0 0
      %1065 = vmatprep.subr.bf16.mxu0 0
      %1066 = vmatpush1.bf16.msra.mxu0 0
      %1067 = vmatprep.subr.bf16.mxu0 0
      %1068 = vmatpush1.bf16.msra.mxu0 0
      %1069 = vmatprep.subr.bf16.mxu0 0
      %1070 = vmatpush1.bf16.msra.mxu0 0
      %1071 = vmatprep.subr.bf16.mxu0 0
      %1072 = vmatpush1.bf16.msra.mxu0 0
      %1073 = vmatprep.subr.bf16.mxu0 0
      %1074 = vmatpush1.bf16.msra.mxu0 0
      %1075 = vmatprep.subr.bf16.mxu0 0
      %1076 = vmatpush1.bf16.msra.mxu0 0
      %1077 = vmatprep.mubr.bf16.mxu0 0
      %1078 = vmatmul.mubr.bf16.gmra.mrb[0].mxu0 %v1000
      %v1079 = vpop.f32.mrb[0].mxu0
      %v1080 = vadd.f32 %v346, %v1079
      %v1081 = vpop.f32.mrb[0].mxu0
      %v1082 = vadd.f32 %v346, %v1081
      %v1083 = vpop.f32.mrb[0].mxu0
      %v1084 = vadd.f32 %v351, %v1083
      %v1085 = vpop.f32.mrb[0].mxu0
      %v1086 = vadd.f32 %v351, %v1085
      %1087 = vdwg.mxu0
      %1088 = vmatprep.subr.bf16.mxu0 %v747
      %1089 = vmatpush1.bf16.msra.mxu0 %v746
      %1090 = vmatprep.subr.bf16.mxu0 %v779
      %1091 = vmatpush1.bf16.msra.mxu0 %v778
      %1092 = vmatprep.subr.bf16.mxu0 %v811
      %1093 = vmatpush1.bf16.msra.mxu0 %v810
      %1094 = vmatprep.subr.bf16.mxu0 %v843
      %1095 = vmatpush1.bf16.msra.mxu0 %v842
      %1096 = vmatprep.subr.bf16.mxu0 0
      %1097 = vmatpush1.bf16.msra.mxu0 0
      %1098 = vmatprep.subr.bf16.mxu0 0
      %1099 = vmatpush1.bf16.msra.mxu0 0
      %1100 = vmatprep.subr.bf16.mxu0 0
      %1101 = vmatpush1.bf16.msra.mxu0 0
      %1102 = vmatprep.subr.bf16.mxu0 0
      %1103 = vmatpush1.bf16.msra.mxu0 0
      %1104 = vmatprep.subr.bf16.mxu0 0
      %1105 = vmatpush1.bf16.msra.mxu0 0
      %1106 = vmatprep.subr.bf16.mxu0 0
      %1107 = vmatpush1.bf16.msra.mxu0 0
      %1108 = vmatprep.subr.bf16.mxu0 0
      %1109 = vmatpush1.bf16.msra.mxu0 0
      %1110 = vmatprep.subr.bf16.mxu0 0
      %1111 = vmatpush1.bf16.msra.mxu0 0
      %1112 = vmatprep.subr.bf16.mxu0 0
      %1113 = vmatpush1.bf16.msra.mxu0 0
      %1114 = vmatprep.subr.bf16.mxu0 0
      %1115 = vmatpush1.bf16.msra.mxu0 0
      %1116 = vmatprep.subr.bf16.mxu0 0
      %1117 = vmatpush1.bf16.msra.mxu0 0
      %1118 = vmatprep.subr.bf16.mxu0 0
      %1119 = vmatpush1.bf16.msra.mxu0 0
      %1120 = vmatprep.mubr.bf16.mxu0 0
      %1121 = vmatmul.mubr.bf16.gmra.mrb[0].mxu0 %v1000
      %v1122 = vpop.f32.mrb[0].mxu0
      %v1123 = vadd.f32 %v346, %v1122
      %v1124 = vpop.f32.mrb[0].mxu0
      %v1125 = vadd.f32 %v346, %v1124
      %v1126 = vpop.f32.mrb[0].mxu0
      %v1127 = vadd.f32 %v351, %v1126
      %v1128 = vpop.f32.mrb[0].mxu0
      %v1129 = vadd.f32 %v351, %v1128
      %1130 = vdwg.mxu0
      %1131 = vmatprep.subr.bf16.mxu0 %v749
      %1132 = vmatpush1.bf16.msra.mxu0 %v748
      %1133 = vmatprep.subr.bf16.mxu0 %v781
      %1134 = vmatpush1.bf16.msra.mxu0 %v780
      %1135 = vmatprep.subr.bf16.mxu0 %v813
      %1136 = vmatpush1.bf16.msra.mxu0 %v812
      %1137 = vmatprep.subr.bf16.mxu0 %v845
      %1138 = vmatpush1.bf16.msra.mxu0 %v844
      %1139 = vmatprep.subr.bf16.mxu0 0
      %1140 = vmatpush1.bf16.msra.mxu0 0
      %1141 = vmatprep.subr.bf16.mxu0 0
      %1142 = vmatpush1.bf16.msra.mxu0 0
      %1143 = vmatprep.subr.bf16.mxu0 0
      %1144 = vmatpush1.bf16.msra.mxu0 0
      %1145 = vmatprep.subr.bf16.mxu0 0
      %1146 = vmatpush1.bf16.msra.mxu0 0
      %1147 = vmatprep.subr.bf16.mxu0 0
      %1148 = vmatpush1.bf16.msra.mxu0 0
      %1149 = vmatprep.subr.bf16.mxu0 0
      %1150 = vmatpush1.bf16.msra.mxu0 0
      %1151 = vmatprep.subr.bf16.mxu0 0
      %1152 = vmatpush1.bf16.msra.mxu0 0
      %1153 = vmatprep.subr.bf16.mxu0 0
      %1154 = vmatpush1.bf16.msra.mxu0 0
      %1155 = vmatprep.subr.bf16.mxu0 0
      %1156 = vmatpush1.bf16.msra.mxu0 0
      %1157 = vmatprep.subr.bf16.mxu0 0
      %1158 = vmatpush1.bf16.msra.mxu0 0
      %1159 = vmatprep.subr.bf16.mxu0 0
      %1160 = vmatpush1.bf16.msra.mxu0 0
      %1161 = vmatprep.subr.bf16.mxu0 0
      %1162 = vmatpush1.bf16.msra.mxu0 0
      %1163 = vmatprep.mubr.bf16.mxu0 0
      %1164 = vmatmul.mubr.bf16.gmra.mrb[0].mxu0 %v1000
      %v1165 = vpop.f32.mrb[0].mxu0
      %v1166 = vadd.f32 %v346, %v1165
      %v1167 = vpop.f32.mrb[0].mxu0
      %v1168 = vadd.f32 %v346, %v1167
      %v1169 = vpop.f32.mrb[0].mxu0
      %v1170 = vadd.f32 %v351, %v1169
      %v1171 = vpop.f32.mrb[0].mxu0
      %v1172 = vadd.f32 %v351, %v1171
      %1173 = vdwg.mxu0
      %1174 = vmatprep.subr.bf16.mxu0 %v751
      %1175 = vmatpush1.bf16.msra.mxu0 %v750
      %1176 = vmatprep.subr.bf16.mxu0 %v783
      %1177 = vmatpush1.bf16.msra.mxu0 %v782
      %1178 = vmatprep.subr.bf16.mxu0 %v815
      %1179 = vmatpush1.bf16.msra.mxu0 %v814
      %1180 = vmatprep.subr.bf16.mxu0 %v847
      %1181 = vmatpush1.bf16.msra.mxu0 %v846
      %1182 = vmatprep.subr.bf16.mxu0 0
      %1183 = vmatpush1.bf16.msra.mxu0 0
      %1184 = vmatprep.subr.bf16.mxu0 0
      %1185 = vmatpush1.bf16.msra.mxu0 0
      %1186 = vmatprep.subr.bf16.mxu0 0
      %1187 = vmatpush1.bf16.msra.mxu0 0
      %1188 = vmatprep.subr.bf16.mxu0 0
      %1189 = vmatpush1.bf16.msra.mxu0 0
      %1190 = vmatprep.subr.bf16.mxu0 0
      %1191 = vmatpush1.bf16.msra.mxu0 0
      %1192 = vmatprep.subr.bf16.mxu0 0
      %1193 = vmatpush1.bf16.msra.mxu0 0
      %1194 = vmatprep.subr.bf16.mxu0 0
      %1195 = vmatpush1.bf16.msra.mxu0 0
      %1196 = vmatprep.subr.bf16.mxu0 0
      %1197 = vmatpush1.bf16.msra.mxu0 0
      %1198 = vmatprep.subr.bf16.mxu0 0
      %1199 = vmatpush1.bf16.msra.mxu0 0
      %1200 = vmatprep.subr.bf16.mxu0 0
      %1201 = vmatpush1.bf16.msra.mxu0 0
      %1202 = vmatprep.subr.bf16.mxu0 0
      %1203 = vmatpush1.bf16.msra.mxu0 0
      %1204 = vmatprep.subr.bf16.mxu0 0
      %1205 = vmatpush1.bf16.msra.mxu0 0
      %1206 = vmatprep.mubr.bf16.mxu0 0
      %1207 = vmatmul.mubr.bf16.gmra.mrb[0].mxu0 %v1000
      %v1208 = vpop.f32.mrb[0].mxu0
      %v1209 = vadd.f32 %v346, %v1208
      %v1210 = vpop.f32.mrb[0].mxu0
      %v1211 = vadd.f32 %v346, %v1210
      %v1212 = vpop.f32.mrb[0].mxu0
      %v1213 = vadd.f32 %v351, %v1212
      %v1214 = vpop.f32.mrb[0].mxu0
      %v1215 = vadd.f32 %v351, %v1214
      %1216 = vdwg.mxu0
      %1217 = vmatprep.subr.bf16.mxu0 %v753
      %1218 = vmatpush1.bf16.msra.mxu0 %v752
      %1219 = vmatprep.subr.bf16.mxu0 %v785
      %1220 = vmatpush1.bf16.msra.mxu0 %v784
      %1221 = vmatprep.subr.bf16.mxu0 %v817
      %1222 = vmatpush1.bf16.msra.mxu0 %v816
      %1223 = vmatprep.subr.bf16.mxu0 %v849
      %1224 = vmatpush1.bf16.msra.mxu0 %v848
      %1225 = vmatprep.subr.bf16.mxu0 0
      %1226 = vmatpush1.bf16.msra.mxu0 0
      %1227 = vmatprep.subr.bf16.mxu0 0
      %1228 = vmatpush1.bf16.msra.mxu0 0
      %1229 = vmatprep.subr.bf16.mxu0 0
      %1230 = vmatpush1.bf16.msra.mxu0 0
      %1231 = vmatprep.subr.bf16.mxu0 0
      %1232 = vmatpush1.bf16.msra.mxu0 0
      %1233 = vmatprep.subr.bf16.mxu0 0
      %1234 = vmatpush1.bf16.msra.mxu0 0
      %1235 = vmatprep.subr.bf16.mxu0 0
      %1236 = vmatpush1.bf16.msra.mxu0 0
      %1237 = vmatprep.subr.bf16.mxu0 0
      %1238 = vmatpush1.bf16.msra.mxu0 0
      %1239 = vmatprep.subr.bf16.mxu0 0
      %1240 = vmatpush1.bf16.msra.mxu0 0
      %1241 = vmatprep.subr.bf16.mxu0 0
      %1242 = vmatpush1.bf16.msra.mxu0 0
      %1243 = vmatprep.subr.bf16.mxu0 0
      %1244 = vmatpush1.bf16.msra.mxu0 0
      %1245 = vmatprep.subr.bf16.mxu0 0
      %1246 = vmatpush1.bf16.msra.mxu0 0
      %1247 = vmatprep.subr.bf16.mxu0 0
      %1248 = vmatpush1.bf16.msra.mxu0 0
      %1249 = vmatprep.mubr.bf16.mxu0 0
      %1250 = vmatmul.mubr.bf16.gmra.mrb[0].mxu0 %v1000
      %v1251 = vpop.f32.mrb[0].mxu0
      %v1252 = vadd.f32 %v346, %v1251
      %v1253 = vpop.f32.mrb[0].mxu0
      %v1254 = vadd.f32 %v346, %v1253
      %v1255 = vpop.f32.mrb[0].mxu0
      %v1256 = vadd.f32 %v351, %v1255
      %v1257 = vpop.f32.mrb[0].mxu0
      %v1258 = vadd.f32 %v351, %v1257
      %1259 = vdwg.mxu0
      %1260 = vmatprep.subr.bf16.mxu0 %v755
      %1261 = vmatpush1.bf16.msra.mxu0 %v754
      %1262 = vmatprep.subr.bf16.mxu0 %v787
      %1263 = vmatpush1.bf16.msra.mxu0 %v786
      %1264 = vmatprep.subr.bf16.mxu0 %v819
      %1265 = vmatpush1.bf16.msra.mxu0 %v818
      %1266 = vmatprep.subr.bf16.mxu0 %v851
      %1267 = vmatpush1.bf16.msra.mxu0 %v850
      %1268 = vmatprep.subr.bf16.mxu0 0
      %1269 = vmatpush1.bf16.msra.mxu0 0
      %1270 = vmatprep.subr.bf16.mxu0 0
      %1271 = vmatpush1.bf16.msra.mxu0 0
      %1272 = vmatprep.subr.bf16.mxu0 0
      %1273 = vmatpush1.bf16.msra.mxu0 0
      %1274 = vmatprep.subr.bf16.mxu0 0
      %1275 = vmatpush1.bf16.msra.mxu0 0
      %1276 = vmatprep.subr.bf16.mxu0 0
      %1277 = vmatpush1.bf16.msra.mxu0 0
      %1278 = vmatprep.subr.bf16.mxu0 0
      %1279 = vmatpush1.bf16.msra.mxu0 0
      %1280 = vmatprep.subr.bf16.mxu0 0
      %1281 = vmatpush1.bf16.msra.mxu0 0
      %1282 = vmatprep.subr.bf16.mxu0 0
      %1283 = vmatpush1.bf16.msra.mxu0 0
      %1284 = vmatprep.subr.bf16.mxu0 0
      %1285 = vmatpush1.bf16.msra.mxu0 0
      %1286 = vmatprep.subr.bf16.mxu0 0
      %1287 = vmatpush1.bf16.msra.mxu0 0
      %1288 = vmatprep.subr.bf16.mxu0 0
      %1289 = vmatpush1.bf16.msra.mxu0 0
      %1290 = vmatprep.subr.bf16.mxu0 0
      %1291 = vmatpush1.bf16.msra.mxu0 0
      %1292 = vmatprep.mubr.bf16.mxu0 0
      %1293 = vmatmul.mubr.bf16.gmra.mrb[0].mxu0 %v1000
      %v1294 = vpop.f32.mrb[0].mxu0
      %v1295 = vadd.f32 %v346, %v1294
      %v1296 = vpop.f32.mrb[0].mxu0
      %v1297 = vadd.f32 %v346, %v1296
      %v1298 = vpop.f32.mrb[0].mxu0
      %v1299 = vadd.f32 %v351, %v1298
      %v1300 = vpop.f32.mrb[0].mxu0
      %v1301 = vadd.f32 %v351, %v1300
      %1302 = vdwg.mxu0
      %1303 = vmatprep.subr.bf16.mxu0 %v757
      %1304 = vmatpush1.bf16.msra.mxu0 %v756
      %1305 = vmatprep.subr.bf16.mxu0 %v789
      %1306 = vmatpush1.bf16.msra.mxu0 %v788
      %1307 = vmatprep.subr.bf16.mxu0 %v821
      %1308 = vmatpush1.bf16.msra.mxu0 %v820
      %1309 = vmatprep.subr.bf16.mxu0 %v853
      %1310 = vmatpush1.bf16.msra.mxu0 %v852
      %1311 = vmatprep.subr.bf16.mxu0 0
      %1312 = vmatpush1.bf16.msra.mxu0 0
      %1313 = vmatprep.subr.bf16.mxu0 0
      %1314 = vmatpush1.bf16.msra.mxu0 0
      %1315 = vmatprep.subr.bf16.mxu0 0
      %1316 = vmatpush1.bf16.msra.mxu0 0
      %1317 = vmatprep.subr.bf16.mxu0 0
      %1318 = vmatpush1.bf16.msra.mxu0 0
      %1319 = vmatprep.subr.bf16.mxu0 0
      %1320 = vmatpush1.bf16.msra.mxu0 0
      %1321 = vmatprep.subr.bf16.mxu0 0
      %1322 = vmatpush1.bf16.msra.mxu0 0
      %1323 = vmatprep.subr.bf16.mxu0 0
      %1324 = vmatpush1.bf16.msra.mxu0 0
      %1325 = vmatprep.subr.bf16.mxu0 0
      %1326 = vmatpush1.bf16.msra.mxu0 0
      %1327 = vmatprep.subr.bf16.mxu0 0
      %1328 = vmatpush1.bf16.msra.mxu0 0
      %1329 = vmatprep.subr.bf16.mxu0 0
      %1330 = vmatpush1.bf16.msra.mxu0 0
      %1331 = vmatprep.subr.bf16.mxu0 0
      %1332 = vmatpush1.bf16.msra.mxu0 0
      %1333 = vmatprep.subr.bf16.mxu0 0
      %1334 = vmatpush1.bf16.msra.mxu0 0
      %1335 = vmatprep.mubr.bf16.mxu0 0
      %1336 = vmatmul.mubr.bf16.gmra.mrb[0].mxu0 %v1000
      %v1337 = vpop.f32.mrb[0].mxu0
      %v1338 = vadd.f32 %v346, %v1337
      %v1339 = vpop.f32.mrb[0].mxu0
      %v1340 = vadd.f32 %v346, %v1339
      %v1341 = vpop.f32.mrb[0].mxu0
      %v1342 = vadd.f32 %v351, %v1341
      %v1343 = vpop.f32.mrb[0].mxu0
      %v1344 = vadd.f32 %v351, %v1343
      %1345 = vdwg.mxu0
      %1346 = vmatprep.subr.bf16.mxu0 %v759
      %1347 = vmatpush1.bf16.msra.mxu0 %v758
      %1348 = vmatprep.subr.bf16.mxu0 %v791
      %1349 = vmatpush1.bf16.msra.mxu0 %v790
      %1350 = vmatprep.subr.bf16.mxu0 %v823
      %1351 = vmatpush1.bf16.msra.mxu0 %v822
      %1352 = vmatprep.subr.bf16.mxu0 %v855
      %1353 = vmatpush1.bf16.msra.mxu0 %v854
      %1354 = vmatprep.subr.bf16.mxu0 0
      %1355 = vmatpush1.bf16.msra.mxu0 0
      %1356 = vmatprep.subr.bf16.mxu0 0
      %1357 = vmatpush1.bf16.msra.mxu0 0
      %1358 = vmatprep.subr.bf16.mxu0 0
      %1359 = vmatpush1.bf16.msra.mxu0 0
      %1360 = vmatprep.subr.bf16.mxu0 0
      %1361 = vmatpush1.bf16.msra.mxu0 0
      %1362 = vmatprep.subr.bf16.mxu0 0
      %1363 = vmatpush1.bf16.msra.mxu0 0
      %1364 = vmatprep.subr.bf16.mxu0 0
      %1365 = vmatpush1.bf16.msra.mxu0 0
      %1366 = vmatprep.subr.bf16.mxu0 0
      %1367 = vmatpush1.bf16.msra.mxu0 0
      %1368 = vmatprep.subr.bf16.mxu0 0
      %1369 = vmatpush1.bf16.msra.mxu0 0
      %1370 = vmatprep.subr.bf16.mxu0 0
      %1371 = vmatpush1.bf16.msra.mxu0 0
      %1372 = vmatprep.subr.bf16.mxu0 0
      %1373 = vmatpush1.bf16.msra.mxu0 0
      %1374 = vmatprep.subr.bf16.mxu0 0
      %1375 = vmatpush1.bf16.msra.mxu0 0
      %1376 = vmatprep.subr.bf16.mxu0 0
      %1377 = vmatpush1.bf16.msra.mxu0 0
      %1378 = vmatprep.mubr.bf16.mxu0 0
      %1379 = vmatmul.mubr.bf16.gmra.mrb[0].mxu0 %v1000
      %v1380 = vpop.f32.mrb[0].mxu0
      %v1381 = vadd.f32 %v346, %v1380
      %v1382 = vpop.f32.mrb[0].mxu0
      %v1383 = vadd.f32 %v346, %v1382
      %v1384 = vpop.f32.mrb[0].mxu0
      %v1385 = vadd.f32 %v351, %v1384
      %v1386 = vpop.f32.mrb[0].mxu0
      %v1387 = vadd.f32 %v351, %v1386
      %1388 = vdwg.mxu0
      %1389 = vmatprep.subr.bf16.mxu0 %v761
      %1390 = vmatpush1.bf16.msra.mxu0 %v760
      %1391 = vmatprep.subr.bf16.mxu0 %v793
      %1392 = vmatpush1.bf16.msra.mxu0 %v792
      %1393 = vmatprep.subr.bf16.mxu0 %v825
      %1394 = vmatpush1.bf16.msra.mxu0 %v824
      %1395 = vmatprep.subr.bf16.mxu0 %v857
      %1396 = vmatpush1.bf16.msra.mxu0 %v856
      %1397 = vmatprep.subr.bf16.mxu0 0
      %1398 = vmatpush1.bf16.msra.mxu0 0
      %1399 = vmatprep.subr.bf16.mxu0 0
      %1400 = vmatpush1.bf16.msra.mxu0 0
      %1401 = vmatprep.subr.bf16.mxu0 0
      %1402 = vmatpush1.bf16.msra.mxu0 0
      %1403 = vmatprep.subr.bf16.mxu0 0
      %1404 = vmatpush1.bf16.msra.mxu0 0
      %1405 = vmatprep.subr.bf16.mxu0 0
      %1406 = vmatpush1.bf16.msra.mxu0 0
      %1407 = vmatprep.subr.bf16.mxu0 0
      %1408 = vmatpush1.bf16.msra.mxu0 0
      %1409 = vmatprep.subr.bf16.mxu0 0
      %1410 = vmatpush1.bf16.msra.mxu0 0
      %1411 = vmatprep.subr.bf16.mxu0 0
      %1412 = vmatpush1.bf16.msra.mxu0 0
      %1413 = vmatprep.subr.bf16.mxu0 0
      %1414 = vmatpush1.bf16.msra.mxu0 0
      %1415 = vmatprep.subr.bf16.mxu0 0
      %1416 = vmatpush1.bf16.msra.mxu0 0
      %1417 = vmatprep.subr.bf16.mxu0 0
      %1418 = vmatpush1.bf16.msra.mxu0 0
      %1419 = vmatprep.subr.bf16.mxu0 0
      %1420 = vmatpush1.bf16.msra.mxu0 0
      %1421 = vmatprep.mubr.bf16.mxu0 0
      %1422 = vmatmul.mubr.bf16.gmra.mrb[0].mxu0 %v1000
      %v1423 = vpop.f32.mrb[0].mxu0
      %v1424 = vadd.f32 %v346, %v1423
      %v1425 = vpop.f32.mrb[0].mxu0
      %v1426 = vadd.f32 %v346, %v1425
      %v1427 = vpop.f32.mrb[0].mxu0
      %v1428 = vadd.f32 %v351, %v1427
      %v1429 = vpop.f32.mrb[0].mxu0
      %v1430 = vadd.f32 %v351, %v1429
      %1431 = vdwg.mxu0
      %1432 = vmatprep.subr.bf16.mxu0 %v763
      %1433 = vmatpush1.bf16.msra.mxu0 %v762
      %1434 = vmatprep.subr.bf16.mxu0 %v795
      %1435 = vmatpush1.bf16.msra.mxu0 %v794
      %1436 = vmatprep.subr.bf16.mxu0 %v827
      %1437 = vmatpush1.bf16.msra.mxu0 %v826
      %1438 = vmatprep.subr.bf16.mxu0 %v859
      %1439 = vmatpush1.bf16.msra.mxu0 %v858
      %1440 = vmatprep.subr.bf16.mxu0 0
      %1441 = vmatpush1.bf16.msra.mxu0 0
      %1442 = vmatprep.subr.bf16.mxu0 0
      %1443 = vmatpush1.bf16.msra.mxu0 0
      %1444 = vmatprep.subr.bf16.mxu0 0
      %1445 = vmatpush1.bf16.msra.mxu0 0
      %1446 = vmatprep.subr.bf16.mxu0 0
      %1447 = vmatpush1.bf16.msra.mxu0 0
      %1448 = vmatprep.subr.bf16.mxu0 0
      %1449 = vmatpush1.bf16.msra.mxu0 0
      %1450 = vmatprep.subr.bf16.mxu0 0
      %1451 = vmatpush1.bf16.msra.mxu0 0
      %1452 = vmatprep.subr.bf16.mxu0 0
      %1453 = vmatpush1.bf16.msra.mxu0 0
      %1454 = vmatprep.subr.bf16.mxu0 0
      %1455 = vmatpush1.bf16.msra.mxu0 0
      %1456 = vmatprep.subr.bf16.mxu0 0
      %1457 = vmatpush1.bf16.msra.mxu0 0
      %1458 = vmatprep.subr.bf16.mxu0 0
      %1459 = vmatpush1.bf16.msra.mxu0 0
      %1460 = vmatprep.subr.bf16.mxu0 0
      %1461 = vmatpush1.bf16.msra.mxu0 0
      %1462 = vmatprep.subr.bf16.mxu0 0
      %1463 = vmatpush1.bf16.msra.mxu0 0
      %1464 = vmatprep.mubr.bf16.mxu0 0
      %1465 = vmatmul.mubr.bf16.gmra.mrb[0].mxu0 %v1000
      %v1466 = vpop.f32.mrb[0].mxu0
      %v1467 = vadd.f32 %v346, %v1466
      %v1468 = vpop.f32.mrb[0].mxu0
      %v1469 = vadd.f32 %v346, %v1468
      %v1470 = vpop.f32.mrb[0].mxu0
      %v1471 = vadd.f32 %v351, %v1470
      %v1472 = vpop.f32.mrb[0].mxu0
      %v1473 = vadd.f32 %v351, %v1472
      %1474 = vdwg.mxu0
      %1475 = vmatprep.subr.bf16.mxu0 %v765
      %1476 = vmatpush1.bf16.msra.mxu0 %v764
      %1477 = vmatprep.subr.bf16.mxu0 %v797
      %1478 = vmatpush1.bf16.msra.mxu0 %v796
      %1479 = vmatprep.subr.bf16.mxu0 %v829
      %1480 = vmatpush1.bf16.msra.mxu0 %v828
      %1481 = vmatprep.subr.bf16.mxu0 %v861
      %1482 = vmatpush1.bf16.msra.mxu0 %v860
      %1483 = vmatprep.subr.bf16.mxu0 0
      %1484 = vmatpush1.bf16.msra.mxu0 0
      %1485 = vmatprep.subr.bf16.mxu0 0
      %1486 = vmatpush1.bf16.msra.mxu0 0
      %1487 = vmatprep.subr.bf16.mxu0 0
      %1488 = vmatpush1.bf16.msra.mxu0 0
      %1489 = vmatprep.subr.bf16.mxu0 0
      %1490 = vmatpush1.bf16.msra.mxu0 0
      %1491 = vmatprep.subr.bf16.mxu0 0
      %1492 = vmatpush1.bf16.msra.mxu0 0
      %1493 = vmatprep.subr.bf16.mxu0 0
      %1494 = vmatpush1.bf16.msra.mxu0 0
      %1495 = vmatprep.subr.bf16.mxu0 0
      %1496 = vmatpush1.bf16.msra.mxu0 0
      %1497 = vmatprep.subr.bf16.mxu0 0
      %1498 = vmatpush1.bf16.msra.mxu0 0
      %1499 = vmatprep.subr.bf16.mxu0 0
      %1500 = vmatpush1.bf16.msra.mxu0 0
      %1501 = vmatprep.subr.bf16.mxu0 0
      %1502 = vmatpush1.bf16.msra.mxu0 0
      %1503 = vmatprep.subr.bf16.mxu0 0
      %1504 = vmatpush1.bf16.msra.mxu0 0
      %1505 = vmatprep.subr.bf16.mxu0 0
      %1506 = vmatpush1.bf16.msra.mxu0 0
      %1507 = vmatprep.mubr.bf16.mxu0 0
      %1508 = vmatmul.mubr.bf16.gmra.mrb[0].mxu0 %v1000
      %v1509 = vpop.f32.mrb[0].mxu0
      %v1510 = vadd.f32 %v346, %v1509
      %v1511 = vpop.f32.mrb[0].mxu0
      %v1512 = vadd.f32 %v346, %v1511
      %v1513 = vpop.f32.mrb[0].mxu0
      %v1514 = vadd.f32 %v351, %v1513
      %v1515 = vpop.f32.mrb[0].mxu0
      %v1516 = vadd.f32 %v351, %v1515
      %1517 = vdwg.mxu0
      %1518 = vmatprep.subr.bf16.mxu0 %v767
      %1519 = vmatpush1.bf16.msra.mxu0 %v766
      %1520 = vmatprep.subr.bf16.mxu0 %v799
      %1521 = vmatpush1.bf16.msra.mxu0 %v798
      %1522 = vmatprep.subr.bf16.mxu0 %v831
      %1523 = vmatpush1.bf16.msra.mxu0 %v830
      %1524 = vmatprep.subr.bf16.mxu0 %v863
      %1525 = vmatpush1.bf16.msra.mxu0 %v862
      %1526 = vmatprep.subr.bf16.mxu0 0
      %1527 = vmatpush1.bf16.msra.mxu0 0
      %1528 = vmatprep.subr.bf16.mxu0 0
      %1529 = vmatpush1.bf16.msra.mxu0 0
      %1530 = vmatprep.subr.bf16.mxu0 0
      %1531 = vmatpush1.bf16.msra.mxu0 0
      %1532 = vmatprep.subr.bf16.mxu0 0
      %1533 = vmatpush1.bf16.msra.mxu0 0
      %1534 = vmatprep.subr.bf16.mxu0 0
      %1535 = vmatpush1.bf16.msra.mxu0 0
      %1536 = vmatprep.subr.bf16.mxu0 0
      %1537 = vmatpush1.bf16.msra.mxu0 0
      %1538 = vmatprep.subr.bf16.mxu0 0
      %1539 = vmatpush1.bf16.msra.mxu0 0
      %1540 = vmatprep.subr.bf16.mxu0 0
      %1541 = vmatpush1.bf16.msra.mxu0 0
      %1542 = vmatprep.subr.bf16.mxu0 0
      %1543 = vmatpush1.bf16.msra.mxu0 0
      %1544 = vmatprep.subr.bf16.mxu0 0
      %1545 = vmatpush1.bf16.msra.mxu0 0
      %1546 = vmatprep.subr.bf16.mxu0 0
      %1547 = vmatpush1.bf16.msra.mxu0 0
      %1548 = vmatprep.subr.bf16.mxu0 0
      %1549 = vmatpush1.bf16.msra.mxu0 0
      %1550 = vmatprep.mubr.bf16.mxu0 0
      %1551 = vmatmul.mubr.bf16.gmra.mrb[0].mxu0 %v1000
      %v1552 = vpop.f32.mrb[0].mxu0
      %v1553 = vadd.f32 %v346, %v1552
      %v1554 = vpop.f32.mrb[0].mxu0
      %v1555 = vadd.f32 %v346, %v1554
      %v1556 = vpop.f32.mrb[0].mxu0
      %v1557 = vadd.f32 %v351, %v1556
      %v1558 = vpop.f32.mrb[0].mxu0
      %v1559 = vadd.f32 %v351, %v1558
      %1560 = vdwg.mxu0
      %1561 = vmatprep.subr.bf16.mxu0 %v769
      %1562 = vmatpush1.bf16.msra.mxu0 %v768
      %1563 = vmatprep.subr.bf16.mxu0 %v801
      %1564 = vmatpush1.bf16.msra.mxu0 %v800
      %1565 = vmatprep.subr.bf16.mxu0 %v833
      %1566 = vmatpush1.bf16.msra.mxu0 %v832
      %1567 = vmatprep.subr.bf16.mxu0 %v865
      %1568 = vmatpush1.bf16.msra.mxu0 %v864
      %1569 = vmatprep.subr.bf16.mxu0 0
      %1570 = vmatpush1.bf16.msra.mxu0 0
      %1571 = vmatprep.subr.bf16.mxu0 0
      %1572 = vmatpush1.bf16.msra.mxu0 0
      %1573 = vmatprep.subr.bf16.mxu0 0
      %1574 = vmatpush1.bf16.msra.mxu0 0
      %1575 = vmatprep.subr.bf16.mxu0 0
      %1576 = vmatpush1.bf16.msra.mxu0 0
      %1577 = vmatprep.subr.bf16.mxu0 0
      %1578 = vmatpush1.bf16.msra.mxu0 0
      %1579 = vmatprep.subr.bf16.mxu0 0
      %1580 = vmatpush1.bf16.msra.mxu0 0
      %1581 = vmatprep.subr.bf16.mxu0 0
      %1582 = vmatpush1.bf16.msra.mxu0 0
      %1583 = vmatprep.subr.bf16.mxu0 0
      %1584 = vmatpush1.bf16.msra.mxu0 0
      %1585 = vmatprep.subr.bf16.mxu0 0
      %1586 = vmatpush1.bf16.msra.mxu0 0
      %1587 = vmatprep.subr.bf16.mxu0 0
      %1588 = vmatpush1.bf16.msra.mxu0 0
      %1589 = vmatprep.subr.bf16.mxu0 0
      %1590 = vmatpush1.bf16.msra.mxu0 0
      %1591 = vmatprep.subr.bf16.mxu0 0
      %1592 = vmatpush1.bf16.msra.mxu0 0
      %1593 = vmatprep.mubr.bf16.mxu0 0
      %1594 = vmatmul.mubr.bf16.gmra.mrb[0].mxu0 %v1000
      %v1595 = vpop.f32.mrb[0].mxu0
      %v1596 = vadd.f32 %v346, %v1595
      %v1597 = vpop.f32.mrb[0].mxu0
      %v1598 = vadd.f32 %v346, %v1597
      %v1599 = vpop.f32.mrb[0].mxu0
      %v1600 = vadd.f32 %v351, %v1599
      %v1601 = vpop.f32.mrb[0].mxu0
      %v1602 = vadd.f32 %v351, %v1601
      %1603 = vdwg.mxu0
      %1604 = vmatprep.subr.bf16.mxu0 %v771
      %1605 = vmatpush1.bf16.msra.mxu0 %v770
      %1606 = vmatprep.subr.bf16.mxu0 %v803
      %1607 = vmatpush1.bf16.msra.mxu0 %v802
      %1608 = vmatprep.subr.bf16.mxu0 %v835
      %1609 = vmatpush1.bf16.msra.mxu0 %v834
      %1610 = vmatprep.subr.bf16.mxu0 %v867
      %1611 = vmatpush1.bf16.msra.mxu0 %v866
      %1612 = vmatprep.subr.bf16.mxu0 0
      %1613 = vmatpush1.bf16.msra.mxu0 0
      %1614 = vmatprep.subr.bf16.mxu0 0
      %1615 = vmatpush1.bf16.msra.mxu0 0
      %1616 = vmatprep.subr.bf16.mxu0 0
      %1617 = vmatpush1.bf16.msra.mxu0 0
      %1618 = vmatprep.subr.bf16.mxu0 0
      %1619 = vmatpush1.bf16.msra.mxu0 0
      %1620 = vmatprep.subr.bf16.mxu0 0
      %1621 = vmatpush1.bf16.msra.mxu0 0
      %1622 = vmatprep.subr.bf16.mxu0 0
      %1623 = vmatpush1.bf16.msra.mxu0 0
      %1624 = vmatprep.subr.bf16.mxu0 0
      %1625 = vmatpush1.bf16.msra.mxu0 0
      %1626 = vmatprep.subr.bf16.mxu0 0
      %1627 = vmatpush1.bf16.msra.mxu0 0
      %1628 = vmatprep.subr.bf16.mxu0 0
      %1629 = vmatpush1.bf16.msra.mxu0 0
      %1630 = vmatprep.subr.bf16.mxu0 0
      %1631 = vmatpush1.bf16.msra.mxu0 0
      %1632 = vmatprep.subr.bf16.mxu0 0
      %1633 = vmatpush1.bf16.msra.mxu0 0
      %1634 = vmatprep.subr.bf16.mxu0 0
      %1635 = vmatpush1.bf16.msra.mxu0 0
      %1636 = vmatprep.mubr.bf16.mxu0 0
      %1637 = vmatmul.mubr.bf16.gmra.mrb[0].mxu0 %v1000
      %v1638 = vpop.f32.mrb[0].mxu0
      %v1639 = vadd.f32 %v346, %v1638
      %v1640 = vpop.f32.mrb[0].mxu0
      %v1641 = vadd.f32 %v346, %v1640
      %v1642 = vpop.f32.mrb[0].mxu0
      %v1643 = vadd.f32 %v351, %v1642
      %v1644 = vpop.f32.mrb[0].mxu0
      %v1645 = vadd.f32 %v351, %v1644
      %1646 = vdwg.mxu0
      %1647 = vmatprep.subr.bf16.mxu0 %v773
      %1648 = vmatpush1.bf16.msra.mxu0 %v772
      %1649 = vmatprep.subr.bf16.mxu0 %v805
      %1650 = vmatpush1.bf16.msra.mxu0 %v804
      %1651 = vmatprep.subr.bf16.mxu0 %v837
      %1652 = vmatpush1.bf16.msra.mxu0 %v836
      %1653 = vmatprep.subr.bf16.mxu0 %v869
      %1654 = vmatpush1.bf16.msra.mxu0 %v868
      %1655 = vmatprep.subr.bf16.mxu0 0
      %1656 = vmatpush1.bf16.msra.mxu0 0
      %1657 = vmatprep.subr.bf16.mxu0 0
      %1658 = vmatpush1.bf16.msra.mxu0 0
      %1659 = vmatprep.subr.bf16.mxu0 0
      %1660 = vmatpush1.bf16.msra.mxu0 0
      %1661 = vmatprep.subr.bf16.mxu0 0
      %1662 = vmatpush1.bf16.msra.mxu0 0
      %1663 = vmatprep.subr.bf16.mxu0 0
      %1664 = vmatpush1.bf16.msra.mxu0 0
      %1665 = vmatprep.subr.bf16.mxu0 0
      %1666 = vmatpush1.bf16.msra.mxu0 0
      %1667 = vmatprep.subr.bf16.mxu0 0
      %1668 = vmatpush1.bf16.msra.mxu0 0
      %1669 = vmatprep.subr.bf16.mxu0 0
      %1670 = vmatpush1.bf16.msra.mxu0 0
      %1671 = vmatprep.subr.bf16.mxu0 0
      %1672 = vmatpush1.bf16.msra.mxu0 0
      %1673 = vmatprep.subr.bf16.mxu0 0
      %1674 = vmatpush1.bf16.msra.mxu0 0
      %1675 = vmatprep.subr.bf16.mxu0 0
      %1676 = vmatpush1.bf16.msra.mxu0 0
      %1677 = vmatprep.subr.bf16.mxu0 0
      %1678 = vmatpush1.bf16.msra.mxu0 0
      %1679 = vmatprep.mubr.bf16.mxu0 0
      %1680 = vmatmul.mubr.bf16.gmra.mrb[0].mxu0 %v1000
      %v1681 = vpop.f32.mrb[0].mxu0
      %v1682 = vadd.f32 %v346, %v1681
      %v1683 = vpop.f32.mrb[0].mxu0
      %v1684 = vadd.f32 %v346, %v1683
      %v1685 = vpop.f32.mrb[0].mxu0
      %v1686 = vadd.f32 %v351, %v1685
      %v1687 = vpop.f32.mrb[0].mxu0
      %v1688 = vadd.f32 %v351, %v1687
      %1689 = vdwg.mxu0
      %1690 = vst [vmem:[%s208] sm:$0xff] %v1037
      %1691 = vst [vmem:[%s208 + $0x8] sm:$0xff] %v1039
      %1692 = vst [vmem:[%s208 + $0x10] sm:$0xff] %v1080
      %1693 = vst [vmem:[%s208 + $0x18] sm:$0xff] %v1082
      %1694 = vst [vmem:[%s208 + $0x20] sm:$0xff] %v1123
      %1695 = vst [vmem:[%s208 + $0x28] sm:$0xff] %v1125
      %1696 = vst [vmem:[%s208 + $0x30] sm:$0xff] %v1166
      %1697 = vst [vmem:[%s208 + $0x38] sm:$0xff] %v1168
      %1698 = vst [vmem:[%s208 + $0x40] sm:$0xff] %v1209
      %1699 = vst [vmem:[%s208 + $0x48] sm:$0xff] %v1211
      %1700 = vst [vmem:[%s208 + $0x50] sm:$0xff] %v1252
      %1701 = vst [vmem:[%s208 + $0x58] sm:$0xff] %v1254
      %1702 = vst [vmem:[%s208 + $0x60] sm:$0xff] %v1295
      %1703 = vst [vmem:[%s208 + $0x68] sm:$0xff] %v1297
      %1704 = vst [vmem:[%s208 + $0x70] sm:$0xff] %v1338
      %1705 = vst [vmem:[%s208 + $0x78] sm:$0xff] %v1340
      %1706 = vst [vmem:[%s208 + $0x80] sm:$0xff] %v1381
      %1707 = vst [vmem:[%s208 + $0x88] sm:$0xff] %v1383
      %1708 = vst [vmem:[%s208 + $0x90] sm:$0xff] %v1424
      %1709 = vst [vmem:[%s208 + $0x98] sm:$0xff] %v1426
      %1710 = vst [vmem:[%s208 + $0xa0] sm:$0xff] %v1467
      %1711 = vst [vmem:[%s208 + $0xa8] sm:$0xff] %v1469
      %1712 = vst [vmem:[%s208 + $0xb0] sm:$0xff] %v1510
      %1713 = vst [vmem:[%s208 + $0xb8] sm:$0xff] %v1512
      %1714 = vst [vmem:[%s208 + $0xc0] sm:$0xff] %v1553
      %1715 = vst [vmem:[%s208 + $0xc8] sm:$0xff] %v1555
      %1716 = vst [vmem:[%s208 + $0xd0] sm:$0xff] %v1596
      %1717 = vst [vmem:[%s208 + $0xd8] sm:$0xff] %v1598
      %1718 = vst [vmem:[%s208 + $0xe0] sm:$0xff] %v1639
      %1719 = vst [vmem:[%s208 + $0xe8] sm:$0xff] %v1641
      %1720 = vst [vmem:[%s208 + $0xf0] sm:$0xff] %v1682
      %1721 = vst [vmem:[%s208 + $0xf8] sm:$0xff] %v1684
      %1722 = vst [vmem:[%s208 + $0x100] sm:$0xff] %v1041
      %1723 = vst [vmem:[%s208 + $0x108] sm:$0xff] %v1043
      %1724 = vst [vmem:[%s208 + $0x110] sm:$0xff] %v1084
      %1725 = vst [vmem:[%s208 + $0x118] sm:$0xff] %v1086
      %1726 = vst [vmem:[%s208 + $0x120] sm:$0xff] %v1127
      %1727 = vst [vmem:[%s208 + $0x128] sm:$0xff] %v1129
      %1728 = vst [vmem:[%s208 + $0x130] sm:$0xff] %v1170
      %1729 = vst [vmem:[%s208 + $0x138] sm:$0xff] %v1172
      %1730 = vst [vmem:[%s208 + $0x140] sm:$0xff] %v1213
      %1731 = vst [vmem:[%s208 + $0x148] sm:$0xff] %v1215
      %1732 = vst [vmem:[%s208 + $0x150] sm:$0xff] %v1256
      %1733 = vst [vmem:[%s208 + $0x158] sm:$0xff] %v1258
      %1734 = vst [vmem:[%s208 + $0x160] sm:$0xff] %v1299
      %1735 = vst [vmem:[%s208 + $0x168] sm:$0xff] %v1301
      %1736 = vst [vmem:[%s208 + $0x170] sm:$0xff] %v1342
      %1737 = vst [vmem:[%s208 + $0x178] sm:$0xff] %v1344
      %1738 = vst [vmem:[%s208 + $0x180] sm:$0xff] %v1385
      %1739 = vst [vmem:[%s208 + $0x188] sm:$0xff] %v1387
      %1740 = vst [vmem:[%s208 + $0x190] sm:$0xff] %v1428
      %1741 = vst [vmem:[%s208 + $0x198] sm:$0xff] %v1430
      %1742 = vst [vmem:[%s208 + $0x1a0] sm:$0xff] %v1471
      %1743 = vst [vmem:[%s208 + $0x1a8] sm:$0xff] %v1473
      %1744 = vst [vmem:[%s208 + $0x1b0] sm:$0xff] %v1514
      %1745 = vst [vmem:[%s208 + $0x1b8] sm:$0xff] %v1516
      %1746 = vst [vmem:[%s208 + $0x1c0] sm:$0xff] %v1557
      %1747 = vst [vmem:[%s208 + $0x1c8] sm:$0xff] %v1559
      %1748 = vst [vmem:[%s208 + $0x1d0] sm:$0xff] %v1600
      %1749 = vst [vmem:[%s208 + $0x1d8] sm:$0xff] %v1602
      %1750 = vst [vmem:[%s208 + $0x1e0] sm:$0xff] %v1643
      %1751 = vst [vmem:[%s208 + $0x1e8] sm:$0xff] %v1645
      %1752 = vst [vmem:[%s208 + $0x1f0] sm:$0xff] %v1686
      %1753 = vst [vmem:[%s208 + $0x1f8] sm:$0xff] %v1688
      %s1754 = smul.u32 32, %s19
      %p1755 = scmp.lt.s32.totalorder %s18, 1
      %s1756 = scalar_select %p1755, %s18, 1
      %p1757 = scmp.lt.s32.totalorder %s1754, 31
      %s1758 = scalar_select %p1757, %s1754, 31
      %s1759 = smul.addr %s1756, 64
      %s1760 = sadd.s32 %s1758, %s1759
      %s1761 = smul.addr %s1760, 8
      %s1762 = scalar_lea.vmem %s3, %s1761
      // Predicated region
      $region33: #{unet_forward.9} parent=31 // pred_check
        %p1763 = pneg %p116
      $region34: #{unet_forward.9} parent=31 // pred_check_branch
        %1765 = sbr.rel (%p1763) target = $region36
      $region35: #{unet_forward.9} parent=31 // pred_region
        %s1766 = smul.u32 32, %s19
      $region36: #{unet_forward.9} parent=31 // pred_fallthru
        _
    $region32: #{unet_forward.9} parent=5 // pred_fallthru
      _
    %p1767 = scmp.le.s32.totalorder 2, %s9
    // Predicated region
    $region37: #{unet_forward.9} parent=5 // pred_check
      %p1768 = pneg %p1767
    $region38: #{unet_forward.9} parent=5 // pred_check_branch
      %1770 = sbr.rel (%p1768) target = $region40
    $region39: #{unet_forward.9} parent=5 // pred_region
      %s1771 = ssub.s32 %s9, 2
      // Predicated region
      $region41: #{unet_forward.9} parent=39 // pred_check
        %p1772 = pneg %p122
      $region42: #{unet_forward.9} parent=39 // pred_check_branch
        %1774 = sbr.rel (%p1772) target = $region44
      $region43: #{unet_forward.9} parent=39 // pred_region
        %s1775 = smul.u32 32, %s21
        %p1776 = scmp.lt.s32.totalorder %s20, 1
        %s1777 = scalar_select %p1776, %s20, 1
        %p1778 = scmp.lt.s32.totalorder %s1775, 31
        %s1779 = scalar_select %p1778, %s1775, 31
        %s1780 = smul.addr %s1777, 64
        %s1781 = sadd.s32 %s1779, %s1780
        %s1782 = smul.addr %s1781, 8
        %s1783 = scalar_lea.vmem %s3, %s1782
      $region44: #{unet_forward.9} parent=39 // pred_fallthru
        _
    $region40: #{unet_forward.9} parent=5 // pred_fallthru
      _
  $region6: #{unet_forward.9} parent=0 // loop_footer
    %s13 = sadd.s32 1, %s9
  $region7: #{unet_forward.9} parent=0 // loop_footer_branch
    %8 = sbr.rel target = $region3
  $region8: #{unet_forward.9} parent=0 // loop_exit
    _

</llo_original>
